<compile_context>
chip_gen: v6e
topology: v6e:2x2x1
jax: 0.10.0
libtpu: 0.0.40
codegen_flags: <defaults>
</compile_context>

<pallas_src>
import math

import jax
import jax.numpy as jnp
from jax.experimental import pallas as pl
from jax.experimental.pallas import tpu as pltpu

HEAD_COUNT = 3            # fixed in DecoderLayer.__init__
FFN_HIDDEN = 1000         # fixed in FeedForwardLayer.__init__
FFN_HIDDEN_PAD = 1024     # zero-padded hidden width (multiple of 128 lanes)
LN_EPS = 1e-5             # nn.LayerNorm default

_PER_LAYER_KEYS = ("wqkv1", "bqkv1", "wq2", "bq2", "wkv2", "bkv2",
                   "ln_g", "ln_b", "w1", "b1", "w2", "b2")
_N_PER_LAYER = len(_PER_LAYER_KEYS)          # 12 weight refs per layer


# ------------------------------ fused full-forward kernel ---------------------

def _make_decoder_kernel(num_layers):
    """Build a kernel that runs `num_layers` decoder layers + the final
    projection/log-softmax for one batch element (grid step)."""

    def kernel(x_ref, enc_ref, *refs):
        # refs = 12 * num_layers per-layer weights, final_w, final_b, out_ref
        final_w_ref = refs[_N_PER_LAYER * num_layers]
        final_b_ref = refs[_N_PER_LAYER * num_layers + 1]
        out_ref = refs[-1]

        x = x_ref[0]            # (S, D)
        enc = enc_ref[0]        # (Se, D)
        S, D = x.shape
        Dh = D // HEAD_COUNT

        # Causal mask built once per grid step, reused across heads & layers.
        rows = jax.lax.broadcasted_iota(jnp.int32, (S, S), 0)
        cols = jax.lax.broadcasted_iota(jnp.int32, (S, S), 1)
        causal_mask = cols > rows

        def mha(q_all, k_all, v_all, mask):
            # Static (unrolled) loop over the 3 heads; per-head results stay
            # in vregs and are concatenated once (no VMEM scratch round trip).
            heads = []
            for h in range(HEAD_COUNT):
                q_h = q_all[:, h * Dh:(h + 1) * Dh]   # scale pre-folded into W
                k_h = k_all[:, h * Dh:(h + 1) * Dh]
                v_h = v_all[:, h * Dh:(h + 1) * Dh]
                s = jax.lax.dot_general(q_h, k_h, (((1,), (1,)), ((), ())),
                                        preferred_element_type=jnp.float32)
                if mask is not None:
                    s = jnp.where(mask, jnp.float32(-1e9), s)
                s = s - jnp.max(s, axis=-1, keepdims=True)
                p = jnp.exp(s)
                p = p * pl.reciprocal(jnp.sum(p, axis=-1, keepdims=True),
                                      approx=True)
                heads.append(jnp.dot(p, v_h,
                                     preferred_element_type=jnp.float32))
            return jnp.concatenate(heads, axis=-1)

        for l in range(num_layers):
            (wqkv1, bqkv1, wq2, bq2, wkv2, bkv2,
             ln_g, ln_b, w1, b1, w2, b2) = refs[l * _N_PER_LAYER:
                                                (l + 1) * _N_PER_LAYER]
            gamma = ln_g[...]      # (1, D)
            beta = ln_b[...]       # (1, D)

            def layer_norm(z, gamma=gamma, beta=beta):
                # Two independent reductions (E[z^2], E[z]) overlap on the XLU.
                mu = jnp.mean(z, axis=-1, keepdims=True)
                ms = jnp.mean(z * z, axis=-1, keepdims=True)
                var = ms - mu * mu
                return (z - mu) * jax.lax.rsqrt(var + LN_EPS) * gamma + beta

            # 1) masked self-attention (fused QKV matmul) + residual + LN
            qkv = jnp.dot(x, wqkv1[...],
                          preferred_element_type=jnp.float32) + bqkv1[...]
            a1 = mha(qkv[:, :D], qkv[:, D:2 * D], qkv[:, 2 * D:], causal_mask)
            x1 = layer_norm(a1 + x)

            # 2) cross-attention (fused KV matmul on encoder) + residual + LN
            q2 = jnp.dot(x1, wq2[...],
                         preferred_element_type=jnp.float32) + bq2[...]
            kv2 = jnp.dot(enc, wkv2[...],
                          preferred_element_type=jnp.float32) + bkv2[...]
            a2 = mha(q2, kv2[:, :D], kv2[:, D:], None)
            x2 = layer_norm(a2 + x1)

            # 3) FFN with exact (erf) GELU, hidden zero-padded to 1024
            h = jnp.dot(x2, w1[...],
                        preferred_element_type=jnp.float32) + b1[...]
            h = 0.5 * h * (1.0 + jax.lax.erf(h * (1.0 / math.sqrt(2.0))))
            ff = jnp.dot(h, w2[...],
                         preferred_element_type=jnp.float32) + b2[...]
            x = layer_norm(x2 + ff)

        # 4) final projection + log-softmax (fused into this same call)
        logits = jnp.dot(x, final_w_ref[...],
                         preferred_element_type=jnp.float32) + final_b_ref[...]
        shifted = logits - jnp.max(logits, axis=-1, keepdims=True)
        lse = jnp.log(jnp.sum(jnp.exp(shifted), axis=-1, keepdims=True))
        out_ref[0] = shifted - lse

    return kernel


def decoder_forward(fused_params, x, enc):
    """One fused pallas_call for the full decoder forward pass."""
    B, S, D = x.shape
    Se = enc.shape[1]
    V = fused_params["final_w"].shape[1]
    layers = fused_params["layers"]
    L = len(layers)

    def wspec(arr):
        return pl.BlockSpec(arr.shape, lambda b: (0, 0))   # all weights are 2-D

    in_specs = [pl.BlockSpec((1, S, D), lambda b: (b, 0, 0)),    # x
                pl.BlockSpec((1, Se, D), lambda b: (b, 0, 0))]   # encoder out
    args = [x, enc]
    for lp in layers:
        for k in _PER_LAYER_KEYS:
            in_specs.append(wspec(lp[k]))
            args.append(lp[k])
    in_specs.append(wspec(fused_params["final_w"]))
    in_specs.append(wspec(fused_params["final_b"]))
    args.append(fused_params["final_w"])
    args.append(fused_params["final_b"])

    return pl.pallas_call(
        _make_decoder_kernel(L),
        out_shape=jax.ShapeDtypeStruct((B, S, V), jnp.float32),
        grid=(B,),
        in_specs=in_specs,
        out_specs=pl.BlockSpec((1, S, V), lambda b: (b, 0, 0)),
        compiler_params=pltpu.CompilerParams(
            dimension_semantics=("parallel",)),     # 2 batches -> 2 TCs on v7x
    )(*args)


# ------------------------------ parameter fusion ------------------------------

def fuse_params(params):
    """PyTorch-layout params -> fused/padded/scaled Pallas-kernel params."""
    fused_layers = []
    for p in params["layers"]:
        a1, a2 = p["attn1"], p["attn2"]
        D = a1["wq"].shape[0]
        scale = 1.0 / math.sqrt(D // HEAD_COUNT)    # folded into Q projections
        pad = FFN_HIDDEN_PAD - p["w1"].shape[1]
        fused_layers.append({
            "wqkv1": jnp.concatenate([a1["wq"] * scale, a1["wk"], a1["wv"]],
                                     axis=1),
            "bqkv1": jnp.concatenate([a1["bq"] * scale, a1["bk"], a1["bv"]],
                                     axis=1),
            "wq2": a2["wq"] * scale, "bq2": a2["bq"] * scale,
            "wkv2": jnp.concatenate([a2["wk"], a2["wv"]], axis=1),
            "bkv2": jnp.concatenate([a2["bk"], a2["bv"]], axis=1),
            "ln_g": p["ln_g"], "ln_b": p["ln_b"],
            "w1": jnp.pad(p["w1"], ((0, 0), (0, pad))),   # zero-pad: exact
            "b1": jnp.pad(p["b1"], ((0, 0), (0, pad))),
            "w2": jnp.pad(p["w2"], ((0, pad), (0, 0))),
            "b2": p["b2"],
        })
    return {"layers": fused_layers,
            "final_w": params["final_w"], "final_b": params["final_b"]}


# ------------------------------ parameter init ---------------------------------

def init_linear(key, fan_in, fan_out):
    kw, kb = jax.random.split(key)
    bound = 1.0 / math.sqrt(fan_in)
    w = jax.random.uniform(kw, (fan_in, fan_out), jnp.float32, -bound, bound)
    b = jax.random.uniform(kb, (1, fan_out), jnp.float32, -bound, bound)
    return w, b


def init_attn(key, D):
    kq, kk, kv = jax.random.split(key, 3)
    wq, bq = init_linear(kq, D, D)
    wk, bk = init_linear(kk, D, D)
    wv, bv = init_linear(kv, D, D)
    return {"wq": wq, "bq": bq, "wk": wk, "bk": bk, "wv": wv, "bv": bv}


def init_params(key, D, V, num_layers=1):
    keys = jax.random.split(key, num_layers + 1)
    layers = []
    for lk in keys[:-1]:
        ka1, ka2, kf1, kf2 = jax.random.split(lk, 4)
        w1, b1 = init_linear(kf1, D, FFN_HIDDEN)
        w2, b2 = init_linear(kf2, FFN_HIDDEN, D)
        layers.append({
            "attn1": init_attn(ka1, D),
            "attn2": init_attn(ka2, D),
            "w1": w1, "b1": b1, "w2": w2, "b2": b2,
            # NOTE: the PyTorch DecoderLayer reuses ONE nn.LayerNorm for all
            # three sub-blocks, so gamma/beta are intentionally shared.
            "ln_g": jnp.ones((1, D), jnp.float32),
            "ln_b": jnp.zeros((1, D), jnp.float32),
        })
    wf, bf = init_linear(keys[-1], D, V)
    return {"layers": layers, "final_w": wf, "final_b": bf}


# ------------------------------ pure-JAX reference ------------------------------

def ref_decoder(params, x, enc):
    def ln(z, g, b):
        mu = z.mean(-1, keepdims=True)
        var = ((z - mu) ** 2).mean(-1, keepdims=True)
        return (z - mu) / jnp.sqrt(var + LN_EPS) * g + b

    def attn(p, xq, xkv, mask):
        B, Sq, D = xq.shape
        Sk = xkv.shape[1]
        dh = D // HEAD_COUNT
        q = (xq @ p["wq"] + p["bq"]).reshape(B, Sq, HEAD_COUNT, dh).transpose(0, 2, 1, 3)
        k = (xkv @ p["wk"] + p["bk"]).reshape(B, Sk, HEAD_COUNT, dh).transpose(0, 2, 1, 3)
        v = (xkv @ p["wv"] + p["bv"]).reshape(B, Sk, HEAD_COUNT, dh).transpose(0, 2, 1, 3)
        s = jnp.einsum("bhqd,bhkd->bhqk", q, k) / math.sqrt(dh)
        s = jnp.where(mask > 0, -1e9, s)
        a = jax.nn.softmax(s, axis=-1)
        o = jnp.einsum("bhqk,bhkd->bhqd", a, v)
        return o.transpose(0, 2, 1, 3).reshape(B, Sq, D)

    for p in params["layers"]:
        B, S, _ = x.shape
        causal = jnp.triu(jnp.ones((B, HEAD_COUNT, S, S), jnp.float32), k=1)
        no_mask = jnp.zeros((B, HEAD_COUNT, S, enc.shape[1]), jnp.float32)
        a1 = attn(p["attn1"], x, x, causal)
        x = ln(a1 + x, p["ln_g"], p["ln_b"])
        a2 = attn(p["attn2"], x, enc, no_mask)
        res = ln(a2 + x, p["ln_g"], p["ln_b"])
        h = jax.nn.gelu(res @ p["w1"] + p["b1"], approximate=False)
        ff = h @ p["w2"] + p["b2"]
        x = ln(res + ff, p["ln_g"], p["ln_b"])
    logits = x @ params["final_w"] + params["final_b"]
    return jax.nn.log_softmax(logits, axis=-1)


# --------------------------------- main ----------------------------------------

if __name__ == "__main__":
    # dim: batch=2, sents=8, token=48 (3 heads -> head_dim=16), vocab=32
    B, S, D, V = 2, 8, 48, 32
    key = jax.random.PRNGKey(0)
    k_x, k_enc, k_p = jax.random.split(key, 3)
    x = jax.random.normal(k_x, (B, S, D), jnp.float32)
    enc = jax.random.normal(k_enc, (B, S, D), jnp.float32)
    params = init_params(k_p, D, V, num_layers=1)
    fused = fuse_params(params)

    out = decoder_forward(fused, x, enc)
    out = jax.block_until_ready(out)

    assert out.shape == (B, S, V), out.shape
    ref = ref_decoder(params, x, enc)
    assert jnp.allclose(out, ref, atol=1e-3, rtol=1e-3), \
        float(jnp.max(jnp.abs(out - ref)))
    print("KERNEL_OK")
</pallas_src>

<mosaic_0001>
module attributes {stable_mosaic.version = 11 : i64} {
  func.func @kernel(%arg0: i32, %arg1: memref<1x8x48xf32, #tpu.memory_space<vmem>>, %arg2: memref<1x8x48xf32, #tpu.memory_space<vmem>>, %arg3: memref<48x144xf32, #tpu.memory_space<vmem>>, %arg4: memref<1x144xf32, #tpu.memory_space<vmem>>, %arg5: memref<48x48xf32, #tpu.memory_space<vmem>>, %arg6: memref<1x48xf32, #tpu.memory_space<vmem>>, %arg7: memref<48x96xf32, #tpu.memory_space<vmem>>, %arg8: memref<1x96xf32, #tpu.memory_space<vmem>>, %arg9: memref<1x48xf32, #tpu.memory_space<vmem>>, %arg10: memref<1x48xf32, #tpu.memory_space<vmem>>, %arg11: memref<48x1024xf32, #tpu.memory_space<vmem>>, %arg12: memref<1x1024xf32, #tpu.memory_space<vmem>>, %arg13: memref<1024x48xf32, #tpu.memory_space<vmem>>, %arg14: memref<1x48xf32, #tpu.memory_space<vmem>>, %arg15: memref<48x32xf32, #tpu.memory_space<vmem>>, %arg16: memref<1x32xf32, #tpu.memory_space<vmem>>, %arg17: memref<1x8x32xf32, #tpu.memory_space<vmem>>) attributes {dimension_semantics = [#tpu.dimension_semantics<parallel>], iteration_bounds = array<i64: 2>, scalar_prefetch = 0 : i64, scratch_operands = 0 : i64, tpu.core_type = #tpu.core_type<tc>, window_params = [{transform_indices = @transform_0, window_bounds = array<i64: 1, 8, 48>}, {transform_indices = @transform_1, window_bounds = array<i64: 1, 8, 48>}, {pipeline_mode = #tpu.pipeline_mode<synchronous>, transform_indices = @transform_2, window_bounds = array<i64: 48, 144>}, {pipeline_mode = #tpu.pipeline_mode<synchronous>, transform_indices = @transform_3, window_bounds = array<i64: 1, 144>}, {pipeline_mode = #tpu.pipeline_mode<synchronous>, transform_indices = @transform_4, window_bounds = array<i64: 48, 48>}, {pipeline_mode = #tpu.pipeline_mode<synchronous>, transform_indices = @transform_5, window_bounds = array<i64: 1, 48>}, {pipeline_mode = #tpu.pipeline_mode<synchronous>, transform_indices = @transform_6, window_bounds = array<i64: 48, 96>}, {pipeline_mode = #tpu.pipeline_mode<synchronous>, transform_indices = @transform_7, window_bounds = array<i64: 1, 96>}, {pipeline_mode = #tpu.pipeline_mode<synchronous>, transform_indices = @transform_8, window_bounds = array<i64: 1, 48>}, {pipeline_mode = #tpu.pipeline_mode<synchronous>, transform_indices = @transform_9, window_bounds = array<i64: 1, 48>}, {pipeline_mode = #tpu.pipeline_mode<synchronous>, transform_indices = @transform_10, window_bounds = array<i64: 48, 1024>}, {pipeline_mode = #tpu.pipeline_mode<synchronous>, transform_indices = @transform_11, window_bounds = array<i64: 1, 1024>}, {pipeline_mode = #tpu.pipeline_mode<synchronous>, transform_indices = @transform_12, window_bounds = array<i64: 1024, 48>}, {pipeline_mode = #tpu.pipeline_mode<synchronous>, transform_indices = @transform_13, window_bounds = array<i64: 1, 48>}, {pipeline_mode = #tpu.pipeline_mode<synchronous>, transform_indices = @transform_14, window_bounds = array<i64: 48, 32>}, {pipeline_mode = #tpu.pipeline_mode<synchronous>, transform_indices = @transform_15, window_bounds = array<i64: 1, 32>}, {transform_indices = @transform_16, window_bounds = array<i64: 1, 8, 32>}]} {
    %c0 = arith.constant 0 : index
    %c0_0 = arith.constant 0 : index
    %c0_1 = arith.constant 0 : index
    %0 = vector.load %arg1[%c0, %c0_0, %c0_1] : memref<1x8x48xf32, #tpu.memory_space<vmem>>, vector<1x8x48xf32>
    %1 = vector.shape_cast %0 : vector<1x8x48xf32> to vector<8x48xf32>
    %c0_2 = arith.constant 0 : index
    %c0_3 = arith.constant 0 : index
    %c0_4 = arith.constant 0 : index
    %2 = vector.load %arg2[%c0_2, %c0_3, %c0_4] : memref<1x8x48xf32, #tpu.memory_space<vmem>>, vector<1x8x48xf32>
    %3 = vector.shape_cast %2 : vector<1x8x48xf32> to vector<8x48xf32>
    %4 = tpu.iota {dimensions = array<i32: 0>} : vector<8x8xi32>
    %5 = tpu.iota {dimensions = array<i32: 1>} : vector<8x8xi32>
    %6 = arith.cmpi sgt, %5, %4 : vector<8x8xi32>
    %c0_5 = arith.constant 0 : index
    %c0_6 = arith.constant 0 : index
    %7 = vector.load %arg9[%c0_5, %c0_6] : memref<1x48xf32, #tpu.memory_space<vmem>>, vector<1x48xf32>
    %c0_7 = arith.constant 0 : index
    %c0_8 = arith.constant 0 : index
    %8 = vector.load %arg10[%c0_7, %c0_8] : memref<1x48xf32, #tpu.memory_space<vmem>>, vector<1x48xf32>
    %c0_9 = arith.constant 0 : index
    %c0_10 = arith.constant 0 : index
    %9 = vector.load %arg3[%c0_9, %c0_10] : memref<48x144xf32, #tpu.memory_space<vmem>>, vector<48x144xf32>
    %cst = arith.constant dense<0.000000e+00> : vector<8x144xf32>
    %10 = tpu.matmul %1, %9, %cst {dimension_numbers = #tpu.dot_dimension_numbers<[1], [0], [0], [1], [0, 0, 1, 1], [], []>} : vector<8x48xf32>, vector<48x144xf32>, vector<8x144xf32> -> vector<8x144xf32>
    %c0_11 = arith.constant 0 : index
    %c0_12 = arith.constant 0 : index
    %11 = vector.load %arg4[%c0_11, %c0_12] : memref<1x144xf32, #tpu.memory_space<vmem>>, vector<1x144xf32>
    %12 = vector.broadcast %11 : vector<1x144xf32> to vector<8x144xf32>
    %13 = arith.addf %10, %12 : vector<8x144xf32>
    %14 = vector.extract_strided_slice %13 {offsets = [0, 0], sizes = [8, 48], strides = [1, 1]} : vector<8x144xf32> to vector<8x48xf32>
    %15 = vector.extract_strided_slice %13 {offsets = [0, 48], sizes = [8, 48], strides = [1, 1]} : vector<8x144xf32> to vector<8x48xf32>
    %16 = vector.extract_strided_slice %13 {offsets = [0, 96], sizes = [8, 48], strides = [1, 1]} : vector<8x144xf32> to vector<8x48xf32>
    %17 = vector.extract_strided_slice %14 {offsets = [0, 0], sizes = [8, 16], strides = [1, 1]} : vector<8x48xf32> to vector<8x16xf32>
    %18 = vector.extract_strided_slice %15 {offsets = [0, 0], sizes = [8, 16], strides = [1, 1]} : vector<8x48xf32> to vector<8x16xf32>
    %19 = vector.extract_strided_slice %16 {offsets = [0, 0], sizes = [8, 16], strides = [1, 1]} : vector<8x48xf32> to vector<8x16xf32>
    %cst_13 = arith.constant dense<0.000000e+00> : vector<8x8xf32>
    %20 = tpu.matmul %17, %18, %cst_13 {dimension_numbers = #tpu.dot_dimension_numbers<[1], [1], [0], [0], [0, 0, 1, 0], [], []>} : vector<8x16xf32>, vector<8x16xf32>, vector<8x8xf32> -> vector<8x8xf32>
    %cst_14 = arith.constant -1.000000e+09 : f32
    %21 = vector.broadcast %cst_14 : f32 to vector<8x8xf32>
    %22 = arith.select %6, %21, %20 : vector<8x8xi1>, vector<8x8xf32>
    %cst_15 = arith.constant dense<0xFF800000> : vector<8xf32>
    %23 = vector.multi_reduction <maximumf>, %22, %cst_15 [1] : vector<8x8xf32> to vector<8xf32>
    %24 = vector.shape_cast %23 : vector<8xf32> to vector<8x1xf32>
    %25 = vector.broadcast %24 : vector<8x1xf32> to vector<8x8xf32>
    %26 = arith.subf %22, %25 : vector<8x8xf32>
    %27 = math.exp %26 : vector<8x8xf32>
    %cst_16 = arith.constant dense<0.000000e+00> : vector<8xf32>
    %28 = vector.multi_reduction <add>, %27, %cst_16 [1] : vector<8x8xf32> to vector<8xf32>
    %29 = vector.shape_cast %28 : vector<8xf32> to vector<8x1xf32>
    %30 = tpu.reciprocal %29 {approx = true} : vector<8x1xf32> -> vector<8x1xf32>
    %31 = vector.broadcast %30 : vector<8x1xf32> to vector<8x8xf32>
    %32 = arith.mulf %27, %31 : vector<8x8xf32>
    %cst_17 = arith.constant dense<0.000000e+00> : vector<8x16xf32>
    %33 = tpu.matmul %32, %19, %cst_17 {dimension_numbers = #tpu.dot_dimension_numbers<[1], [0], [0], [1], [0, 0, 1, 1], [], []>} : vector<8x8xf32>, vector<8x16xf32>, vector<8x16xf32> -> vector<8x16xf32>
    %34 = vector.extract_strided_slice %14 {offsets = [0, 16], sizes = [8, 16], strides = [1, 1]} : vector<8x48xf32> to vector<8x16xf32>
    %35 = vector.extract_strided_slice %15 {offsets = [0, 16], sizes = [8, 16], strides = [1, 1]} : vector<8x48xf32> to vector<8x16xf32>
    %36 = vector.extract_strided_slice %16 {offsets = [0, 16], sizes = [8, 16], strides = [1, 1]} : vector<8x48xf32> to vector<8x16xf32>
    %cst_18 = arith.constant dense<0.000000e+00> : vector<8x8xf32>
    %37 = tpu.matmul %34, %35, %cst_18 {dimension_numbers = #tpu.dot_dimension_numbers<[1], [1], [0], [0], [0, 0, 1, 0], [], []>} : vector<8x16xf32>, vector<8x16xf32>, vector<8x8xf32> -> vector<8x8xf32>
    %cst_19 = arith.constant -1.000000e+09 : f32
    %38 = vector.broadcast %cst_19 : f32 to vector<8x8xf32>
    %39 = arith.select %6, %38, %37 : vector<8x8xi1>, vector<8x8xf32>
    %cst_20 = arith.constant dense<0xFF800000> : vector<8xf32>
    %40 = vector.multi_reduction <maximumf>, %39, %cst_20 [1] : vector<8x8xf32> to vector<8xf32>
    %41 = vector.shape_cast %40 : vector<8xf32> to vector<8x1xf32>
    %42 = vector.broadcast %41 : vector<8x1xf32> to vector<8x8xf32>
    %43 = arith.subf %39, %42 : vector<8x8xf32>
    %44 = math.exp %43 : vector<8x8xf32>
    %cst_21 = arith.constant dense<0.000000e+00> : vector<8xf32>
    %45 = vector.multi_reduction <add>, %44, %cst_21 [1] : vector<8x8xf32> to vector<8xf32>
    %46 = vector.shape_cast %45 : vector<8xf32> to vector<8x1xf32>
    %47 = tpu.reciprocal %46 {approx = true} : vector<8x1xf32> -> vector<8x1xf32>
    %48 = vector.broadcast %47 : vector<8x1xf32> to vector<8x8xf32>
    %49 = arith.mulf %44, %48 : vector<8x8xf32>
    %cst_22 = arith.constant dense<0.000000e+00> : vector<8x16xf32>
    %50 = tpu.matmul %49, %36, %cst_22 {dimension_numbers = #tpu.dot_dimension_numbers<[1], [0], [0], [1], [0, 0, 1, 1], [], []>} : vector<8x8xf32>, vector<8x16xf32>, vector<8x16xf32> -> vector<8x16xf32>
    %51 = vector.extract_strided_slice %14 {offsets = [0, 32], sizes = [8, 16], strides = [1, 1]} : vector<8x48xf32> to vector<8x16xf32>
    %52 = vector.extract_strided_slice %15 {offsets = [0, 32], sizes = [8, 16], strides = [1, 1]} : vector<8x48xf32> to vector<8x16xf32>
    %53 = vector.extract_strided_slice %16 {offsets = [0, 32], sizes = [8, 16], strides = [1, 1]} : vector<8x48xf32> to vector<8x16xf32>
    %cst_23 = arith.constant dense<0.000000e+00> : vector<8x8xf32>
    %54 = tpu.matmul %51, %52, %cst_23 {dimension_numbers = #tpu.dot_dimension_numbers<[1], [1], [0], [0], [0, 0, 1, 0], [], []>} : vector<8x16xf32>, vector<8x16xf32>, vector<8x8xf32> -> vector<8x8xf32>
    %cst_24 = arith.constant -1.000000e+09 : f32
    %55 = vector.broadcast %cst_24 : f32 to vector<8x8xf32>
    %56 = arith.select %6, %55, %54 : vector<8x8xi1>, vector<8x8xf32>
    %cst_25 = arith.constant dense<0xFF800000> : vector<8xf32>
    %57 = vector.multi_reduction <maximumf>, %56, %cst_25 [1] : vector<8x8xf32> to vector<8xf32>
    %58 = vector.shape_cast %57 : vector<8xf32> to vector<8x1xf32>
    %59 = vector.broadcast %58 : vector<8x1xf32> to vector<8x8xf32>
    %60 = arith.subf %56, %59 : vector<8x8xf32>
    %61 = math.exp %60 : vector<8x8xf32>
    %cst_26 = arith.constant dense<0.000000e+00> : vector<8xf32>
    %62 = vector.multi_reduction <add>, %61, %cst_26 [1] : vector<8x8xf32> to vector<8xf32>
    %63 = vector.shape_cast %62 : vector<8xf32> to vector<8x1xf32>
    %64 = tpu.reciprocal %63 {approx = true} : vector<8x1xf32> -> vector<8x1xf32>
    %65 = vector.broadcast %64 : vector<8x1xf32> to vector<8x8xf32>
    %66 = arith.mulf %61, %65 : vector<8x8xf32>
    %cst_27 = arith.constant dense<0.000000e+00> : vector<8x16xf32>
    %67 = tpu.matmul %66, %53, %cst_27 {dimension_numbers = #tpu.dot_dimension_numbers<[1], [0], [0], [1], [0, 0, 1, 1], [], []>} : vector<8x8xf32>, vector<8x16xf32>, vector<8x16xf32> -> vector<8x16xf32>
    %68 = tpu.concatenate %33, %50, %67 in 1 : vector<8x16xf32>, vector<8x16xf32>, vector<8x16xf32> -> vector<8x48xf32>
    %69 = arith.addf %68, %1 : vector<8x48xf32>
    %cst_28 = arith.constant dense<0.000000e+00> : vector<8xf32>
    %70 = vector.multi_reduction <add>, %69, %cst_28 [1] : vector<8x48xf32> to vector<8xf32>
    %71 = vector.shape_cast %70 : vector<8xf32> to vector<8x1xf32>
    %cst_29 = arith.constant 4.800000e+01 : f32
    %72 = vector.broadcast %cst_29 : f32 to vector<8x1xf32>
    %73 = arith.divf %71, %72 : vector<8x1xf32>
    %74 = arith.mulf %69, %69 : vector<8x48xf32>
    %cst_30 = arith.constant dense<0.000000e+00> : vector<8xf32>
    %75 = vector.multi_reduction <add>, %74, %cst_30 [1] : vector<8x48xf32> to vector<8xf32>
    %76 = vector.shape_cast %75 : vector<8xf32> to vector<8x1xf32>
    %cst_31 = arith.constant 4.800000e+01 : f32
    %77 = vector.broadcast %cst_31 : f32 to vector<8x1xf32>
    %78 = arith.divf %76, %77 : vector<8x1xf32>
    %79 = arith.mulf %73, %73 : vector<8x1xf32>
    %80 = arith.subf %78, %79 : vector<8x1xf32>
    %81 = vector.broadcast %73 : vector<8x1xf32> to vector<8x48xf32>
    %82 = arith.subf %69, %81 : vector<8x48xf32>
    %cst_32 = arith.constant 9.99999974E-6 : f32
    %83 = vector.broadcast %cst_32 : f32 to vector<8x1xf32>
    %84 = arith.addf %80, %83 : vector<8x1xf32>
    %85 = math.rsqrt %84 : vector<8x1xf32>
    %86 = vector.broadcast %85 : vector<8x1xf32> to vector<8x48xf32>
    %87 = arith.mulf %82, %86 : vector<8x48xf32>
    %88 = vector.broadcast %7 : vector<1x48xf32> to vector<8x48xf32>
    %89 = arith.mulf %87, %88 : vector<8x48xf32>
    %90 = vector.broadcast %8 : vector<1x48xf32> to vector<8x48xf32>
    %91 = arith.addf %89, %90 : vector<8x48xf32>
    %c0_33 = arith.constant 0 : index
    %c0_34 = arith.constant 0 : index
    %92 = vector.load %arg5[%c0_33, %c0_34] : memref<48x48xf32, #tpu.memory_space<vmem>>, vector<48x48xf32>
    %cst_35 = arith.constant dense<0.000000e+00> : vector<8x48xf32>
    %93 = tpu.matmul %91, %92, %cst_35 {dimension_numbers = #tpu.dot_dimension_numbers<[1], [0], [0], [1], [0, 0, 1, 1], [], []>} : vector<8x48xf32>, vector<48x48xf32>, vector<8x48xf32> -> vector<8x48xf32>
    %c0_36 = arith.constant 0 : index
    %c0_37 = arith.constant 0 : index
    %94 = vector.load %arg6[%c0_36, %c0_37] : memref<1x48xf32, #tpu.memory_space<vmem>>, vector<1x48xf32>
    %95 = vector.broadcast %94 : vector<1x48xf32> to vector<8x48xf32>
    %96 = arith.addf %93, %95 : vector<8x48xf32>
    %c0_38 = arith.constant 0 : index
    %c0_39 = arith.constant 0 : index
    %97 = vector.load %arg7[%c0_38, %c0_39] : memref<48x96xf32, #tpu.memory_space<vmem>>, vector<48x96xf32>
    %cst_40 = arith.constant dense<0.000000e+00> : vector<8x96xf32>
    %98 = tpu.matmul %3, %97, %cst_40 {dimension_numbers = #tpu.dot_dimension_numbers<[1], [0], [0], [1], [0, 0, 1, 1], [], []>} : vector<8x48xf32>, vector<48x96xf32>, vector<8x96xf32> -> vector<8x96xf32>
    %c0_41 = arith.constant 0 : index
    %c0_42 = arith.constant 0 : index
    %99 = vector.load %arg8[%c0_41, %c0_42] : memref<1x96xf32, #tpu.memory_space<vmem>>, vector<1x96xf32>
    %100 = vector.broadcast %99 : vector<1x96xf32> to vector<8x96xf32>
    %101 = arith.addf %98, %100 : vector<8x96xf32>
    %102 = vector.extract_strided_slice %101 {offsets = [0, 0], sizes = [8, 48], strides = [1, 1]} : vector<8x96xf32> to vector<8x48xf32>
    %103 = vector.extract_strided_slice %101 {offsets = [0, 48], sizes = [8, 48], strides = [1, 1]} : vector<8x96xf32> to vector<8x48xf32>
    %104 = vector.extract_strided_slice %96 {offsets = [0, 0], sizes = [8, 16], strides = [1, 1]} : vector<8x48xf32> to vector<8x16xf32>
    %105 = vector.extract_strided_slice %102 {offsets = [0, 0], sizes = [8, 16], strides = [1, 1]} : vector<8x48xf32> to vector<8x16xf32>
    %106 = vector.extract_strided_slice %103 {offsets = [0, 0], sizes = [8, 16], strides = [1, 1]} : vector<8x48xf32> to vector<8x16xf32>
    %cst_43 = arith.constant dense<0.000000e+00> : vector<8x8xf32>
    %107 = tpu.matmul %104, %105, %cst_43 {dimension_numbers = #tpu.dot_dimension_numbers<[1], [1], [0], [0], [0, 0, 1, 0], [], []>} : vector<8x16xf32>, vector<8x16xf32>, vector<8x8xf32> -> vector<8x8xf32>
    %cst_44 = arith.constant dense<0xFF800000> : vector<8xf32>
    %108 = vector.multi_reduction <maximumf>, %107, %cst_44 [1] : vector<8x8xf32> to vector<8xf32>
    %109 = vector.shape_cast %108 : vector<8xf32> to vector<8x1xf32>
    %110 = vector.broadcast %109 : vector<8x1xf32> to vector<8x8xf32>
    %111 = arith.subf %107, %110 : vector<8x8xf32>
    %112 = math.exp %111 : vector<8x8xf32>
    %cst_45 = arith.constant dense<0.000000e+00> : vector<8xf32>
    %113 = vector.multi_reduction <add>, %112, %cst_45 [1] : vector<8x8xf32> to vector<8xf32>
    %114 = vector.shape_cast %113 : vector<8xf32> to vector<8x1xf32>
    %115 = tpu.reciprocal %114 {approx = true} : vector<8x1xf32> -> vector<8x1xf32>
    %116 = vector.broadcast %115 : vector<8x1xf32> to vector<8x8xf32>
    %117 = arith.mulf %112, %116 : vector<8x8xf32>
    %cst_46 = arith.constant dense<0.000000e+00> : vector<8x16xf32>
    %118 = tpu.matmul %117, %106, %cst_46 {dimension_numbers = #tpu.dot_dimension_numbers<[1], [0], [0], [1], [0, 0, 1, 1], [], []>} : vector<8x8xf32>, vector<8x16xf32>, vector<8x16xf32> -> vector<8x16xf32>
    %119 = vector.extract_strided_slice %96 {offsets = [0, 16], sizes = [8, 16], strides = [1, 1]} : vector<8x48xf32> to vector<8x16xf32>
    %120 = vector.extract_strided_slice %102 {offsets = [0, 16], sizes = [8, 16], strides = [1, 1]} : vector<8x48xf32> to vector<8x16xf32>
    %121 = vector.extract_strided_slice %103 {offsets = [0, 16], sizes = [8, 16], strides = [1, 1]} : vector<8x48xf32> to vector<8x16xf32>
    %cst_47 = arith.constant dense<0.000000e+00> : vector<8x8xf32>
    %122 = tpu.matmul %119, %120, %cst_47 {dimension_numbers = #tpu.dot_dimension_numbers<[1], [1], [0], [0], [0, 0, 1, 0], [], []>} : vector<8x16xf32>, vector<8x16xf32>, vector<8x8xf32> -> vector<8x8xf32>
    %cst_48 = arith.constant dense<0xFF800000> : vector<8xf32>
    %123 = vector.multi_reduction <maximumf>, %122, %cst_48 [1] : vector<8x8xf32> to vector<8xf32>
    %124 = vector.shape_cast %123 : vector<8xf32> to vector<8x1xf32>
    %125 = vector.broadcast %124 : vector<8x1xf32> to vector<8x8xf32>
    %126 = arith.subf %122, %125 : vector<8x8xf32>
    %127 = math.exp %126 : vector<8x8xf32>
    %cst_49 = arith.constant dense<0.000000e+00> : vector<8xf32>
    %128 = vector.multi_reduction <add>, %127, %cst_49 [1] : vector<8x8xf32> to vector<8xf32>
    %129 = vector.shape_cast %128 : vector<8xf32> to vector<8x1xf32>
    %130 = tpu.reciprocal %129 {approx = true} : vector<8x1xf32> -> vector<8x1xf32>
    %131 = vector.broadcast %130 : vector<8x1xf32> to vector<8x8xf32>
    %132 = arith.mulf %127, %131 : vector<8x8xf32>
    %cst_50 = arith.constant dense<0.000000e+00> : vector<8x16xf32>
    %133 = tpu.matmul %132, %121, %cst_50 {dimension_numbers = #tpu.dot_dimension_numbers<[1], [0], [0], [1], [0, 0, 1, 1], [], []>} : vector<8x8xf32>, vector<8x16xf32>, vector<8x16xf32> -> vector<8x16xf32>
    %134 = vector.extract_strided_slice %96 {offsets = [0, 32], sizes = [8, 16], strides = [1, 1]} : vector<8x48xf32> to vector<8x16xf32>
    %135 = vector.extract_strided_slice %102 {offsets = [0, 32], sizes = [8, 16], strides = [1, 1]} : vector<8x48xf32> to vector<8x16xf32>
    %136 = vector.extract_strided_slice %103 {offsets = [0, 32], sizes = [8, 16], strides = [1, 1]} : vector<8x48xf32> to vector<8x16xf32>
    %cst_51 = arith.constant dense<0.000000e+00> : vector<8x8xf32>
    %137 = tpu.matmul %134, %135, %cst_51 {dimension_numbers = #tpu.dot_dimension_numbers<[1], [1], [0], [0], [0, 0, 1, 0], [], []>} : vector<8x16xf32>, vector<8x16xf32>, vector<8x8xf32> -> vector<8x8xf32>
    %cst_52 = arith.constant dense<0xFF800000> : vector<8xf32>
    %138 = vector.multi_reduction <maximumf>, %137, %cst_52 [1] : vector<8x8xf32> to vector<8xf32>
    %139 = vector.shape_cast %138 : vector<8xf32> to vector<8x1xf32>
    %140 = vector.broadcast %139 : vector<8x1xf32> to vector<8x8xf32>
    %141 = arith.subf %137, %140 : vector<8x8xf32>
    %142 = math.exp %141 : vector<8x8xf32>
    %cst_53 = arith.constant dense<0.000000e+00> : vector<8xf32>
    %143 = vector.multi_reduction <add>, %142, %cst_53 [1] : vector<8x8xf32> to vector<8xf32>
    %144 = vector.shape_cast %143 : vector<8xf32> to vector<8x1xf32>
    %145 = tpu.reciprocal %144 {approx = true} : vector<8x1xf32> -> vector<8x1xf32>
    %146 = vector.broadcast %145 : vector<8x1xf32> to vector<8x8xf32>
    %147 = arith.mulf %142, %146 : vector<8x8xf32>
    %cst_54 = arith.constant dense<0.000000e+00> : vector<8x16xf32>
    %148 = tpu.matmul %147, %136, %cst_54 {dimension_numbers = #tpu.dot_dimension_numbers<[1], [0], [0], [1], [0, 0, 1, 1], [], []>} : vector<8x8xf32>, vector<8x16xf32>, vector<8x16xf32> -> vector<8x16xf32>
    %149 = tpu.concatenate %118, %133, %148 in 1 : vector<8x16xf32>, vector<8x16xf32>, vector<8x16xf32> -> vector<8x48xf32>
    %150 = arith.addf %149, %91 : vector<8x48xf32>
    %cst_55 = arith.constant dense<0.000000e+00> : vector<8xf32>
    %151 = vector.multi_reduction <add>, %150, %cst_55 [1] : vector<8x48xf32> to vector<8xf32>
    %152 = vector.shape_cast %151 : vector<8xf32> to vector<8x1xf32>
    %cst_56 = arith.constant 4.800000e+01 : f32
    %153 = vector.broadcast %cst_56 : f32 to vector<8x1xf32>
    %154 = arith.divf %152, %153 : vector<8x1xf32>
    %155 = arith.mulf %150, %150 : vector<8x48xf32>
    %cst_57 = arith.constant dense<0.000000e+00> : vector<8xf32>
    %156 = vector.multi_reduction <add>, %155, %cst_57 [1] : vector<8x48xf32> to vector<8xf32>
    %157 = vector.shape_cast %156 : vector<8xf32> to vector<8x1xf32>
    %cst_58 = arith.constant 4.800000e+01 : f32
    %158 = vector.broadcast %cst_58 : f32 to vector<8x1xf32>
    %159 = arith.divf %157, %158 : vector<8x1xf32>
    %160 = arith.mulf %154, %154 : vector<8x1xf32>
    %161 = arith.subf %159, %160 : vector<8x1xf32>
    %162 = vector.broadcast %154 : vector<8x1xf32> to vector<8x48xf32>
    %163 = arith.subf %150, %162 : vector<8x48xf32>
    %cst_59 = arith.constant 9.99999974E-6 : f32
    %164 = vector.broadcast %cst_59 : f32 to vector<8x1xf32>
    %165 = arith.addf %161, %164 : vector<8x1xf32>
    %166 = math.rsqrt %165 : vector<8x1xf32>
    %167 = vector.broadcast %166 : vector<8x1xf32> to vector<8x48xf32>
    %168 = arith.mulf %163, %167 : vector<8x48xf32>
    %169 = vector.broadcast %7 : vector<1x48xf32> to vector<8x48xf32>
    %170 = arith.mulf %168, %169 : vector<8x48xf32>
    %171 = vector.broadcast %8 : vector<1x48xf32> to vector<8x48xf32>
    %172 = arith.addf %170, %171 : vector<8x48xf32>
    %c0_60 = arith.constant 0 : index
    %c0_61 = arith.constant 0 : index
    %173 = vector.load %arg11[%c0_60, %c0_61] : memref<48x1024xf32, #tpu.memory_space<vmem>>, vector<48x1024xf32>
    %cst_62 = arith.constant dense<0.000000e+00> : vector<8x1024xf32>
    %174 = tpu.matmul %172, %173, %cst_62 {dimension_numbers = #tpu.dot_dimension_numbers<[1], [0], [0], [1], [0, 0, 1, 1], [], []>} : vector<8x48xf32>, vector<48x1024xf32>, vector<8x1024xf32> -> vector<8x1024xf32>
    %c0_63 = arith.constant 0 : index
    %c0_64 = arith.constant 0 : index
    %175 = vector.load %arg12[%c0_63, %c0_64] : memref<1x1024xf32, #tpu.memory_space<vmem>>, vector<1x1024xf32>
    %176 = vector.broadcast %175 : vector<1x1024xf32> to vector<8x1024xf32>
    %177 = arith.addf %174, %176 : vector<8x1024xf32>
    %cst_65 = arith.constant 5.000000e-01 : f32
    %178 = vector.broadcast %cst_65 : f32 to vector<8x1024xf32>
    %179 = arith.mulf %178, %177 : vector<8x1024xf32>
    %cst_66 = arith.constant 0.707106769 : f32
    %180 = vector.broadcast %cst_66 : f32 to vector<8x1024xf32>
    %181 = arith.mulf %177, %180 : vector<8x1024xf32>
    %182 = math.erf %181 : vector<8x1024xf32>
    %cst_67 = arith.constant 1.000000e+00 : f32
    %183 = vector.broadcast %cst_67 : f32 to vector<8x1024xf32>
    %184 = arith.addf %183, %182 : vector<8x1024xf32>
    %185 = arith.mulf %179, %184 : vector<8x1024xf32>
    %c0_68 = arith.constant 0 : index
    %c0_69 = arith.constant 0 : index
    %186 = vector.load %arg13[%c0_68, %c0_69] : memref<1024x48xf32, #tpu.memory_space<vmem>>, vector<1024x48xf32>
    %cst_70 = arith.constant dense<0.000000e+00> : vector<8x48xf32>
    %187 = tpu.matmul %185, %186, %cst_70 {dimension_numbers = #tpu.dot_dimension_numbers<[1], [0], [0], [1], [0, 0, 1, 1], [], []>} : vector<8x1024xf32>, vector<1024x48xf32>, vector<8x48xf32> -> vector<8x48xf32>
    %c0_71 = arith.constant 0 : index
    %c0_72 = arith.constant 0 : index
    %188 = vector.load %arg14[%c0_71, %c0_72] : memref<1x48xf32, #tpu.memory_space<vmem>>, vector<1x48xf32>
    %189 = vector.broadcast %188 : vector<1x48xf32> to vector<8x48xf32>
    %190 = arith.addf %187, %189 : vector<8x48xf32>
    %191 = arith.addf %172, %190 : vector<8x48xf32>
    %cst_73 = arith.constant dense<0.000000e+00> : vector<8xf32>
    %192 = vector.multi_reduction <add>, %191, %cst_73 [1] : vector<8x48xf32> to vector<8xf32>
    %193 = vector.shape_cast %192 : vector<8xf32> to vector<8x1xf32>
    %cst_74 = arith.constant 4.800000e+01 : f32
    %194 = vector.broadcast %cst_74 : f32 to vector<8x1xf32>
    %195 = arith.divf %193, %194 : vector<8x1xf32>
    %196 = arith.mulf %191, %191 : vector<8x48xf32>
    %cst_75 = arith.constant dense<0.000000e+00> : vector<8xf32>
    %197 = vector.multi_reduction <add>, %196, %cst_75 [1] : vector<8x48xf32> to vector<8xf32>
    %198 = vector.shape_cast %197 : vector<8xf32> to vector<8x1xf32>
    %cst_76 = arith.constant 4.800000e+01 : f32
    %199 = vector.broadcast %cst_76 : f32 to vector<8x1xf32>
    %200 = arith.divf %198, %199 : vector<8x1xf32>
    %201 = arith.mulf %195, %195 : vector<8x1xf32>
    %202 = arith.subf %200, %201 : vector<8x1xf32>
    %203 = vector.broadcast %195 : vector<8x1xf32> to vector<8x48xf32>
    %204 = arith.subf %191, %203 : vector<8x48xf32>
    %cst_77 = arith.constant 9.99999974E-6 : f32
    %205 = vector.broadcast %cst_77 : f32 to vector<8x1xf32>
    %206 = arith.addf %202, %205 : vector<8x1xf32>
    %207 = math.rsqrt %206 : vector<8x1xf32>
    %208 = vector.broadcast %207 : vector<8x1xf32> to vector<8x48xf32>
    %209 = arith.mulf %204, %208 : vector<8x48xf32>
    %210 = vector.broadcast %7 : vector<1x48xf32> to vector<8x48xf32>
    %211 = arith.mulf %209, %210 : vector<8x48xf32>
    %212 = vector.broadcast %8 : vector<1x48xf32> to vector<8x48xf32>
    %213 = arith.addf %211, %212 : vector<8x48xf32>
    %c0_78 = arith.constant 0 : index
    %c0_79 = arith.constant 0 : index
    %214 = vector.load %arg15[%c0_78, %c0_79] : memref<48x32xf32, #tpu.memory_space<vmem>>, vector<48x32xf32>
    %cst_80 = arith.constant dense<0.000000e+00> : vector<8x32xf32>
    %215 = tpu.matmul %213, %214, %cst_80 {dimension_numbers = #tpu.dot_dimension_numbers<[1], [0], [0], [1], [0, 0, 1, 1], [], []>} : vector<8x48xf32>, vector<48x32xf32>, vector<8x32xf32> -> vector<8x32xf32>
    %c0_81 = arith.constant 0 : index
    %c0_82 = arith.constant 0 : index
    %216 = vector.load %arg16[%c0_81, %c0_82] : memref<1x32xf32, #tpu.memory_space<vmem>>, vector<1x32xf32>
    %217 = vector.broadcast %216 : vector<1x32xf32> to vector<8x32xf32>
    %218 = arith.addf %215, %217 : vector<8x32xf32>
    %cst_83 = arith.constant dense<0xFF800000> : vector<8xf32>
    %219 = vector.multi_reduction <maximumf>, %218, %cst_83 [1] : vector<8x32xf32> to vector<8xf32>
    %220 = vector.shape_cast %219 : vector<8xf32> to vector<8x1xf32>
    %221 = vector.broadcast %220 : vector<8x1xf32> to vector<8x32xf32>
    %222 = arith.subf %218, %221 : vector<8x32xf32>
    %223 = math.exp %222 : vector<8x32xf32>
    %cst_84 = arith.constant dense<0.000000e+00> : vector<8xf32>
    %224 = vector.multi_reduction <add>, %223, %cst_84 [1] : vector<8x32xf32> to vector<8xf32>
    %225 = vector.shape_cast %224 : vector<8xf32> to vector<8x1xf32>
    %226 = math.log %225 : vector<8x1xf32>
    %227 = vector.broadcast %226 : vector<8x1xf32> to vector<8x32xf32>
    %228 = arith.subf %222, %227 : vector<8x32xf32>
    %c0_85 = arith.constant 0 : index
    %c0_86 = arith.constant 0 : index
    %c0_87 = arith.constant 0 : index
    %229 = vector.load %arg17[%c0_85, %c0_86, %c0_87] : memref<1x8x32xf32, #tpu.memory_space<vmem>>, vector<1x8x32xf32>
    %230 = vector.shape_cast %229 : vector<1x8x32xf32> to vector<8x32xf32>
    %231 = vector.shape_cast %228 : vector<8x32xf32> to vector<1x8x32xf32>
    tpu.vector_store %arg17[%c0_85, %c0_86, %c0_87], %231 {strides = array<i32>} : memref<1x8x32xf32, #tpu.memory_space<vmem>>, vector<1x8x32xf32>,
    return
  }
  func.func @transform_0(%arg0: i32) -> (i32, i32, i32) {
    %c0_i32 = arith.constant 0 : i32
    %c0_i32_0 = arith.constant 0 : i32
    %c0_i32_1 = arith.constant 0 : i32
    return %arg0, %c0_i32, %c0_i32_0 : i32, i32, i32
  }
  func.func @transform_1(%arg0: i32) -> (i32, i32, i32) {
    %c0_i32 = arith.constant 0 : i32
    %c0_i32_0 = arith.constant 0 : i32
    %c0_i32_1 = arith.constant 0 : i32
    return %arg0, %c0_i32, %c0_i32_0 : i32, i32, i32
  }
  func.func @transform_2(%arg0: i32) -> (i32, i32) {
    %c0_i32 = arith.constant 0 : i32
    %c0_i32_0 = arith.constant 0 : i32
    %c0_i32_1 = arith.constant 0 : i32
    return %c0_i32, %c0_i32_0 : i32, i32
  }
  func.func @transform_3(%arg0: i32) -> (i32, i32) {
    %c0_i32 = arith.constant 0 : i32
    %c0_i32_0 = arith.constant 0 : i32
    %c0_i32_1 = arith.constant 0 : i32
    return %c0_i32, %c0_i32_0 : i32, i32
  }
  func.func @transform_4(%arg0: i32) -> (i32, i32) {
    %c0_i32 = arith.constant 0 : i32
    %c0_i32_0 = arith.constant 0 : i32
    %c0_i32_1 = arith.constant 0 : i32
    return %c0_i32, %c0_i32_0 : i32, i32
  }
  func.func @transform_5(%arg0: i32) -> (i32, i32) {
    %c0_i32 = arith.constant 0 : i32
    %c0_i32_0 = arith.constant 0 : i32
    %c0_i32_1 = arith.constant 0 : i32
    return %c0_i32, %c0_i32_0 : i32, i32
  }
  func.func @transform_6(%arg0: i32) -> (i32, i32) {
    %c0_i32 = arith.constant 0 : i32
    %c0_i32_0 = arith.constant 0 : i32
    %c0_i32_1 = arith.constant 0 : i32
    return %c0_i32, %c0_i32_0 : i32, i32
  }
  func.func @transform_7(%arg0: i32) -> (i32, i32) {
    %c0_i32 = arith.constant 0 : i32
    %c0_i32_0 = arith.constant 0 : i32
    %c0_i32_1 = arith.constant 0 : i32
    return %c0_i32, %c0_i32_0 : i32, i32
  }
  func.func @transform_8(%arg0: i32) -> (i32, i32) {
    %c0_i32 = arith.constant 0 : i32
    %c0_i32_0 = arith.constant 0 : i32
    %c0_i32_1 = arith.constant 0 : i32
    return %c0_i32, %c0_i32_0 : i32, i32
  }
  func.func @transform_9(%arg0: i32) -> (i32, i32) {
    %c0_i32 = arith.constant 0 : i32
    %c0_i32_0 = arith.constant 0 : i32
    %c0_i32_1 = arith.constant 0 : i32
    return %c0_i32, %c0_i32_0 : i32, i32
  }
  func.func @transform_10(%arg0: i32) -> (i32, i32) {
    %c0_i32 = arith.constant 0 : i32
    %c0_i32_0 = arith.constant 0 : i32
    %c0_i32_1 = arith.constant 0 : i32
    return %c0_i32, %c0_i32_0 : i32, i32
  }
  func.func @transform_11(%arg0: i32) -> (i32, i32) {
    %c0_i32 = arith.constant 0 : i32
    %c0_i32_0 = arith.constant 0 : i32
    %c0_i32_1 = arith.constant 0 : i32
    return %c0_i32, %c0_i32_0 : i32, i32
  }
  func.func @transform_12(%arg0: i32) -> (i32, i32) {
    %c0_i32 = arith.constant 0 : i32
    %c0_i32_0 = arith.constant 0 : i32
    %c0_i32_1 = arith.constant 0 : i32
    return %c0_i32, %c0_i32_0 : i32, i32
  }
  func.func @transform_13(%arg0: i32) -> (i32, i32) {
    %c0_i32 = arith.constant 0 : i32
    %c0_i32_0 = arith.constant 0 : i32
    %c0_i32_1 = arith.constant 0 : i32
    return %c0_i32, %c0_i32_0 : i32, i32
  }
  func.func @transform_14(%arg0: i32) -> (i32, i32) {
    %c0_i32 = arith.constant 0 : i32
    %c0_i32_0 = arith.constant 0 : i32
    %c0_i32_1 = arith.constant 0 : i32
    return %c0_i32, %c0_i32_0 : i32, i32
  }
  func.func @transform_15(%arg0: i32) -> (i32, i32) {
    %c0_i32 = arith.constant 0 : i32
    %c0_i32_0 = arith.constant 0 : i32
    %c0_i32_1 = arith.constant 0 : i32
    return %c0_i32, %c0_i32_0 : i32, i32
  }
  func.func @transform_16(%arg0: i32) -> (i32, i32, i32) {
    %c0_i32 = arith.constant 0 : i32
    %c0_i32_0 = arith.constant 0 : i32
    %c0_i32_1 = arith.constant 0 : i32
    return %arg0, %c0_i32, %c0_i32_0 : i32, i32, i32
  }
}

</mosaic_0001>

<llo_original>
// kernel: tpu_custom_call.1
$region0: #{tpu_custom_call.1}
  #allocation0 [shape = 'u32[]', space=smem, size = 0x4, offset = 0x4, fixed_abs, tag = 'smem constant byte address 0x4 - core index']
  #allocation1 [shape = 'u32[144,128]{1,0:T(1,128)}', space=vmem, size = 0x12000, scoped, tag = 'internal scratch']
  %s0 = inlined_call_operand.vmem [shape: f32[2,8,48], index: 0, kind: input, shape index: {}]
  %s1 = inlined_call_operand.vmem [shape: f32[2,8,48], index: 1, kind: input, shape index: {}]
  %s2 = inlined_call_operand.vmem [shape: f32[48,144], index: 2, kind: input, shape index: {}]
  %s3 = inlined_call_operand.vmem [shape: f32[1,144], index: 3, kind: input, shape index: {}]
  %s4 = inlined_call_operand.vmem [shape: f32[48,48], index: 4, kind: input, shape index: {}]
  %s5 = inlined_call_operand.vmem [shape: f32[1,48], index: 5, kind: input, shape index: {}]
  %s6 = inlined_call_operand.vmem [shape: f32[48,96], index: 6, kind: input, shape index: {}]
  %s7 = inlined_call_operand.vmem [shape: f32[1,96], index: 7, kind: input, shape index: {}]
  %s8 = inlined_call_operand.vmem [shape: f32[1,48], index: 8, kind: input, shape index: {}]
  %s9 = inlined_call_operand.vmem [shape: f32[1,48], index: 9, kind: input, shape index: {}]
  %s10 = inlined_call_operand.vmem [shape: f32[48,1024], index: 10, kind: input, shape index: {}]
  %s11 = inlined_call_operand.vmem [shape: f32[1,1024], index: 11, kind: input, shape index: {}]
  %s12 = inlined_call_operand.vmem [shape: f32[1024,48], index: 12, kind: input, shape index: {}]
  %s13 = inlined_call_operand.vmem [shape: f32[1,48], index: 13, kind: input, shape index: {}]
  %s14 = inlined_call_operand.vmem [shape: f32[48,32], index: 14, kind: input, shape index: {}]
  %s15 = inlined_call_operand.vmem [shape: f32[1,32], index: 15, kind: input, shape index: {}]
  %s16 = inlined_call_operand.hbm [shape: f32[2,8,32], index: 16, kind: output, shape index: {}]
  %s17 = sld [smem:[#allocation0]]
  $region97: #{tpu_custom_call.1} parent=0
    _
  %s19 = ssub.s32 1, %s17
  %s20 = scalar_select 0, %s19, %s17
  $region1: #{tpu_custom_call.1} parent=0
    #allocation2 [shape = 'u8[8192]{0}', space=vmem, size = 0x2000, scoped, tag = 'output window, operand 0']
    #allocation3 [shape = 's32[2]{0}', space=sflag, size = 0x8, scoped, tag = 'scoped memory for tpu_custom_call.1']
    %21 = vsyncpa [#allocation3], 0
    %s22 = scalar_lea.sflag [#allocation3], 1
    %23 = vsyncpa %s22, 0
    loop: start=0, step=1, limit=4
    $region2: #{tpu_custom_call.1} parent=1 // loop_pre_header
      _
    $region3: #{tpu_custom_call.1} parent=1 // loop_header
      %s25 = sphi 0, %s29
      %p26 = scmp.ge.s32.totalorder %s25, 4
      %s35 = sphi 0, %s37
      %s38 = sphi 0, %s35
      %s39 = sphi 0, %s38
      %s55 = sphi 0, %s39
      %s61 = sphi 0, %s63
      %s64 = sphi 0, %s61
      %s65 = sphi 0, %s64
      %s81 = sphi 0, %s65
      %s85 = sphi 0, %s85
      %s87 = sphi 0, %s85
      %s88 = sphi 0, %s87
      %s102 = sphi 0, %s88
      %s106 = sphi 0, %s106
      %s108 = sphi 0, %s106
      %s109 = sphi 0, %s108
      %s123 = sphi 0, %s109
      %s127 = sphi 0, %s127
      %s129 = sphi 0, %s127
      %s130 = sphi 0, %s129
      %s144 = sphi 0, %s130
      %s148 = sphi 0, %s148
      %s150 = sphi 0, %s148
      %s151 = sphi 0, %s150
      %s165 = sphi 0, %s151
      %s169 = sphi 0, %s169
      %s171 = sphi 0, %s169
      %s172 = sphi 0, %s171
      %s186 = sphi 0, %s172
      %s190 = sphi 0, %s190
      %s192 = sphi 0, %s190
      %s193 = sphi 0, %s192
      %s207 = sphi 0, %s193
      %s211 = sphi 0, %s211
      %s213 = sphi 0, %s211
      %s214 = sphi 0, %s213
      %s228 = sphi 0, %s214
      %s232 = sphi 0, %s232
      %s234 = sphi 0, %s232
      %s235 = sphi 0, %s234
      %s249 = sphi 0, %s235
      %s253 = sphi 0, %s253
      %s255 = sphi 0, %s253
      %s256 = sphi 0, %s255
      %s270 = sphi 0, %s256
      %s274 = sphi 0, %s274
      %s276 = sphi 0, %s274
      %s277 = sphi 0, %s276
      %s291 = sphi 0, %s277
      %s295 = sphi 0, %s295
      %s297 = sphi 0, %s295
      %s298 = sphi 0, %s297
      %s312 = sphi 0, %s298
      %s316 = sphi 0, %s316
      %s318 = sphi 0, %s316
      %s319 = sphi 0, %s318
      %s333 = sphi 0, %s319
      %s337 = sphi 0, %s337
      %s339 = sphi 0, %s337
      %s340 = sphi 0, %s339
      %s354 = sphi 0, %s340
      %s358 = sphi 0, %s358
      %s360 = sphi 0, %s358
      %s361 = sphi 0, %s360
      %s375 = sphi 0, %s361
      %s381 = sphi 0, %s383
      %s384 = sphi 0, %s381
      %s385 = sphi 0, %s384
      %s401 = sphi 0, %s385
    $region4: #{tpu_custom_call.1} parent=1 // loop_header_branch
      %28 = sbr.rel (%p26) target = $region8
    $region5: #{tpu_custom_call.1} parent=1 // loop_body
      %s30 = ssub.s32 %s25, 1
      %s31 = ssub.s32 %s25, 2
      %s32 = sadd.s32 %s25, 1
      %s33 = ssub.s32 %s25, %s32
      %p34 = scmp.eq.s32.totalorder %s33, 0
      %s36 = sadd.s32 %s35, 1
      %s37 = scalar_select %p34, %s35, %s36
      %p40 = pneg %p34
      %p41 = scmp.eq.s32.totalorder %s25, 1
      %p42 = por %p40, %p41
      %p43 = scmp.ne.s32.totalorder %s35, %s38
      %p44 = scmp.eq.s32.totalorder %s25, 0
      %p45 = por %p43, %p44
      %p46 = scmp.ne.s32.totalorder %s35, %s38
      %p47 = scmp.eq.s32.totalorder %s30, 1
      %p48 = por %p46, %p47
      %p49 = scmp.ne.s32.totalorder %s38, %s39
      %p50 = scmp.eq.s32.totalorder %s30, 0
      %p51 = por %p49, %p50
      %p52 = scmp.ne.s32.totalorder %s38, %s39
      %p53 = scmp.eq.s32.totalorder %s31, 1
      %p54 = por %p52, %p53
      %p56 = scmp.ne.s32.totalorder %s39, %s55
      %p57 = scmp.eq.s32.totalorder %s31, 0
      %p58 = por %p56, %p57
      %s59 = ssub.s32 %s25, %s32
      %p60 = scmp.eq.s32.totalorder %s59, 0
      %s62 = sadd.s32 %s61, 1
      %s63 = scalar_select %p60, %s61, %s62
      %p66 = pneg %p60
      %p67 = scmp.eq.s32.totalorder %s25, 1
      %p68 = por %p66, %p67
      %p69 = scmp.ne.s32.totalorder %s61, %s64
      %p70 = scmp.eq.s32.totalorder %s25, 0
      %p71 = por %p69, %p70
      %p72 = scmp.ne.s32.totalorder %s61, %s64
      %p73 = scmp.eq.s32.totalorder %s30, 1
      %p74 = por %p72, %p73
      %p75 = scmp.ne.s32.totalorder %s64, %s65
      %p76 = scmp.eq.s32.totalorder %s30, 0
      %p77 = por %p75, %p76
      %p78 = scmp.ne.s32.totalorder %s64, %s65
      %p79 = scmp.eq.s32.totalorder %s31, 1
      %p80 = por %p78, %p79
      %p82 = scmp.ne.s32.totalorder %s65, %s81
      %p83 = scmp.eq.s32.totalorder %s31, 0
      %p84 = por %p82, %p83
      %s86 = sadd.s32 %s85, 1
      %p89 = scmp.eq.s32.totalorder %s25, 1
      %p90 = scmp.ne.s32.totalorder %s85, %s87
      %p91 = scmp.eq.s32.totalorder %s25, 0
      %p92 = por %p90, %p91
      %p93 = scmp.ne.s32.totalorder %s85, %s87
      %p94 = scmp.eq.s32.totalorder %s30, 1
      %p95 = por %p93, %p94
      %p96 = scmp.ne.s32.totalorder %s87, %s88
      %p97 = scmp.eq.s32.totalorder %s30, 0
      %p98 = por %p96, %p97
      %p99 = scmp.ne.s32.totalorder %s87, %s88
      %p100 = scmp.eq.s32.totalorder %s31, 1
      %p101 = por %p99, %p100
      %p103 = scmp.ne.s32.totalorder %s88, %s102
      %p104 = scmp.eq.s32.totalorder %s31, 0
      %p105 = por %p103, %p104
      %s107 = sadd.s32 %s106, 1
      %p110 = scmp.eq.s32.totalorder %s25, 1
      %p111 = scmp.ne.s32.totalorder %s106, %s108
      %p112 = scmp.eq.s32.totalorder %s25, 0
      %p113 = por %p111, %p112
      %p114 = scmp.ne.s32.totalorder %s106, %s108
      %p115 = scmp.eq.s32.totalorder %s30, 1
      %p116 = por %p114, %p115
      %p117 = scmp.ne.s32.totalorder %s108, %s109
      %p118 = scmp.eq.s32.totalorder %s30, 0
      %p119 = por %p117, %p118
      %p120 = scmp.ne.s32.totalorder %s108, %s109
      %p121 = scmp.eq.s32.totalorder %s31, 1
      %p122 = por %p120, %p121
      %p124 = scmp.ne.s32.totalorder %s109, %s123
      %p125 = scmp.eq.s32.totalorder %s31, 0
      %p126 = por %p124, %p125
      %s128 = sadd.s32 %s127, 1
      %p131 = scmp.eq.s32.totalorder %s25, 1
      %p132 = scmp.ne.s32.totalorder %s127, %s129
      %p133 = scmp.eq.s32.totalorder %s25, 0
      %p134 = por %p132, %p133
      %p135 = scmp.ne.s32.totalorder %s127, %s129
      %p136 = scmp.eq.s32.totalorder %s30, 1
      %p137 = por %p135, %p136
      %p138 = scmp.ne.s32.totalorder %s129, %s130
      %p139 = scmp.eq.s32.totalorder %s30, 0
      %p140 = por %p138, %p139
      %p141 = scmp.ne.s32.totalorder %s129, %s130
      %p142 = scmp.eq.s32.totalorder %s31, 1
      %p143 = por %p141, %p142
      %p145 = scmp.ne.s32.totalorder %s130, %s144
      %p146 = scmp.eq.s32.totalorder %s31, 0
      %p147 = por %p145, %p146
      %s149 = sadd.s32 %s148, 1
      %p152 = scmp.eq.s32.totalorder %s25, 1
      %p153 = scmp.ne.s32.totalorder %s148, %s150
      %p154 = scmp.eq.s32.totalorder %s25, 0
      %p155 = por %p153, %p154
      %p156 = scmp.ne.s32.totalorder %s148, %s150
      %p157 = scmp.eq.s32.totalorder %s30, 1
      %p158 = por %p156, %p157
      %p159 = scmp.ne.s32.totalorder %s150, %s151
      %p160 = scmp.eq.s32.totalorder %s30, 0
      %p161 = por %p159, %p160
      %p162 = scmp.ne.s32.totalorder %s150, %s151
      %p163 = scmp.eq.s32.totalorder %s31, 1
      %p164 = por %p162, %p163
      %p166 = scmp.ne.s32.totalorder %s151, %s165
      %p167 = scmp.eq.s32.totalorder %s31, 0
      %p168 = por %p166, %p167
      %s170 = sadd.s32 %s169, 1
      %p173 = scmp.eq.s32.totalorder %s25, 1
      %p174 = scmp.ne.s32.totalorder %s169, %s171
      %p175 = scmp.eq.s32.totalorder %s25, 0
      %p176 = por %p174, %p175
      %p177 = scmp.ne.s32.totalorder %s169, %s171
      %p178 = scmp.eq.s32.totalorder %s30, 1
      %p179 = por %p177, %p178
      %p180 = scmp.ne.s32.totalorder %s171, %s172
      %p181 = scmp.eq.s32.totalorder %s30, 0
      %p182 = por %p180, %p181
      %p183 = scmp.ne.s32.totalorder %s171, %s172
      %p184 = scmp.eq.s32.totalorder %s31, 1
      %p185 = por %p183, %p184
      %p187 = scmp.ne.s32.totalorder %s172, %s186
      %p188 = scmp.eq.s32.totalorder %s31, 0
      %p189 = por %p187, %p188
      %s191 = sadd.s32 %s190, 1
      %p194 = scmp.eq.s32.totalorder %s25, 1
      %p195 = scmp.ne.s32.totalorder %s190, %s192
      %p196 = scmp.eq.s32.totalorder %s25, 0
      %p197 = por %p195, %p196
      %p198 = scmp.ne.s32.totalorder %s190, %s192
      %p199 = scmp.eq.s32.totalorder %s30, 1
      %p200 = por %p198, %p199
      %p201 = scmp.ne.s32.totalorder %s192, %s193
      %p202 = scmp.eq.s32.totalorder %s30, 0
      %p203 = por %p201, %p202
      %p204 = scmp.ne.s32.totalorder %s192, %s193
      %p205 = scmp.eq.s32.totalorder %s31, 1
      %p206 = por %p204, %p205
      %p208 = scmp.ne.s32.totalorder %s193, %s207
      %p209 = scmp.eq.s32.totalorder %s31, 0
      %p210 = por %p208, %p209
      %s212 = sadd.s32 %s211, 1
      %p215 = scmp.eq.s32.totalorder %s25, 1
      %p216 = scmp.ne.s32.totalorder %s211, %s213
      %p217 = scmp.eq.s32.totalorder %s25, 0
      %p218 = por %p216, %p217
      %p219 = scmp.ne.s32.totalorder %s211, %s213
      %p220 = scmp.eq.s32.totalorder %s30, 1
      %p221 = por %p219, %p220
      %p222 = scmp.ne.s32.totalorder %s213, %s214
      %p223 = scmp.eq.s32.totalorder %s30, 0
      %p224 = por %p222, %p223
      %p225 = scmp.ne.s32.totalorder %s213, %s214
      %p226 = scmp.eq.s32.totalorder %s31, 1
      %p227 = por %p225, %p226
      %p229 = scmp.ne.s32.totalorder %s214, %s228
      %p230 = scmp.eq.s32.totalorder %s31, 0
      %p231 = por %p229, %p230
      %s233 = sadd.s32 %s232, 1
      %p236 = scmp.eq.s32.totalorder %s25, 1
      %p237 = scmp.ne.s32.totalorder %s232, %s234
      %p238 = scmp.eq.s32.totalorder %s25, 0
      %p239 = por %p237, %p238
      %p240 = scmp.ne.s32.totalorder %s232, %s234
      %p241 = scmp.eq.s32.totalorder %s30, 1
      %p242 = por %p240, %p241
      %p243 = scmp.ne.s32.totalorder %s234, %s235
      %p244 = scmp.eq.s32.totalorder %s30, 0
      %p245 = por %p243, %p244
      %p246 = scmp.ne.s32.totalorder %s234, %s235
      %p247 = scmp.eq.s32.totalorder %s31, 1
      %p248 = por %p246, %p247
      %p250 = scmp.ne.s32.totalorder %s235, %s249
      %p251 = scmp.eq.s32.totalorder %s31, 0
      %p252 = por %p250, %p251
      %s254 = sadd.s32 %s253, 1
      %p257 = scmp.eq.s32.totalorder %s25, 1
      %p258 = scmp.ne.s32.totalorder %s253, %s255
      %p259 = scmp.eq.s32.totalorder %s25, 0
      %p260 = por %p258, %p259
      %p261 = scmp.ne.s32.totalorder %s253, %s255
      %p262 = scmp.eq.s32.totalorder %s30, 1
      %p263 = por %p261, %p262
      %p264 = scmp.ne.s32.totalorder %s255, %s256
      %p265 = scmp.eq.s32.totalorder %s30, 0
      %p266 = por %p264, %p265
      %p267 = scmp.ne.s32.totalorder %s255, %s256
      %p268 = scmp.eq.s32.totalorder %s31, 1
      %p269 = por %p267, %p268
      %p271 = scmp.ne.s32.totalorder %s256, %s270
      %p272 = scmp.eq.s32.totalorder %s31, 0
      %p273 = por %p271, %p272
      %s275 = sadd.s32 %s274, 1
      %p278 = scmp.eq.s32.totalorder %s25, 1
      %p279 = scmp.ne.s32.totalorder %s274, %s276
      %p280 = scmp.eq.s32.totalorder %s25, 0
      %p281 = por %p279, %p280
      %p282 = scmp.ne.s32.totalorder %s274, %s276
      %p283 = scmp.eq.s32.totalorder %s30, 1
      %p284 = por %p282, %p283
      %p285 = scmp.ne.s32.totalorder %s276, %s277
      %p286 = scmp.eq.s32.totalorder %s30, 0
      %p287 = por %p285, %p286
      %p288 = scmp.ne.s32.totalorder %s276, %s277
      %p289 = scmp.eq.s32.totalorder %s31, 1
      %p290 = por %p288, %p289
      %p292 = scmp.ne.s32.totalorder %s277, %s291
      %p293 = scmp.eq.s32.totalorder %s31, 0
      %p294 = por %p292, %p293
      %s296 = sadd.s32 %s295, 1
      %p299 = scmp.eq.s32.totalorder %s25, 1
      %p300 = scmp.ne.s32.totalorder %s295, %s297
      %p301 = scmp.eq.s32.totalorder %s25, 0
      %p302 = por %p300, %p301
      %p303 = scmp.ne.s32.totalorder %s295, %s297
      %p304 = scmp.eq.s32.totalorder %s30, 1
      %p305 = por %p303, %p304
      %p306 = scmp.ne.s32.totalorder %s297, %s298
      %p307 = scmp.eq.s32.totalorder %s30, 0
      %p308 = por %p306, %p307
      %p309 = scmp.ne.s32.totalorder %s297, %s298
      %p310 = scmp.eq.s32.totalorder %s31, 1
      %p311 = por %p309, %p310
      %p313 = scmp.ne.s32.totalorder %s298, %s312
      %p314 = scmp.eq.s32.totalorder %s31, 0
      %p315 = por %p313, %p314
      %s317 = sadd.s32 %s316, 1
      %p320 = scmp.eq.s32.totalorder %s25, 1
      %p321 = scmp.ne.s32.totalorder %s316, %s318
      %p322 = scmp.eq.s32.totalorder %s25, 0
      %p323 = por %p321, %p322
      %p324 = scmp.ne.s32.totalorder %s316, %s318
      %p325 = scmp.eq.s32.totalorder %s30, 1
      %p326 = por %p324, %p325
      %p327 = scmp.ne.s32.totalorder %s318, %s319
      %p328 = scmp.eq.s32.totalorder %s30, 0
      %p329 = por %p327, %p328
      %p330 = scmp.ne.s32.totalorder %s318, %s319
      %p331 = scmp.eq.s32.totalorder %s31, 1
      %p332 = por %p330, %p331
      %p334 = scmp.ne.s32.totalorder %s319, %s333
      %p335 = scmp.eq.s32.totalorder %s31, 0
      %p336 = por %p334, %p335
      %s338 = sadd.s32 %s337, 1
      %p341 = scmp.eq.s32.totalorder %s25, 1
      %p342 = scmp.ne.s32.totalorder %s337, %s339
      %p343 = scmp.eq.s32.totalorder %s25, 0
      %p344 = por %p342, %p343
      %p345 = scmp.ne.s32.totalorder %s337, %s339
      %p346 = scmp.eq.s32.totalorder %s30, 1
      %p347 = por %p345, %p346
      %p348 = scmp.ne.s32.totalorder %s339, %s340
      %p349 = scmp.eq.s32.totalorder %s30, 0
      %p350 = por %p348, %p349
      %p351 = scmp.ne.s32.totalorder %s339, %s340
      %p352 = scmp.eq.s32.totalorder %s31, 1
      %p353 = por %p351, %p352
      %p355 = scmp.ne.s32.totalorder %s340, %s354
      %p356 = scmp.eq.s32.totalorder %s31, 0
      %p357 = por %p355, %p356
      %s359 = sadd.s32 %s358, 1
      %p362 = scmp.eq.s32.totalorder %s25, 1
      %p363 = scmp.ne.s32.totalorder %s358, %s360
      %p364 = scmp.eq.s32.totalorder %s25, 0
      %p365 = por %p363, %p364
      %p366 = scmp.ne.s32.totalorder %s358, %s360
      %p367 = scmp.eq.s32.totalorder %s30, 1
      %p368 = por %p366, %p367
      %p369 = scmp.ne.s32.totalorder %s360, %s361
      %p370 = scmp.eq.s32.totalorder %s30, 0
      %p371 = por %p369, %p370
      %p372 = scmp.ne.s32.totalorder %s360, %s361
      %p373 = scmp.eq.s32.totalorder %s31, 1
      %p374 = por %p372, %p373
      %p376 = scmp.ne.s32.totalorder %s361, %s375
      %p377 = scmp.eq.s32.totalorder %s31, 0
      %p378 = por %p376, %p377
      %s379 = ssub.s32 %s25, %s32
      %p380 = scmp.eq.s32.totalorder %s379, 0
      %s382 = sadd.s32 %s381, 1
      %s383 = scalar_select %p380, %s381, %s382
      %p386 = pneg %p380
      %p387 = scmp.eq.s32.totalorder %s25, 1
      %p388 = por %p386, %p387
      %p389 = scmp.ne.s32.totalorder %s381, %s384
      %p390 = scmp.eq.s32.totalorder %s25, 0
      %p391 = por %p389, %p390
      %p392 = scmp.ne.s32.totalorder %s381, %s384
      %p393 = scmp.eq.s32.totalorder %s30, 1
      %p394 = por %p392, %p393
      %p395 = scmp.ne.s32.totalorder %s384, %s385
      %p396 = scmp.eq.s32.totalorder %s30, 0
      %p397 = por %p395, %p396
      %p398 = scmp.ne.s32.totalorder %s384, %s385
      %p399 = scmp.eq.s32.totalorder %s31, 1
      %p400 = por %p398, %p399
      %p402 = scmp.ne.s32.totalorder %s385, %s401
      %p403 = scmp.eq.s32.totalorder %s31, 0
      %p404 = por %p402, %p403
      %p405 = scmp.le.s32.totalorder 1, %s25
      %p406 = scmp.lt.s32.totalorder %s25, 3
      %p407 = pnand %p405, %p406
      %p408 = pneg %p407
      // Predicated region
      $region9: #{tpu_custom_call.1} parent=5 // pred_check
        _
      $region10: #{tpu_custom_call.1} parent=5 // pred_check_branch
        %410 = sbr.rel (%p407) target = $region12
      $region11: #{tpu_custom_call.1} parent=5 // pred_region
        %s411 = ssub.s32 %s25, 1
        // Predicated region
        $region13: #{tpu_custom_call.1} parent=11 // pred_check
          %p412 = pneg %p98
        $region14: #{tpu_custom_call.1} parent=11 // pred_check_branch
          %414 = sbr.rel (%p412) target = $region16
        $region15: #{tpu_custom_call.1} parent=11 // pred_region
          _
        $region16: #{tpu_custom_call.1} parent=11 // pred_fallthru
          _
        // Predicated region
        $region17: #{tpu_custom_call.1} parent=11 // pred_check
          %p415 = pneg %p119
        $region18: #{tpu_custom_call.1} parent=11 // pred_check_branch
          %417 = sbr.rel (%p415) target = $region20
        $region19: #{tpu_custom_call.1} parent=11 // pred_region
          _
        $region20: #{tpu_custom_call.1} parent=11 // pred_fallthru
          _
        // Predicated region
        $region21: #{tpu_custom_call.1} parent=11 // pred_check
          %p418 = pneg %p140
        $region22: #{tpu_custom_call.1} parent=11 // pred_check_branch
          %420 = sbr.rel (%p418) target = $region24
        $region23: #{tpu_custom_call.1} parent=11 // pred_region
          _
        $region24: #{tpu_custom_call.1} parent=11 // pred_fallthru
          _
        // Predicated region
        $region25: #{tpu_custom_call.1} parent=11 // pred_check
          %p421 = pneg %p161
        $region26: #{tpu_custom_call.1} parent=11 // pred_check_branch
          %423 = sbr.rel (%p421) target = $region28
        $region27: #{tpu_custom_call.1} parent=11 // pred_region
          _
        $region28: #{tpu_custom_call.1} parent=11 // pred_fallthru
          _
        // Predicated region
        $region29: #{tpu_custom_call.1} parent=11 // pred_check
          %p424 = pneg %p182
        $region30: #{tpu_custom_call.1} parent=11 // pred_check_branch
          %426 = sbr.rel (%p424) target = $region32
        $region31: #{tpu_custom_call.1} parent=11 // pred_region
          _
        $region32: #{tpu_custom_call.1} parent=11 // pred_fallthru
          _
        // Predicated region
        $region33: #{tpu_custom_call.1} parent=11 // pred_check
          %p427 = pneg %p203
        $region34: #{tpu_custom_call.1} parent=11 // pred_check_branch
          %429 = sbr.rel (%p427) target = $region36
        $region35: #{tpu_custom_call.1} parent=11 // pred_region
          _
        $region36: #{tpu_custom_call.1} parent=11 // pred_fallthru
          _
        // Predicated region
        $region37: #{tpu_custom_call.1} parent=11 // pred_check
          %p430 = pneg %p224
        $region38: #{tpu_custom_call.1} parent=11 // pred_check_branch
          %432 = sbr.rel (%p430) target = $region40
        $region39: #{tpu_custom_call.1} parent=11 // pred_region
          _
        $region40: #{tpu_custom_call.1} parent=11 // pred_fallthru
          _
        // Predicated region
        $region41: #{tpu_custom_call.1} parent=11 // pred_check
          %p433 = pneg %p245
        $region42: #{tpu_custom_call.1} parent=11 // pred_check_branch
          %435 = sbr.rel (%p433) target = $region44
        $region43: #{tpu_custom_call.1} parent=11 // pred_region
          _
        $region44: #{tpu_custom_call.1} parent=11 // pred_fallthru
          _
        // Predicated region
        $region45: #{tpu_custom_call.1} parent=11 // pred_check
          %p436 = pneg %p266
        $region46: #{tpu_custom_call.1} parent=11 // pred_check_branch
          %438 = sbr.rel (%p436) target = $region48
        $region47: #{tpu_custom_call.1} parent=11 // pred_region
          _
        $region48: #{tpu_custom_call.1} parent=11 // pred_fallthru
          _
        // Predicated region
        $region49: #{tpu_custom_call.1} parent=11 // pred_check
          %p439 = pneg %p287
        $region50: #{tpu_custom_call.1} parent=11 // pred_check_branch
          %441 = sbr.rel (%p439) target = $region52
        $region51: #{tpu_custom_call.1} parent=11 // pred_region
          _
        $region52: #{tpu_custom_call.1} parent=11 // pred_fallthru
          _
        // Predicated region
        $region53: #{tpu_custom_call.1} parent=11 // pred_check
          %p442 = pneg %p308
        $region54: #{tpu_custom_call.1} parent=11 // pred_check_branch
          %444 = sbr.rel (%p442) target = $region56
        $region55: #{tpu_custom_call.1} parent=11 // pred_region
          _
        $region56: #{tpu_custom_call.1} parent=11 // pred_fallthru
          _
        // Predicated region
        $region57: #{tpu_custom_call.1} parent=11 // pred_check
          %p445 = pneg %p329
        $region58: #{tpu_custom_call.1} parent=11 // pred_check_branch
          %447 = sbr.rel (%p445) target = $region60
        $region59: #{tpu_custom_call.1} parent=11 // pred_region
          _
        $region60: #{tpu_custom_call.1} parent=11 // pred_fallthru
          _
        // Predicated region
        $region61: #{tpu_custom_call.1} parent=11 // pred_check
          %p448 = pneg %p350
        $region62: #{tpu_custom_call.1} parent=11 // pred_check_branch
          %450 = sbr.rel (%p448) target = $region64
        $region63: #{tpu_custom_call.1} parent=11 // pred_region
          _
        $region64: #{tpu_custom_call.1} parent=11 // pred_fallthru
          _
        // Predicated region
        $region65: #{tpu_custom_call.1} parent=11 // pred_check
          %p451 = pneg %p371
        $region66: #{tpu_custom_call.1} parent=11 // pred_check_branch
          %453 = sbr.rel (%p451) target = $region68
        $region67: #{tpu_custom_call.1} parent=11 // pred_region
          _
        $region68: #{tpu_custom_call.1} parent=11 // pred_fallthru
          _
      $region12: #{tpu_custom_call.1} parent=5 // pred_fallthru
        _
      %p454 = scmp.lt.s32.totalorder %s25, 2
      // Predicated region
      $region69: #{tpu_custom_call.1} parent=5 // pred_check
        %p455 = pneg %p454
      $region70: #{tpu_custom_call.1} parent=5 // pred_check_branch
        %457 = sbr.rel (%p455) target = $region72
      $region71: #{tpu_custom_call.1} parent=5 // pred_region
        // Predicated region
        $region73: #{tpu_custom_call.1} parent=71 // pred_check
          %p458 = pneg %p45
        $region74: #{tpu_custom_call.1} parent=71 // pred_check_branch
          %460 = sbr.rel (%p458) target = $region76
        $region75: #{tpu_custom_call.1} parent=71 // pred_region
          %p461 = scmp.lt.s32.totalorder %s25, 1
          %s462 = scalar_select %p461, %s25, 1
          %s463 = smul.addr %s462, 8
          %s464 = scalar_lea.vmem %s0, %s463
        $region76: #{tpu_custom_call.1} parent=71 // pred_fallthru
          _
        // Predicated region
        $region77: #{tpu_custom_call.1} parent=71 // pred_check
          %p465 = pneg %p71
        $region78: #{tpu_custom_call.1} parent=71 // pred_check_branch
          %467 = sbr.rel (%p465) target = $region80
        $region79: #{tpu_custom_call.1} parent=71 // pred_region
          %p468 = scmp.lt.s32.totalorder %s25, 1
          %s469 = scalar_select %p468, %s25, 1
          %s470 = smul.addr %s469, 8
          %s471 = scalar_lea.vmem %s1, %s470
        $region80: #{tpu_custom_call.1} parent=71 // pred_fallthru
          _
      $region72: #{tpu_custom_call.1} parent=5 // pred_fallthru
        _
      %p472 = scmp.le.s32.totalorder 1, %s25
      %p473 = scmp.lt.s32.totalorder %s25, 3
      %p474 = pnand %p472, %p473
      %p475 = pneg %p474
      // Predicated region
      $region81: #{tpu_custom_call.1} parent=5 // pred_check
        _
      $region82: #{tpu_custom_call.1} parent=5 // pred_check_branch
        %477 = sbr.rel (%p474) target = $region84
      $region83: #{tpu_custom_call.1} parent=5 // pred_region
        %s478 = ssub.s32 %s25, 1
        %p479 = scmp.lt.s32.totalorder %s30, 1
        %s480 = scalar_select %p479, %s30, 1
        %s481 = smul.addr %s480, 8
        %s482 = scalar_lea.vmem %s0, %s481
        %p483 = pneg %p51
        %p484 = pneg %p48
        %p485 = scmp.lt.s32.totalorder %s30, 1
        %s486 = scalar_select %p485, %s30, 1
        %s487 = smul.addr %s486, 8
        %s488 = scalar_lea.vmem %s1, %s487
        %p489 = pneg %p77
        %p490 = pneg %p74
        %p491 = pneg %p98
        %p492 = pneg %p95
        %p493 = pneg %p119
        %p494 = pneg %p116
        %p495 = pneg %p140
        %p496 = pneg %p137
        %p497 = pneg %p161
        %p498 = pneg %p158
        %p499 = pneg %p182
        %p500 = pneg %p179
        %p501 = pneg %p203
        %p502 = pneg %p200
        %p503 = pneg %p224
        %p504 = pneg %p221
        %p505 = pneg %p245
        %p506 = pneg %p242
        %p507 = pneg %p266
        %p508 = pneg %p263
        %p509 = pneg %p287
        %p510 = pneg %p284
        %p511 = pneg %p308
        %p512 = pneg %p305
        %p513 = pneg %p329
        %p514 = pneg %p326
        %p515 = pneg %p350
        %p516 = pneg %p347
        %p517 = pneg %p371
        %p518 = pneg %p368
        %p519 = pneg %p397
        %p520 = pneg %p394
        %s521 = sand.u32 %s384, 1
        %s522 = scalar_lea.sflag [#allocation3], %s521
        %s523 = sand.u32 %s384, 1
        %s524 = smul.addr %s523, 8
        %s525 = scalar_lea.vmem [#allocation2], %s524
        %p526 = scmp.lt.s32.totalorder %s30, 1
        %s527 = scalar_select %p526, %s30, 1
        %s528 = smul.addr %s527, 8
        %s529 = scalar_lea.vmem %s0, %s528
        %p530 = scmp.lt.s32.totalorder %s30, 1
        %s531 = scalar_select %p530, %s30, 1
        %s532 = smul.addr %s531, 8
        %s533 = scalar_lea.vmem %s1, %s532
        %v534 = vld [vmem:[%s529] sm:$0xff]
        %v535 = vld [vmem:[%s533] sm:$0xff]
        %v536 = vlaneseq
        %v537 = vshrl.u32 %v536, 7
        %v538 = vlaneseq
        %v539 = vand.u32 %v538, 127
        %vm540 = vcmp.gt.s32.totalorder %v539, %v537
        %v541 = vld [vmem:[%s8] sm:$0x1]
        %v542 = vld [vmem:[%s9] sm:$0x1]
        %v543 = vld [vmem:[%s2] sm:$0xff]
        %v544 = vld [vmem:[%s2 + $0x8] sm:$0xff]
        %v545 = vld [vmem:[%s2 + $0x10] sm:$0xff]
        %v546 = vld [vmem:[%s2 + $0x18] sm:$0xff]
        %v547 = vld [vmem:[%s2 + $0x20] sm:$0xff]
        %v548 = vld [vmem:[%s2 + $0x28] sm:$0xff]
        %v549 = vld [vmem:[%s2 + $0x30] sm:$0xff]
        %v550 = vld [vmem:[%s2 + $0x38] sm:$0xff]
        %v551 = vld [vmem:[%s2 + $0x40] sm:$0xff]
        %v552 = vld [vmem:[%s2 + $0x48] sm:$0xff]
        %v553 = vld [vmem:[%s2 + $0x50] sm:$0xff]
        %v554 = vld [vmem:[%s2 + $0x58] sm:$0xff]
        %v555 = vld [vmem:[%s3] sm:$0x3]
        %v557 = vlaneseq
        %v558 = vshrl.u32 %v557, 7
        %v559 = vsub.s32 0, %v558
        %v560 = vrot.slane %v555, %v559
        %v561 = vlaneseq
        %v562 = vshrl.u32 %v561, 7
        %v563 = vsub.s32 1, %v562
        %v564 = vrot.slane %v555, %v563
        %vm567 = vcmask 392192
        %v569 = vsel %vm567, %v534, 0
        %571 = vmatprep.subr.mxu0 0.0
        %572 = vmatpush1.msra.mxu0 0.0
        %573 = vmatprep.subr.mxu0 0.0
        %574 = vmatpush1.msra.mxu0 0.0
        %575 = vmatprep.subr.mxu0 0.0
        %576 = vmatpush1.msra.mxu0 0.0
        %577 = vmatprep.subr.mxu0 0.0
        %578 = vmatpush1.msra.mxu0 0.0
        %579 = vmatprep.subr.mxu0 0.0
        %580 = vmatpush1.msra.mxu0 0.0
        %581 = vmatprep.subr.mxu0 0.0
        %582 = vmatpush1.msra.mxu0 0.0
        %583 = vmatprep.subr.mxu0 0.0
        %584 = vmatpush1.msra.mxu0 0.0
        %585 = vmatprep.subr.mxu0 0.0
        %586 = vmatpush1.msra.mxu0 0.0
        %587 = vmatprep.subr.mxu0 0.0
        %588 = vmatpush1.msra.mxu0 0.0
        %589 = vmatprep.subr.mxu0 0.0
        %590 = vmatpush1.msra.mxu0 0.0
        %591 = vmatprep.subr.mxu0 %v554
        %592 = vmatpush1.msra.mxu0 %v553
        %593 = vmatprep.subr.mxu0 %v552
        %594 = vmatpush1.msra.mxu0 %v551
        %595 = vmatprep.subr.mxu0 %v550
        %596 = vmatpush1.msra.mxu0 %v549
        %597 = vmatprep.subr.mxu0 %v548
        %598 = vmatpush1.msra.mxu0 %v547
        %599 = vmatprep.subr.mxu0 %v546
        %600 = vmatpush1.msra.mxu0 %v545
        %601 = vmatprep.subr.mxu0 %v544
        %602 = vmatpush1.msra.mxu0 %v543
        %603 = vmatprep.subr.mxu0 0.0
        %604 = vmatpush2.msra.mxu0 0.0
        %605 = vmatprep.subr.mxu0 0.0
        %606 = vmatpush2.msra.mxu0 0.0
        %607 = vmatprep.subr.mxu0 0.0
        %608 = vmatpush2.msra.mxu0 0.0
        %609 = vmatprep.subr.mxu0 0.0
        %610 = vmatpush2.msra.mxu0 0.0
        %611 = vmatprep.subr.mxu0 0.0
        %612 = vmatpush2.msra.mxu0 0.0
        %613 = vmatprep.subr.mxu0 0.0
        %614 = vmatpush2.msra.mxu0 0.0
        %615 = vmatprep.subr.mxu0 0.0
        %616 = vmatpush2.msra.mxu0 0.0
        %617 = vmatprep.subr.mxu0 0.0
        %618 = vmatpush2.msra.mxu0 0.0
        %619 = vmatprep.subr.mxu0 0.0
        %620 = vmatpush2.msra.mxu0 0.0
        %621 = vmatprep.subr.mxu0 0.0
        %622 = vmatpush2.msra.mxu0 0.0
        %623 = vmatprep.subr.mxu0 0.0
        %624 = vmatpush2.msra.mxu0 0.0
        %625 = vmatprep.subr.mxu0 0.0
        %626 = vmatpush2.msra.mxu0 0.0
        %627 = vmatprep.subr.mxu0 0.0
        %628 = vmatpush2.msra.mxu0 0.0
        %629 = vmatprep.subr.mxu0 0.0
        %630 = vmatpush2.msra.mxu0 0.0
        %631 = vmatprep.subr.mxu0 0.0
        %632 = vmatpush2.msra.mxu0 0.0
        %633 = vmatprep.subr.mxu0 0.0
        %634 = vmatpush2.msra.mxu0 0.0
        %635 = vmatprep.mubr.f32.mxu0 0.0
        %636 = vmatmul.mubr.f32.gmra.mxu0 %v569
        %v637 = vpop.f32.mrf.mxu0
        %v638 = vadd.f32 %v560, %v637
        %v639 = vpop.f32.mrf.mxu0
        %v640 = vadd.f32 %v564, %v639
        %641 = vdwg.mxu0
        %643 = vrot.lane.b32.xlu0 %v638, 80
        %v644 = vpop.permute.xlu0 %643
        %vm645 = vcmask 130048
        %v646 = vsel %vm645, %v638, 0
        %v648 = vsel %vm645, %v644, 0
        %650 = vmatprep.subr.mxu0 0.0
        %651 = vmatpush1.xpose.msra.mxu0 0.0
        %652 = vmatprep.subr.mxu0 0.0
        %653 = vmatpush1.xpose.msra.mxu0 0.0
        %654 = vmatprep.subr.mxu0 0.0
        %655 = vmatpush1.xpose.msra.mxu0 0.0
        %656 = vmatprep.subr.mxu0 0.0
        %657 = vmatpush1.xpose.msra.mxu0 0.0
        %658 = vmatprep.subr.mxu0 0.0
        %659 = vmatpush1.xpose.msra.mxu0 0.0
        %660 = vmatprep.subr.mxu0 0.0
        %661 = vmatpush1.xpose.msra.mxu0 0.0
        %662 = vmatprep.subr.mxu0 0.0
        %663 = vmatpush1.xpose.msra.mxu0 0.0
        %664 = vmatprep.subr.mxu0 0.0
        %665 = vmatpush1.xpose.msra.mxu0 0.0
        %666 = vmatprep.subr.mxu0 0.0
        %667 = vmatpush1.xpose.msra.mxu0 0.0
        %668 = vmatprep.subr.mxu0 0.0
        %669 = vmatpush1.xpose.msra.mxu0 0.0
        %670 = vmatprep.subr.mxu0 0.0
        %671 = vmatpush1.xpose.msra.mxu0 0.0
        %672 = vmatprep.subr.mxu0 0.0
        %673 = vmatpush1.xpose.msra.mxu0 0.0
        %674 = vmatprep.subr.mxu0 0.0
        %675 = vmatpush1.xpose.msra.mxu0 0.0
        %676 = vmatprep.subr.mxu0 0.0
        %677 = vmatpush1.xpose.msra.mxu0 0.0
        %678 = vmatprep.subr.mxu0 0.0
        %679 = vmatpush1.xpose.msra.mxu0 0.0
        %680 = vmatprep.subr.mxu0 0.0
        %681 = vmatpush1.xpose.msra.mxu0 %v648
        %682 = vmatprep.subr.mxu0 0.0
        %683 = vmatpush2.xpose.msra.mxu0 0.0
        %684 = vmatprep.subr.mxu0 0.0
        %685 = vmatpush2.xpose.msra.mxu0 0.0
        %686 = vmatprep.subr.mxu0 0.0
        %687 = vmatpush2.xpose.msra.mxu0 0.0
        %688 = vmatprep.subr.mxu0 0.0
        %689 = vmatpush2.xpose.msra.mxu0 0.0
        %690 = vmatprep.subr.mxu0 0.0
        %691 = vmatpush2.xpose.msra.mxu0 0.0
        %692 = vmatprep.subr.mxu0 0.0
        %693 = vmatpush2.xpose.msra.mxu0 0.0
        %694 = vmatprep.subr.mxu0 0.0
        %695 = vmatpush2.xpose.msra.mxu0 0.0
        %696 = vmatprep.subr.mxu0 0.0
        %697 = vmatpush2.xpose.msra.mxu0 0.0
        %698 = vmatprep.subr.mxu0 0.0
        %699 = vmatpush2.xpose.msra.mxu0 0.0
        %700 = vmatprep.subr.mxu0 0.0
        %701 = vmatpush2.xpose.msra.mxu0 0.0
        %702 = vmatprep.subr.mxu0 0.0
        %703 = vmatpush2.xpose.msra.mxu0 0.0
        %704 = vmatprep.subr.mxu0 0.0
        %705 = vmatpush2.xpose.msra.mxu0 0.0
        %706 = vmatprep.subr.mxu0 0.0
        %707 = vmatpush2.xpose.msra.mxu0 0.0
        %708 = vmatprep.subr.mxu0 0.0
        %709 = vmatpush2.xpose.msra.mxu0 0.0
        %710 = vmatprep.subr.mxu0 0.0
        %711 = vmatpush2.xpose.msra.mxu0 0.0
        %712 = vmatprep.subr.mxu0 0.0
        %713 = vmatpush2.xpose.msra.mxu0 0.0
        %714 = vmatprep.mubr.f32.mxu0 0.0
        %715 = vmatmul.mubr.f32.gmra.mxu0 %v646
        %v716 = vpop.f32.mrf.mxu0
        %v717 = vadd.f32 0.0, %v716
        %v718 = vpop.f32.mrf.mxu0
        %719 = vdwg.mxu0
        %v720 = vsel %vm540, -1e+09, %v717
        %vm721 = vcmask 64512
        %v722 = vsel %vm721, %v720, -inf
        %723 = vmax.xlane.f32.xlu0 %v722
        %v724 = vpop.xlane.xlu0 %723
        %v725 = vsub.f32 %v720, %v724
        %v726 = vmul.f32 %v725, 1.442695
        %v727 = vpow.pop %v726
        %v728 = vsel %vm721, %v727, 0.0
        %729 = vadd.xlane.f32.xlu0 %v728
        %v730 = vpop.xlane.xlu0 %729
        %v731 = vrcp.pop %v730
        %v732 = vmul.f32 %v727, %v731
        %733 = vrot.lane.b32.xlu0 %v638, 32
        %v734 = vpop.permute.xlu0 %733
        %v737 = vsel %vm721, %v732, 0
        %739 = vmatprep.subr.mxu0 0.0
        %740 = vmatpush1.msra.mxu0 0.0
        %741 = vmatprep.subr.mxu0 0.0
        %742 = vmatpush1.msra.mxu0 0.0
        %743 = vmatprep.subr.mxu0 0.0
        %744 = vmatpush1.msra.mxu0 0.0
        %745 = vmatprep.subr.mxu0 0.0
        %746 = vmatpush1.msra.mxu0 0.0
        %747 = vmatprep.subr.mxu0 0.0
        %748 = vmatpush1.msra.mxu0 0.0
        %749 = vmatprep.subr.mxu0 0.0
        %750 = vmatpush1.msra.mxu0 0.0
        %751 = vmatprep.subr.mxu0 0.0
        %752 = vmatpush1.msra.mxu0 0.0
        %753 = vmatprep.subr.mxu0 0.0
        %754 = vmatpush1.msra.mxu0 0.0
        %755 = vmatprep.subr.mxu0 0.0
        %756 = vmatpush1.msra.mxu0 0.0
        %757 = vmatprep.subr.mxu0 0.0
        %758 = vmatpush1.msra.mxu0 0.0
        %759 = vmatprep.subr.mxu0 0.0
        %760 = vmatpush1.msra.mxu0 0.0
        %761 = vmatprep.subr.mxu0 0.0
        %762 = vmatpush1.msra.mxu0 0.0
        %763 = vmatprep.subr.mxu0 0.0
        %764 = vmatpush1.msra.mxu0 0.0
        %765 = vmatprep.subr.mxu0 0.0
        %766 = vmatpush1.msra.mxu0 0.0
        %767 = vmatprep.subr.mxu0 0.0
        %768 = vmatpush1.msra.mxu0 0.0
        %769 = vmatprep.subr.mxu0 0.0
        %770 = vmatpush1.msra.mxu0 %v734
        %771 = vmatprep.subr.mxu0 0.0
        %772 = vmatpush2.msra.mxu0 0.0
        %773 = vmatprep.subr.mxu0 0.0
        %774 = vmatpush2.msra.mxu0 0.0
        %775 = vmatprep.subr.mxu0 0.0
        %776 = vmatpush2.msra.mxu0 0.0
        %777 = vmatprep.subr.mxu0 0.0
        %778 = vmatpush2.msra.mxu0 0.0
        %779 = vmatprep.subr.mxu0 0.0
        %780 = vmatpush2.msra.mxu0 0.0
        %781 = vmatprep.subr.mxu0 0.0
        %782 = vmatpush2.msra.mxu0 0.0
        %783 = vmatprep.subr.mxu0 0.0
        %784 = vmatpush2.msra.mxu0 0.0
        %785 = vmatprep.subr.mxu0 0.0
        %786 = vmatpush2.msra.mxu0 0.0
        %787 = vmatprep.subr.mxu0 0.0
        %788 = vmatpush2.msra.mxu0 0.0
        %789 = vmatprep.subr.mxu0 0.0
        %790 = vmatpush2.msra.mxu0 0.0
        %791 = vmatprep.subr.mxu0 0.0
        %792 = vmatpush2.msra.mxu0 0.0
        %793 = vmatprep.subr.mxu0 0.0
        %794 = vmatpush2.msra.mxu0 0.0
        %795 = vmatprep.subr.mxu0 0.0
        %796 = vmatpush2.msra.mxu0 0.0
        %797 = vmatprep.subr.mxu0 0.0
        %798 = vmatpush2.msra.mxu0 0.0
        %799 = vmatprep.subr.mxu0 0.0
        %800 = vmatpush2.msra.mxu0 0.0
        %801 = vmatprep.subr.mxu0 0.0
        %802 = vmatpush2.msra.mxu0 0.0
        %803 = vmatprep.mubr.f32.mxu0 0.0
        %804 = vmatmul.mubr.f32.gmra.mxu0 %v737
        %v805 = vpop.f32.mrf.mxu0
        %v806 = vadd.f32 0.0, %v805
        %v807 = vpop.f32.mrf.mxu0
        %808 = vdwg.mxu0
        %809 = vrot.lane.b32.xlu0 %v638, 112
        %v810 = vpop.permute.xlu0 %809
        %811 = vrot.lane.b32.xlu0 %v638, 64
        %v812 = vpop.permute.xlu0 %811
        %v813 = vsel %vm645, %v810, 0
        %v815 = vsel %vm645, %v812, 0
        %817 = vmatprep.subr.mxu0 0.0
        %818 = vmatpush1.xpose.msra.mxu0 0.0
        %819 = vmatprep.subr.mxu0 0.0
        %820 = vmatpush1.xpose.msra.mxu0 0.0
        %821 = vmatprep.subr.mxu0 0.0
        %822 = vmatpush1.xpose.msra.mxu0 0.0
        %823 = vmatprep.subr.mxu0 0.0
        %824 = vmatpush1.xpose.msra.mxu0 0.0
        %825 = vmatprep.subr.mxu0 0.0
        %826 = vmatpush1.xpose.msra.mxu0 0.0
        %827 = vmatprep.subr.mxu0 0.0
        %828 = vmatpush1.xpose.msra.mxu0 0.0
        %829 = vmatprep.subr.mxu0 0.0
        %830 = vmatpush1.xpose.msra.mxu0 0.0
        %831 = vmatprep.subr.mxu0 0.0
        %832 = vmatpush1.xpose.msra.mxu0 0.0
        %833 = vmatprep.subr.mxu0 0.0
        %834 = vmatpush1.xpose.msra.mxu0 0.0
        %835 = vmatprep.subr.mxu0 0.0
        %836 = vmatpush1.xpose.msra.mxu0 0.0
        %837 = vmatprep.subr.mxu0 0.0
        %838 = vmatpush1.xpose.msra.mxu0 0.0
        %839 = vmatprep.subr.mxu0 0.0
        %840 = vmatpush1.xpose.msra.mxu0 0.0
        %841 = vmatprep.subr.mxu0 0.0
        %842 = vmatpush1.xpose.msra.mxu0 0.0
        %843 = vmatprep.subr.mxu0 0.0
        %844 = vmatpush1.xpose.msra.mxu0 0.0
        %845 = vmatprep.subr.mxu0 0.0
        %846 = vmatpush1.xpose.msra.mxu0 0.0
        %847 = vmatprep.subr.mxu0 0.0
        %848 = vmatpush1.xpose.msra.mxu0 %v815
        %849 = vmatprep.subr.mxu0 0.0
        %850 = vmatpush2.xpose.msra.mxu0 0.0
        %851 = vmatprep.subr.mxu0 0.0
        %852 = vmatpush2.xpose.msra.mxu0 0.0
        %853 = vmatprep.subr.mxu0 0.0
        %854 = vmatpush2.xpose.msra.mxu0 0.0
        %855 = vmatprep.subr.mxu0 0.0
        %856 = vmatpush2.xpose.msra.mxu0 0.0
        %857 = vmatprep.subr.mxu0 0.0
        %858 = vmatpush2.xpose.msra.mxu0 0.0
        %859 = vmatprep.subr.mxu0 0.0
        %860 = vmatpush2.xpose.msra.mxu0 0.0
        %861 = vmatprep.subr.mxu0 0.0
        %862 = vmatpush2.xpose.msra.mxu0 0.0
        %863 = vmatprep.subr.mxu0 0.0
        %864 = vmatpush2.xpose.msra.mxu0 0.0
        %865 = vmatprep.subr.mxu0 0.0
        %866 = vmatpush2.xpose.msra.mxu0 0.0
        %867 = vmatprep.subr.mxu0 0.0
        %868 = vmatpush2.xpose.msra.mxu0 0.0
        %869 = vmatprep.subr.mxu0 0.0
        %870 = vmatpush2.xpose.msra.mxu0 0.0
        %871 = vmatprep.subr.mxu0 0.0
        %872 = vmatpush2.xpose.msra.mxu0 0.0
        %873 = vmatprep.subr.mxu0 0.0
        %874 = vmatpush2.xpose.msra.mxu0 0.0
        %875 = vmatprep.subr.mxu0 0.0
        %876 = vmatpush2.xpose.msra.mxu0 0.0
        %877 = vmatprep.subr.mxu0 0.0
        %878 = vmatpush2.xpose.msra.mxu0 0.0
        %879 = vmatprep.subr.mxu0 0.0
        %880 = vmatpush2.xpose.msra.mxu0 0.0
        %881 = vmatprep.mubr.f32.mxu0 0.0
        %882 = vmatmul.mubr.f32.gmra.mxu0 %v813
        %v883 = vpop.f32.mrf.mxu0
        %v884 = vadd.f32 0.0, %v883
        %v885 = vpop.f32.mrf.mxu0
        %886 = vdwg.mxu0
        %v887 = vsel %vm540, -1e+09, %v884
        %v888 = vsel %vm721, %v887, -inf
        %889 = vmax.xlane.f32.xlu0 %v888
        %v890 = vpop.xlane.xlu0 %889
        %v891 = vsub.f32 %v887, %v890
        %v892 = vmul.f32 %v891, 1.442695
        %v893 = vpow.pop %v892
        %v894 = vsel %vm721, %v893, 0.0
        %895 = vadd.xlane.f32.xlu0 %v894
        %v896 = vpop.xlane.xlu0 %895
        %v897 = vrcp.pop %v896
        %v898 = vmul.f32 %v893, %v897
        %899 = vrot.lane.b32.xlu0 %v638, 16
        %v900 = vpop.permute.xlu0 %899
        %v903 = vsel %vm721, %v898, 0
        %905 = vmatprep.subr.mxu0 0.0
        %906 = vmatpush1.msra.mxu0 0.0
        %907 = vmatprep.subr.mxu0 0.0
        %908 = vmatpush1.msra.mxu0 0.0
        %909 = vmatprep.subr.mxu0 0.0
        %910 = vmatpush1.msra.mxu0 0.0
        %911 = vmatprep.subr.mxu0 0.0
        %912 = vmatpush1.msra.mxu0 0.0
        %913 = vmatprep.subr.mxu0 0.0
        %914 = vmatpush1.msra.mxu0 0.0
        %915 = vmatprep.subr.mxu0 0.0
        %916 = vmatpush1.msra.mxu0 0.0
        %917 = vmatprep.subr.mxu0 0.0
        %918 = vmatpush1.msra.mxu0 0.0
        %919 = vmatprep.subr.mxu0 0.0
        %920 = vmatpush1.msra.mxu0 0.0
        %921 = vmatprep.subr.mxu0 0.0
        %922 = vmatpush1.msra.mxu0 0.0
        %923 = vmatprep.subr.mxu0 0.0
        %924 = vmatpush1.msra.mxu0 0.0
        %925 = vmatprep.subr.mxu0 0.0
        %926 = vmatpush1.msra.mxu0 0.0
        %927 = vmatprep.subr.mxu0 0.0
        %928 = vmatpush1.msra.mxu0 0.0
        %929 = vmatprep.subr.mxu0 0.0
        %930 = vmatpush1.msra.mxu0 0.0
        %931 = vmatprep.subr.mxu0 0.0
        %932 = vmatpush1.msra.mxu0 0.0
        %933 = vmatprep.subr.mxu0 0.0
        %934 = vmatpush1.msra.mxu0 0.0
        %935 = vmatprep.subr.mxu0 0.0
        %936 = vmatpush1.msra.mxu0 %v900
        %937 = vmatprep.subr.mxu0 0.0
        %938 = vmatpush2.msra.mxu0 0.0
        %939 = vmatprep.subr.mxu0 0.0
        %940 = vmatpush2.msra.mxu0 0.0
        %941 = vmatprep.subr.mxu0 0.0
        %942 = vmatpush2.msra.mxu0 0.0
        %943 = vmatprep.subr.mxu0 0.0
        %944 = vmatpush2.msra.mxu0 0.0
        %945 = vmatprep.subr.mxu0 0.0
        %946 = vmatpush2.msra.mxu0 0.0
        %947 = vmatprep.subr.mxu0 0.0
        %948 = vmatpush2.msra.mxu0 0.0
        %949 = vmatprep.subr.mxu0 0.0
        %950 = vmatpush2.msra.mxu0 0.0
        %951 = vmatprep.subr.mxu0 0.0
        %952 = vmatpush2.msra.mxu0 0.0
        %953 = vmatprep.subr.mxu0 0.0
        %954 = vmatpush2.msra.mxu0 0.0
        %955 = vmatprep.subr.mxu0 0.0
        %956 = vmatpush2.msra.mxu0 0.0
        %957 = vmatprep.subr.mxu0 0.0
        %958 = vmatpush2.msra.mxu0 0.0
        %959 = vmatprep.subr.mxu0 0.0
        %960 = vmatpush2.msra.mxu0 0.0
        %961 = vmatprep.subr.mxu0 0.0
        %962 = vmatpush2.msra.mxu0 0.0
        %963 = vmatprep.subr.mxu0 0.0
        %964 = vmatpush2.msra.mxu0 0.0
        %965 = vmatprep.subr.mxu0 0.0
        %966 = vmatpush2.msra.mxu0 0.0
        %967 = vmatprep.subr.mxu0 0.0
        %968 = vmatpush2.msra.mxu0 0.0
        %969 = vmatprep.mubr.f32.mxu0 0.0
        %970 = vmatmul.mubr.f32.gmra.mxu0 %v903
        %v971 = vpop.f32.mrf.mxu0
        %v972 = vadd.f32 0.0, %v971
        %v973 = vpop.f32.mrf.mxu0
        %974 = vdwg.mxu0
        %975 = vrot.lane.b32.xlu0 %v638, 96
        %v976 = vpop.permute.xlu0 %975
        %977 = vrot.lane.b32.xlu0 %v638, 48
        %v978 = vpop.permute.xlu0 %977
        %v979 = vsel %vm645, %v976, 0
        %v981 = vsel %vm645, %v978, 0
        %983 = vmatprep.subr.mxu0 0.0
        %984 = vmatpush1.xpose.msra.mxu0 0.0
        %985 = vmatprep.subr.mxu0 0.0
        %986 = vmatpush1.xpose.msra.mxu0 0.0
        %987 = vmatprep.subr.mxu0 0.0
        %988 = vmatpush1.xpose.msra.mxu0 0.0
        %989 = vmatprep.subr.mxu0 0.0
        %990 = vmatpush1.xpose.msra.mxu0 0.0
        %991 = vmatprep.subr.mxu0 0.0
        %992 = vmatpush1.xpose.msra.mxu0 0.0
        %993 = vmatprep.subr.mxu0 0.0
        %994 = vmatpush1.xpose.msra.mxu0 0.0
        %995 = vmatprep.subr.mxu0 0.0
        %996 = vmatpush1.xpose.msra.mxu0 0.0
        %997 = vmatprep.subr.mxu0 0.0
        %998 = vmatpush1.xpose.msra.mxu0 0.0
        %999 = vmatprep.subr.mxu0 0.0
        %1000 = vmatpush1.xpose.msra.mxu0 0.0
        %1001 = vmatprep.subr.mxu0 0.0
        %1002 = vmatpush1.xpose.msra.mxu0 0.0
        %1003 = vmatprep.subr.mxu0 0.0
        %1004 = vmatpush1.xpose.msra.mxu0 0.0
        %1005 = vmatprep.subr.mxu0 0.0
        %1006 = vmatpush1.xpose.msra.mxu0 0.0
        %1007 = vmatprep.subr.mxu0 0.0
        %1008 = vmatpush1.xpose.msra.mxu0 0.0
        %1009 = vmatprep.subr.mxu0 0.0
        %1010 = vmatpush1.xpose.msra.mxu0 0.0
        %1011 = vmatprep.subr.mxu0 0.0
        %1012 = vmatpush1.xpose.msra.mxu0 0.0
        %1013 = vmatprep.subr.mxu0 0.0
        %1014 = vmatpush1.xpose.msra.mxu0 %v981
        %1015 = vmatprep.subr.mxu0 0.0
        %1016 = vmatpush2.xpose.msra.mxu0 0.0
        %1017 = vmatprep.subr.mxu0 0.0
        %1018 = vmatpush2.xpose.msra.mxu0 0.0
        %1019 = vmatprep.subr.mxu0 0.0
        %1020 = vmatpush2.xpose.msra.mxu0 0.0
        %1021 = vmatprep.subr.mxu0 0.0
        %1022 = vmatpush2.xpose.msra.mxu0 0.0
        %1023 = vmatprep.subr.mxu0 0.0
        %1024 = vmatpush2.xpose.msra.mxu0 0.0
        %1025 = vmatprep.subr.mxu0 0.0
        %1026 = vmatpush2.xpose.msra.mxu0 0.0
        %1027 = vmatprep.subr.mxu0 0.0
        %1028 = vmatpush2.xpose.msra.mxu0 0.0
        %1029 = vmatprep.subr.mxu0 0.0
        %1030 = vmatpush2.xpose.msra.mxu0 0.0
        %1031 = vmatprep.subr.mxu0 0.0
        %1032 = vmatpush2.xpose.msra.mxu0 0.0
        %1033 = vmatprep.subr.mxu0 0.0
        %1034 = vmatpush2.xpose.msra.mxu0 0.0
        %1035 = vmatprep.subr.mxu0 0.0
        %1036 = vmatpush2.xpose.msra.mxu0 0.0
        %1037 = vmatprep.subr.mxu0 0.0
        %1038 = vmatpush2.xpose.msra.mxu0 0.0
        %1039 = vmatprep.subr.mxu0 0.0
        %1040 = vmatpush2.xpose.msra.mxu0 0.0
        %1041 = vmatprep.subr.mxu0 0.0
        %1042 = vmatpush2.xpose.msra.mxu0 0.0
        %1043 = vmatprep.subr.mxu0 0.0
        %1044 = vmatpush2.xpose.msra.mxu0 0.0
        %1045 = vmatprep.subr.mxu0 0.0
        %1046 = vmatpush2.xpose.msra.mxu0 0.0
        %1047 = vmatprep.mubr.f32.mxu0 0.0
        %1048 = vmatmul.mubr.f32.gmra.mxu0 %v979
        %v1049 = vpop.f32.mrf.mxu0
        %v1050 = vadd.f32 0.0, %v1049
        %v1051 = vpop.f32.mrf.mxu0
        %1052 = vdwg.mxu0
        %v1053 = vsel %vm540, -1e+09, %v1050
        %v1054 = vsel %vm721, %v1053, -inf
        %1055 = vmax.xlane.f32.xlu0 %v1054
        %v1056 = vpop.xlane.xlu0 %1055
        %v1057 = vsub.f32 %v1053, %v1056
        %v1058 = vmul.f32 %v1057, 1.442695
        %v1059 = vpow.pop %v1058
        %v1060 = vsel %vm721, %v1059, 0.0
        %1061 = vadd.xlane.f32.xlu0 %v1060
        %v1062 = vpop.xlane.xlu0 %1061
        %v1063 = vrcp.pop %v1062
        %v1064 = vmul.f32 %v1059, %v1063
        %v1066 = vsel %vm721, %v1064, 0
        %1068 = vmatprep.subr.mxu0 0.0
        %1069 = vmatpush1.msra.mxu0 0.0
        %1070 = vmatprep.subr.mxu0 0.0
        %1071 = vmatpush1.msra.mxu0 0.0
        %1072 = vmatprep.subr.mxu0 0.0
        %1073 = vmatpush1.msra.mxu0 0.0
        %1074 = vmatprep.subr.mxu0 0.0
        %1075 = vmatpush1.msra.mxu0 0.0
        %1076 = vmatprep.subr.mxu0 0.0
        %1077 = vmatpush1.msra.mxu0 0.0
        %1078 = vmatprep.subr.mxu0 0.0
        %1079 = vmatpush1.msra.mxu0 0.0
        %1080 = vmatprep.subr.mxu0 0.0
        %1081 = vmatpush1.msra.mxu0 0.0
        %1082 = vmatprep.subr.mxu0 0.0
        %1083 = vmatpush1.msra.mxu0 0.0
        %1084 = vmatprep.subr.mxu0 0.0
        %1085 = vmatpush1.msra.mxu0 0.0
        %1086 = vmatprep.subr.mxu0 0.0
        %1087 = vmatpush1.msra.mxu0 0.0
        %1088 = vmatprep.subr.mxu0 0.0
        %1089 = vmatpush1.msra.mxu0 0.0
        %1090 = vmatprep.subr.mxu0 0.0
        %1091 = vmatpush1.msra.mxu0 0.0
        %1092 = vmatprep.subr.mxu0 0.0
        %1093 = vmatpush1.msra.mxu0 0.0
        %1094 = vmatprep.subr.mxu0 0.0
        %1095 = vmatpush1.msra.mxu0 0.0
        %1096 = vmatprep.subr.mxu0 0.0
        %1097 = vmatpush1.msra.mxu0 0.0
        %1098 = vmatprep.subr.mxu0 0.0
        %1099 = vmatpush1.msra.mxu0 %v640
        %1100 = vmatprep.subr.mxu0 0.0
        %1101 = vmatpush2.msra.mxu0 0.0
        %1102 = vmatprep.subr.mxu0 0.0
        %1103 = vmatpush2.msra.mxu0 0.0
        %1104 = vmatprep.subr.mxu0 0.0
        %1105 = vmatpush2.msra.mxu0 0.0
        %1106 = vmatprep.subr.mxu0 0.0
        %1107 = vmatpush2.msra.mxu0 0.0
        %1108 = vmatprep.subr.mxu0 0.0
        %1109 = vmatpush2.msra.mxu0 0.0
        %1110 = vmatprep.subr.mxu0 0.0
        %1111 = vmatpush2.msra.mxu0 0.0
        %1112 = vmatprep.subr.mxu0 0.0
        %1113 = vmatpush2.msra.mxu0 0.0
        %1114 = vmatprep.subr.mxu0 0.0
        %1115 = vmatpush2.msra.mxu0 0.0
        %1116 = vmatprep.subr.mxu0 0.0
        %1117 = vmatpush2.msra.mxu0 0.0
        %1118 = vmatprep.subr.mxu0 0.0
        %1119 = vmatpush2.msra.mxu0 0.0
        %1120 = vmatprep.subr.mxu0 0.0
        %1121 = vmatpush2.msra.mxu0 0.0
        %1122 = vmatprep.subr.mxu0 0.0
        %1123 = vmatpush2.msra.mxu0 0.0
        %1124 = vmatprep.subr.mxu0 0.0
        %1125 = vmatpush2.msra.mxu0 0.0
        %1126 = vmatprep.subr.mxu0 0.0
        %1127 = vmatpush2.msra.mxu0 0.0
        %1128 = vmatprep.subr.mxu0 0.0
        %1129 = vmatpush2.msra.mxu0 0.0
        %1130 = vmatprep.subr.mxu0 0.0
        %1131 = vmatpush2.msra.mxu0 0.0
        %1132 = vmatprep.mubr.f32.mxu0 0.0
        %1133 = vmatmul.mubr.f32.gmra.mxu0 %v1066
        %v1134 = vpop.f32.mrf.mxu0
        %v1135 = vadd.f32 0.0, %v1134
        %v1136 = vpop.f32.mrf.mxu0
        %1137 = vdwg.mxu0
        %1139 = vrot.lane.b32.xlu0 %v972, 16
        %v1140 = vpop.permute.xlu0 %1139
        %1143 = vrot.lane.b32.xlu0 %v1135, 32
        %v1144 = vpop.permute.xlu0 %1143
        %v1146 = vsel %vm645, %v806, %v1140
        %vm1147 = vcmask 261120
        %v1148 = vsel %vm1147, %v1146, %v1144
        %v1149 = vadd.f32 %v1148, %v534
        %v1150 = vsel %vm567, %v1149, 0.0
        %1151 = vadd.xlane.f32.xlu0 %v1150
        %v1152 = vpop.xlane.xlu0 %1151
        %v1153 = vrcp.pop 48.0
        %v1154 = vmul.f32 %v1152, %v1153
        %v1155 = vmul.f32 %v1149, %v1149
        %v1156 = vsel %vm567, %v1155, 0.0
        %1157 = vadd.xlane.f32.xlu0 %v1156
        %v1158 = vpop.xlane.xlu0 %1157
        %v1159 = vmul.f32 %v1158, %v1153
        %v1160 = vmul.f32 %v1154, %v1154
        %v1161 = vsub.f32 %v1159, %v1160
        %v1162 = vsub.f32 %v1149, %v1154
        %v1163 = vadd.f32 %v1161, 1e-05
        %v1164 = vrsqrt.pop %v1163
        %v1165 = vmul.f32 %v1162, %v1164
        %v1167 = vlaneseq
        %v1168 = vshrl.u32 %v1167, 7
        %v1169 = vsub.s32 0, %v1168
        %v1170 = vrot.slane %v541, %v1169
        %v1172 = vmul.f32 %v1165, %v1170
        %v1174 = vlaneseq
        %v1175 = vshrl.u32 %v1174, 7
        %v1176 = vsub.s32 0, %v1175
        %v1177 = vrot.slane %v542, %v1176
        %v1179 = vadd.f32 %v1172, %v1177
        %v1180 = vld [vmem:[%s4] sm:$0xff]
        %v1181 = vld [vmem:[%s4 + $0x8] sm:$0xff]
        %v1182 = vld [vmem:[%s4 + $0x10] sm:$0xff]
        %v1183 = vld [vmem:[%s4 + $0x18] sm:$0xff]
        %v1184 = vld [vmem:[%s4 + $0x20] sm:$0xff]
        %v1185 = vld [vmem:[%s4 + $0x28] sm:$0xff]
        %v1186 = vld [vmem:[%s5] sm:$0x1]
        %v1188 = vlaneseq
        %v1189 = vshrl.u32 %v1188, 7
        %v1190 = vsub.s32 0, %v1189
        %v1191 = vrot.slane %v1186, %v1190
        %v1194 = vsel %vm567, %v1179, 0
        %1196 = vmatprep.subr.mxu0 0.0
        %1197 = vmatpush1.msra.mxu0 0.0
        %1198 = vmatprep.subr.mxu0 0.0
        %1199 = vmatpush1.msra.mxu0 0.0
        %1200 = vmatprep.subr.mxu0 0.0
        %1201 = vmatpush1.msra.mxu0 0.0
        %1202 = vmatprep.subr.mxu0 0.0
        %1203 = vmatpush1.msra.mxu0 0.0
        %1204 = vmatprep.subr.mxu0 0.0
        %1205 = vmatpush1.msra.mxu0 0.0
        %1206 = vmatprep.subr.mxu0 0.0
        %1207 = vmatpush1.msra.mxu0 0.0
        %1208 = vmatprep.subr.mxu0 0.0
        %1209 = vmatpush1.msra.mxu0 0.0
        %1210 = vmatprep.subr.mxu0 0.0
        %1211 = vmatpush1.msra.mxu0 0.0
        %1212 = vmatprep.subr.mxu0 0.0
        %1213 = vmatpush1.msra.mxu0 0.0
        %1214 = vmatprep.subr.mxu0 0.0
        %1215 = vmatpush1.msra.mxu0 0.0
        %1216 = vmatprep.subr.mxu0 0.0
        %1217 = vmatpush1.msra.mxu0 %v1185
        %1218 = vmatprep.subr.mxu0 0.0
        %1219 = vmatpush1.msra.mxu0 %v1184
        %1220 = vmatprep.subr.mxu0 0.0
        %1221 = vmatpush1.msra.mxu0 %v1183
        %1222 = vmatprep.subr.mxu0 0.0
        %1223 = vmatpush1.msra.mxu0 %v1182
        %1224 = vmatprep.subr.mxu0 0.0
        %1225 = vmatpush1.msra.mxu0 %v1181
        %1226 = vmatprep.subr.mxu0 0.0
        %1227 = vmatpush1.msra.mxu0 %v1180
        %1228 = vmatprep.subr.mxu0 0.0
        %1229 = vmatpush2.msra.mxu0 0.0
        %1230 = vmatprep.subr.mxu0 0.0
        %1231 = vmatpush2.msra.mxu0 0.0
        %1232 = vmatprep.subr.mxu0 0.0
        %1233 = vmatpush2.msra.mxu0 0.0
        %1234 = vmatprep.subr.mxu0 0.0
        %1235 = vmatpush2.msra.mxu0 0.0
        %1236 = vmatprep.subr.mxu0 0.0
        %1237 = vmatpush2.msra.mxu0 0.0
        %1238 = vmatprep.subr.mxu0 0.0
        %1239 = vmatpush2.msra.mxu0 0.0
        %1240 = vmatprep.subr.mxu0 0.0
        %1241 = vmatpush2.msra.mxu0 0.0
        %1242 = vmatprep.subr.mxu0 0.0
        %1243 = vmatpush2.msra.mxu0 0.0
        %1244 = vmatprep.subr.mxu0 0.0
        %1245 = vmatpush2.msra.mxu0 0.0
        %1246 = vmatprep.subr.mxu0 0.0
        %1247 = vmatpush2.msra.mxu0 0.0
        %1248 = vmatprep.subr.mxu0 0.0
        %1249 = vmatpush2.msra.mxu0 0.0
        %1250 = vmatprep.subr.mxu0 0.0
        %1251 = vmatpush2.msra.mxu0 0.0
        %1252 = vmatprep.subr.mxu0 0.0
        %1253 = vmatpush2.msra.mxu0 0.0
        %1254 = vmatprep.subr.mxu0 0.0
        %1255 = vmatpush2.msra.mxu0 0.0
        %1256 = vmatprep.subr.mxu0 0.0
        %1257 = vmatpush2.msra.mxu0 0.0
        %1258 = vmatprep.subr.mxu0 0.0
        %1259 = vmatpush2.msra.mxu0 0.0
        %1260 = vmatprep.mubr.f32.mxu0 0.0
        %1261 = vmatmul.mubr.f32.gmra.mxu0 %v1194
        %v1262 = vpop.f32.mrf.mxu0
        %v1263 = vadd.f32 %v1191, %v1262
        %v1264 = vpop.f32.mrf.mxu0
        %1265 = vdwg.mxu0
        %v1266 = vld [vmem:[%s6] sm:$0xff]
        %v1267 = vld [vmem:[%s6 + $0x8] sm:$0xff]
        %v1268 = vld [vmem:[%s6 + $0x10] sm:$0xff]
        %v1269 = vld [vmem:[%s6 + $0x18] sm:$0xff]
        %v1270 = vld [vmem:[%s6 + $0x20] sm:$0xff]
        %v1271 = vld [vmem:[%s6 + $0x28] sm:$0xff]
        %v1272 = vld [vmem:[%s7] sm:$0x1]
        %v1274 = vlaneseq
        %v1275 = vshrl.u32 %v1274, 7
        %v1276 = vsub.s32 0, %v1275
        %v1277 = vrot.slane %v1272, %v1276
        %v1280 = vsel %vm567, %v535, 0
        %1282 = vmatprep.subr.mxu0 0.0
        %1283 = vmatpush1.msra.mxu0 0.0
        %1284 = vmatprep.subr.mxu0 0.0
        %1285 = vmatpush1.msra.mxu0 0.0
        %1286 = vmatprep.subr.mxu0 0.0
        %1287 = vmatpush1.msra.mxu0 0.0
        %1288 = vmatprep.subr.mxu0 0.0
        %1289 = vmatpush1.msra.mxu0 0.0
        %1290 = vmatprep.subr.mxu0 0.0
        %1291 = vmatpush1.msra.mxu0 0.0
        %1292 = vmatprep.subr.mxu0 0.0
        %1293 = vmatpush1.msra.mxu0 0.0
        %1294 = vmatprep.subr.mxu0 0.0
        %1295 = vmatpush1.msra.mxu0 0.0
        %1296 = vmatprep.subr.mxu0 0.0
        %1297 = vmatpush1.msra.mxu0 0.0
        %1298 = vmatprep.subr.mxu0 0.0
        %1299 = vmatpush1.msra.mxu0 0.0
        %1300 = vmatprep.subr.mxu0 0.0
        %1301 = vmatpush1.msra.mxu0 0.0
        %1302 = vmatprep.subr.mxu0 0.0
        %1303 = vmatpush1.msra.mxu0 %v1271
        %1304 = vmatprep.subr.mxu0 0.0
        %1305 = vmatpush1.msra.mxu0 %v1270
        %1306 = vmatprep.subr.mxu0 0.0
        %1307 = vmatpush1.msra.mxu0 %v1269
        %1308 = vmatprep.subr.mxu0 0.0
        %1309 = vmatpush1.msra.mxu0 %v1268
        %1310 = vmatprep.subr.mxu0 0.0
        %1311 = vmatpush1.msra.mxu0 %v1267
        %1312 = vmatprep.subr.mxu0 0.0
        %1313 = vmatpush1.msra.mxu0 %v1266
        %1314 = vmatprep.subr.mxu0 0.0
        %1315 = vmatpush2.msra.mxu0 0.0
        %1316 = vmatprep.subr.mxu0 0.0
        %1317 = vmatpush2.msra.mxu0 0.0
        %1318 = vmatprep.subr.mxu0 0.0
        %1319 = vmatpush2.msra.mxu0 0.0
        %1320 = vmatprep.subr.mxu0 0.0
        %1321 = vmatpush2.msra.mxu0 0.0
        %1322 = vmatprep.subr.mxu0 0.0
        %1323 = vmatpush2.msra.mxu0 0.0
        %1324 = vmatprep.subr.mxu0 0.0
        %1325 = vmatpush2.msra.mxu0 0.0
        %1326 = vmatprep.subr.mxu0 0.0
        %1327 = vmatpush2.msra.mxu0 0.0
        %1328 = vmatprep.subr.mxu0 0.0
        %1329 = vmatpush2.msra.mxu0 0.0
        %1330 = vmatprep.subr.mxu0 0.0
        %1331 = vmatpush2.msra.mxu0 0.0
        %1332 = vmatprep.subr.mxu0 0.0
        %1333 = vmatpush2.msra.mxu0 0.0
        %1334 = vmatprep.subr.mxu0 0.0
        %1335 = vmatpush2.msra.mxu0 0.0
        %1336 = vmatprep.subr.mxu0 0.0
        %1337 = vmatpush2.msra.mxu0 0.0
        %1338 = vmatprep.subr.mxu0 0.0
        %1339 = vmatpush2.msra.mxu0 0.0
        %1340 = vmatprep.subr.mxu0 0.0
        %1341 = vmatpush2.msra.mxu0 0.0
        %1342 = vmatprep.subr.mxu0 0.0
        %1343 = vmatpush2.msra.mxu0 0.0
        %1344 = vmatprep.subr.mxu0 0.0
        %1345 = vmatpush2.msra.mxu0 0.0
        %1346 = vmatprep.mubr.f32.mxu0 0.0
        %1347 = vmatmul.mubr.f32.gmra.mxu0 %v1280
        %v1348 = vpop.f32.mrf.mxu0
        %v1349 = vadd.f32 %v1277, %v1348
        %v1350 = vpop.f32.mrf.mxu0
        %1351 = vdwg.mxu0
        %v1353 = vsel %vm645, %v1263, 0
        %v1356 = vsel %vm645, %v1349, 0
        %1358 = vmatprep.subr.mxu0 0.0
        %1359 = vmatpush1.xpose.msra.mxu0 0.0
        %1360 = vmatprep.subr.mxu0 0.0
        %1361 = vmatpush1.xpose.msra.mxu0 0.0
        %1362 = vmatprep.subr.mxu0 0.0
        %1363 = vmatpush1.xpose.msra.mxu0 0.0
        %1364 = vmatprep.subr.mxu0 0.0
        %1365 = vmatpush1.xpose.msra.mxu0 0.0
        %1366 = vmatprep.subr.mxu0 0.0
        %1367 = vmatpush1.xpose.msra.mxu0 0.0
        %1368 = vmatprep.subr.mxu0 0.0
        %1369 = vmatpush1.xpose.msra.mxu0 0.0
        %1370 = vmatprep.subr.mxu0 0.0
        %1371 = vmatpush1.xpose.msra.mxu0 0.0
        %1372 = vmatprep.subr.mxu0 0.0
        %1373 = vmatpush1.xpose.msra.mxu0 0.0
        %1374 = vmatprep.subr.mxu0 0.0
        %1375 = vmatpush1.xpose.msra.mxu0 0.0
        %1376 = vmatprep.subr.mxu0 0.0
        %1377 = vmatpush1.xpose.msra.mxu0 0.0
        %1378 = vmatprep.subr.mxu0 0.0
        %1379 = vmatpush1.xpose.msra.mxu0 0.0
        %1380 = vmatprep.subr.mxu0 0.0
        %1381 = vmatpush1.xpose.msra.mxu0 0.0
        %1382 = vmatprep.subr.mxu0 0.0
        %1383 = vmatpush1.xpose.msra.mxu0 0.0
        %1384 = vmatprep.subr.mxu0 0.0
        %1385 = vmatpush1.xpose.msra.mxu0 0.0
        %1386 = vmatprep.subr.mxu0 0.0
        %1387 = vmatpush1.xpose.msra.mxu0 0.0
        %1388 = vmatprep.subr.mxu0 0.0
        %1389 = vmatpush1.xpose.msra.mxu0 %v1356
        %1390 = vmatprep.subr.mxu0 0.0
        %1391 = vmatpush2.xpose.msra.mxu0 0.0
        %1392 = vmatprep.subr.mxu0 0.0
        %1393 = vmatpush2.xpose.msra.mxu0 0.0
        %1394 = vmatprep.subr.mxu0 0.0
        %1395 = vmatpush2.xpose.msra.mxu0 0.0
        %1396 = vmatprep.subr.mxu0 0.0
        %1397 = vmatpush2.xpose.msra.mxu0 0.0
        %1398 = vmatprep.subr.mxu0 0.0
        %1399 = vmatpush2.xpose.msra.mxu0 0.0
        %1400 = vmatprep.subr.mxu0 0.0
        %1401 = vmatpush2.xpose.msra.mxu0 0.0
        %1402 = vmatprep.subr.mxu0 0.0
        %1403 = vmatpush2.xpose.msra.mxu0 0.0
        %1404 = vmatprep.subr.mxu0 0.0
        %1405 = vmatpush2.xpose.msra.mxu0 0.0
        %1406 = vmatprep.subr.mxu0 0.0
        %1407 = vmatpush2.xpose.msra.mxu0 0.0
        %1408 = vmatprep.subr.mxu0 0.0
        %1409 = vmatpush2.xpose.msra.mxu0 0.0
        %1410 = vmatprep.subr.mxu0 0.0
        %1411 = vmatpush2.xpose.msra.mxu0 0.0
        %1412 = vmatprep.subr.mxu0 0.0
        %1413 = vmatpush2.xpose.msra.mxu0 0.0
        %1414 = vmatprep.subr.mxu0 0.0
        %1415 = vmatpush2.xpose.msra.mxu0 0.0
        %1416 = vmatprep.subr.mxu0 0.0
        %1417 = vmatpush2.xpose.msra.mxu0 0.0
        %1418 = vmatprep.subr.mxu0 0.0
        %1419 = vmatpush2.xpose.msra.mxu0 0.0
        %1420 = vmatprep.subr.mxu0 0.0
        %1421 = vmatpush2.xpose.msra.mxu0 0.0
        %1422 = vmatprep.mubr.f32.mxu0 0.0
        %1423 = vmatmul.mubr.f32.gmra.mxu0 %v1353
        %v1424 = vpop.f32.mrf.mxu0
        %v1425 = vadd.f32 0.0, %v1424
        %v1426 = vpop.f32.mrf.mxu0
        %1427 = vdwg.mxu0
        %v1428 = vsel %vm721, %v1425, -inf
        %1429 = vmax.xlane.f32.xlu0 %v1428
        %v1430 = vpop.xlane.xlu0 %1429
        %v1431 = vsub.f32 %v1425, %v1430
        %v1432 = vmul.f32 %v1431, 1.442695
        %v1433 = vpow.pop %v1432
        %v1434 = vsel %vm721, %v1433, 0.0
        %1435 = vadd.xlane.f32.xlu0 %v1434
        %v1436 = vpop.xlane.xlu0 %1435
        %v1437 = vrcp.pop %v1436
        %v1438 = vmul.f32 %v1433, %v1437
        %1439 = vrot.lane.b32.xlu0 %v1349, 80
        %v1440 = vpop.permute.xlu0 %1439
        %v1443 = vsel %vm721, %v1438, 0
        %1445 = vmatprep.subr.mxu0 0.0
        %1446 = vmatpush1.msra.mxu0 0.0
        %1447 = vmatprep.subr.mxu0 0.0
        %1448 = vmatpush1.msra.mxu0 0.0
        %1449 = vmatprep.subr.mxu0 0.0
        %1450 = vmatpush1.msra.mxu0 0.0
        %1451 = vmatprep.subr.mxu0 0.0
        %1452 = vmatpush1.msra.mxu0 0.0
        %1453 = vmatprep.subr.mxu0 0.0
        %1454 = vmatpush1.msra.mxu0 0.0
        %1455 = vmatprep.subr.mxu0 0.0
        %1456 = vmatpush1.msra.mxu0 0.0
        %1457 = vmatprep.subr.mxu0 0.0
        %1458 = vmatpush1.msra.mxu0 0.0
        %1459 = vmatprep.subr.mxu0 0.0
        %1460 = vmatpush1.msra.mxu0 0.0
        %1461 = vmatprep.subr.mxu0 0.0
        %1462 = vmatpush1.msra.mxu0 0.0
        %1463 = vmatprep.subr.mxu0 0.0
        %1464 = vmatpush1.msra.mxu0 0.0
        %1465 = vmatprep.subr.mxu0 0.0
        %1466 = vmatpush1.msra.mxu0 0.0
        %1467 = vmatprep.subr.mxu0 0.0
        %1468 = vmatpush1.msra.mxu0 0.0
        %1469 = vmatprep.subr.mxu0 0.0
        %1470 = vmatpush1.msra.mxu0 0.0
        %1471 = vmatprep.subr.mxu0 0.0
        %1472 = vmatpush1.msra.mxu0 0.0
        %1473 = vmatprep.subr.mxu0 0.0
        %1474 = vmatpush1.msra.mxu0 0.0
        %1475 = vmatprep.subr.mxu0 0.0
        %1476 = vmatpush1.msra.mxu0 %v1440
        %1477 = vmatprep.subr.mxu0 0.0
        %1478 = vmatpush2.msra.mxu0 0.0
        %1479 = vmatprep.subr.mxu0 0.0
        %1480 = vmatpush2.msra.mxu0 0.0
        %1481 = vmatprep.subr.mxu0 0.0
        %1482 = vmatpush2.msra.mxu0 0.0
        %1483 = vmatprep.subr.mxu0 0.0
        %1484 = vmatpush2.msra.mxu0 0.0
        %1485 = vmatprep.subr.mxu0 0.0
        %1486 = vmatpush2.msra.mxu0 0.0
        %1487 = vmatprep.subr.mxu0 0.0
        %1488 = vmatpush2.msra.mxu0 0.0
        %1489 = vmatprep.subr.mxu0 0.0
        %1490 = vmatpush2.msra.mxu0 0.0
        %1491 = vmatprep.subr.mxu0 0.0
        %1492 = vmatpush2.msra.mxu0 0.0
        %1493 = vmatprep.subr.mxu0 0.0
        %1494 = vmatpush2.msra.mxu0 0.0
        %1495 = vmatprep.subr.mxu0 0.0
        %1496 = vmatpush2.msra.mxu0 0.0
        %1497 = vmatprep.subr.mxu0 0.0
        %1498 = vmatpush2.msra.mxu0 0.0
        %1499 = vmatprep.subr.mxu0 0.0
        %1500 = vmatpush2.msra.mxu0 0.0
        %1501 = vmatprep.subr.mxu0 0.0
        %1502 = vmatpush2.msra.mxu0 0.0
        %1503 = vmatprep.subr.mxu0 0.0
        %1504 = vmatpush2.msra.mxu0 0.0
        %1505 = vmatprep.subr.mxu0 0.0
        %1506 = vmatpush2.msra.mxu0 0.0
        %1507 = vmatprep.subr.mxu0 0.0
        %1508 = vmatpush2.msra.mxu0 0.0
        %1509 = vmatprep.mubr.f32.mxu0 0.0
        %1510 = vmatmul.mubr.f32.gmra.mxu0 %v1443
        %v1511 = vpop.f32.mrf.mxu0
        %v1512 = vadd.f32 0.0, %v1511
        %v1513 = vpop.f32.mrf.mxu0
        %1514 = vdwg.mxu0
        %1515 = vrot.lane.b32.xlu0 %v1263, 112
        %v1516 = vpop.permute.xlu0 %1515
        %1517 = vrot.lane.b32.xlu0 %v1349, 112
        %v1518 = vpop.permute.xlu0 %1517
        %v1519 = vsel %vm645, %v1516, 0
        %v1521 = vsel %vm645, %v1518, 0
        %1523 = vmatprep.subr.mxu0 0.0
        %1524 = vmatpush1.xpose.msra.mxu0 0.0
        %1525 = vmatprep.subr.mxu0 0.0
        %1526 = vmatpush1.xpose.msra.mxu0 0.0
        %1527 = vmatprep.subr.mxu0 0.0
        %1528 = vmatpush1.xpose.msra.mxu0 0.0
        %1529 = vmatprep.subr.mxu0 0.0
        %1530 = vmatpush1.xpose.msra.mxu0 0.0
        %1531 = vmatprep.subr.mxu0 0.0
        %1532 = vmatpush1.xpose.msra.mxu0 0.0
        %1533 = vmatprep.subr.mxu0 0.0
        %1534 = vmatpush1.xpose.msra.mxu0 0.0
        %1535 = vmatprep.subr.mxu0 0.0
        %1536 = vmatpush1.xpose.msra.mxu0 0.0
        %1537 = vmatprep.subr.mxu0 0.0
        %1538 = vmatpush1.xpose.msra.mxu0 0.0
        %1539 = vmatprep.subr.mxu0 0.0
        %1540 = vmatpush1.xpose.msra.mxu0 0.0
        %1541 = vmatprep.subr.mxu0 0.0
        %1542 = vmatpush1.xpose.msra.mxu0 0.0
        %1543 = vmatprep.subr.mxu0 0.0
        %1544 = vmatpush1.xpose.msra.mxu0 0.0
        %1545 = vmatprep.subr.mxu0 0.0
        %1546 = vmatpush1.xpose.msra.mxu0 0.0
        %1547 = vmatprep.subr.mxu0 0.0
        %1548 = vmatpush1.xpose.msra.mxu0 0.0
        %1549 = vmatprep.subr.mxu0 0.0
        %1550 = vmatpush1.xpose.msra.mxu0 0.0
        %1551 = vmatprep.subr.mxu0 0.0
        %1552 = vmatpush1.xpose.msra.mxu0 0.0
        %1553 = vmatprep.subr.mxu0 0.0
        %1554 = vmatpush1.xpose.msra.mxu0 %v1521
        %1555 = vmatprep.subr.mxu0 0.0
        %1556 = vmatpush2.xpose.msra.mxu0 0.0
        %1557 = vmatprep.subr.mxu0 0.0
        %1558 = vmatpush2.xpose.msra.mxu0 0.0
        %1559 = vmatprep.subr.mxu0 0.0
        %1560 = vmatpush2.xpose.msra.mxu0 0.0
        %1561 = vmatprep.subr.mxu0 0.0
        %1562 = vmatpush2.xpose.msra.mxu0 0.0
        %1563 = vmatprep.subr.mxu0 0.0
        %1564 = vmatpush2.xpose.msra.mxu0 0.0
        %1565 = vmatprep.subr.mxu0 0.0
        %1566 = vmatpush2.xpose.msra.mxu0 0.0
        %1567 = vmatprep.subr.mxu0 0.0
        %1568 = vmatpush2.xpose.msra.mxu0 0.0
        %1569 = vmatprep.subr.mxu0 0.0
        %1570 = vmatpush2.xpose.msra.mxu0 0.0
        %1571 = vmatprep.subr.mxu0 0.0
        %1572 = vmatpush2.xpose.msra.mxu0 0.0
        %1573 = vmatprep.subr.mxu0 0.0
        %1574 = vmatpush2.xpose.msra.mxu0 0.0
        %1575 = vmatprep.subr.mxu0 0.0
        %1576 = vmatpush2.xpose.msra.mxu0 0.0
        %1577 = vmatprep.subr.mxu0 0.0
        %1578 = vmatpush2.xpose.msra.mxu0 0.0
        %1579 = vmatprep.subr.mxu0 0.0
        %1580 = vmatpush2.xpose.msra.mxu0 0.0
        %1581 = vmatprep.subr.mxu0 0.0
        %1582 = vmatpush2.xpose.msra.mxu0 0.0
        %1583 = vmatprep.subr.mxu0 0.0
        %1584 = vmatpush2.xpose.msra.mxu0 0.0
        %1585 = vmatprep.subr.mxu0 0.0
        %1586 = vmatpush2.xpose.msra.mxu0 0.0
        %1587 = vmatprep.mubr.f32.mxu0 0.0
        %1588 = vmatmul.mubr.f32.gmra.mxu0 %v1519
        %v1589 = vpop.f32.mrf.mxu0
        %v1590 = vadd.f32 0.0, %v1589
        %v1591 = vpop.f32.mrf.mxu0
        %1592 = vdwg.mxu0
        %v1593 = vsel %vm721, %v1590, -inf
        %1594 = vmax.xlane.f32.xlu0 %v1593
        %v1595 = vpop.xlane.xlu0 %1594
        %v1596 = vsub.f32 %v1590, %v1595
        %v1597 = vmul.f32 %v1596, 1.442695
        %v1598 = vpow.pop %v1597
        %v1599 = vsel %vm721, %v1598, 0.0
        %1600 = vadd.xlane.f32.xlu0 %v1599
        %v1601 = vpop.xlane.xlu0 %1600
        %v1602 = vrcp.pop %v1601
        %v1603 = vmul.f32 %v1598, %v1602
        %1604 = vrot.lane.b32.xlu0 %v1349, 64
        %v1605 = vpop.permute.xlu0 %1604
        %v1608 = vsel %vm721, %v1603, 0
        %1610 = vmatprep.subr.mxu0 0.0
        %1611 = vmatpush1.msra.mxu0 0.0
        %1612 = vmatprep.subr.mxu0 0.0
        %1613 = vmatpush1.msra.mxu0 0.0
        %1614 = vmatprep.subr.mxu0 0.0
        %1615 = vmatpush1.msra.mxu0 0.0
        %1616 = vmatprep.subr.mxu0 0.0
        %1617 = vmatpush1.msra.mxu0 0.0
        %1618 = vmatprep.subr.mxu0 0.0
        %1619 = vmatpush1.msra.mxu0 0.0
        %1620 = vmatprep.subr.mxu0 0.0
        %1621 = vmatpush1.msra.mxu0 0.0
        %1622 = vmatprep.subr.mxu0 0.0
        %1623 = vmatpush1.msra.mxu0 0.0
        %1624 = vmatprep.subr.mxu0 0.0
        %1625 = vmatpush1.msra.mxu0 0.0
        %1626 = vmatprep.subr.mxu0 0.0
        %1627 = vmatpush1.msra.mxu0 0.0
        %1628 = vmatprep.subr.mxu0 0.0
        %1629 = vmatpush1.msra.mxu0 0.0
        %1630 = vmatprep.subr.mxu0 0.0
        %1631 = vmatpush1.msra.mxu0 0.0
        %1632 = vmatprep.subr.mxu0 0.0
        %1633 = vmatpush1.msra.mxu0 0.0
        %1634 = vmatprep.subr.mxu0 0.0
        %1635 = vmatpush1.msra.mxu0 0.0
        %1636 = vmatprep.subr.mxu0 0.0
        %1637 = vmatpush1.msra.mxu0 0.0
        %1638 = vmatprep.subr.mxu0 0.0
        %1639 = vmatpush1.msra.mxu0 0.0
        %1640 = vmatprep.subr.mxu0 0.0
        %1641 = vmatpush1.msra.mxu0 %v1605
        %1642 = vmatprep.subr.mxu0 0.0
        %1643 = vmatpush2.msra.mxu0 0.0
        %1644 = vmatprep.subr.mxu0 0.0
        %1645 = vmatpush2.msra.mxu0 0.0
        %1646 = vmatprep.subr.mxu0 0.0
        %1647 = vmatpush2.msra.mxu0 0.0
        %1648 = vmatprep.subr.mxu0 0.0
        %1649 = vmatpush2.msra.mxu0 0.0
        %1650 = vmatprep.subr.mxu0 0.0
        %1651 = vmatpush2.msra.mxu0 0.0
        %1652 = vmatprep.subr.mxu0 0.0
        %1653 = vmatpush2.msra.mxu0 0.0
        %1654 = vmatprep.subr.mxu0 0.0
        %1655 = vmatpush2.msra.mxu0 0.0
        %1656 = vmatprep.subr.mxu0 0.0
        %1657 = vmatpush2.msra.mxu0 0.0
        %1658 = vmatprep.subr.mxu0 0.0
        %1659 = vmatpush2.msra.mxu0 0.0
        %1660 = vmatprep.subr.mxu0 0.0
        %1661 = vmatpush2.msra.mxu0 0.0
        %1662 = vmatprep.subr.mxu0 0.0
        %1663 = vmatpush2.msra.mxu0 0.0
        %1664 = vmatprep.subr.mxu0 0.0
        %1665 = vmatpush2.msra.mxu0 0.0
        %1666 = vmatprep.subr.mxu0 0.0
        %1667 = vmatpush2.msra.mxu0 0.0
        %1668 = vmatprep.subr.mxu0 0.0
        %1669 = vmatpush2.msra.mxu0 0.0
        %1670 = vmatprep.subr.mxu0 0.0
        %1671 = vmatpush2.msra.mxu0 0.0
        %1672 = vmatprep.subr.mxu0 0.0
        %1673 = vmatpush2.msra.mxu0 0.0
        %1674 = vmatprep.mubr.f32.mxu0 0.0
        %1675 = vmatmul.mubr.f32.gmra.mxu0 %v1608
        %v1676 = vpop.f32.mrf.mxu0
        %v1677 = vadd.f32 0.0, %v1676
        %v1678 = vpop.f32.mrf.mxu0
        %1679 = vdwg.mxu0
        %1680 = vrot.lane.b32.xlu0 %v1263, 96
        %v1681 = vpop.permute.xlu0 %1680
        %1682 = vrot.lane.b32.xlu0 %v1349, 96
        %v1683 = vpop.permute.xlu0 %1682
        %v1684 = vsel %vm645, %v1681, 0
        %v1686 = vsel %vm645, %v1683, 0
        %1688 = vmatprep.subr.mxu0 0.0
        %1689 = vmatpush1.xpose.msra.mxu0 0.0
        %1690 = vmatprep.subr.mxu0 0.0
        %1691 = vmatpush1.xpose.msra.mxu0 0.0
        %1692 = vmatprep.subr.mxu0 0.0
        %1693 = vmatpush1.xpose.msra.mxu0 0.0
        %1694 = vmatprep.subr.mxu0 0.0
        %1695 = vmatpush1.xpose.msra.mxu0 0.0
        %1696 = vmatprep.subr.mxu0 0.0
        %1697 = vmatpush1.xpose.msra.mxu0 0.0
        %1698 = vmatprep.subr.mxu0 0.0
        %1699 = vmatpush1.xpose.msra.mxu0 0.0
        %1700 = vmatprep.subr.mxu0 0.0
        %1701 = vmatpush1.xpose.msra.mxu0 0.0
        %1702 = vmatprep.subr.mxu0 0.0
        %1703 = vmatpush1.xpose.msra.mxu0 0.0
        %1704 = vmatprep.subr.mxu0 0.0
        %1705 = vmatpush1.xpose.msra.mxu0 0.0
        %1706 = vmatprep.subr.mxu0 0.0
        %1707 = vmatpush1.xpose.msra.mxu0 0.0
        %1708 = vmatprep.subr.mxu0 0.0
        %1709 = vmatpush1.xpose.msra.mxu0 0.0
        %1710 = vmatprep.subr.mxu0 0.0
        %1711 = vmatpush1.xpose.msra.mxu0 0.0
        %1712 = vmatprep.subr.mxu0 0.0
        %1713 = vmatpush1.xpose.msra.mxu0 0.0
        %1714 = vmatprep.subr.mxu0 0.0
        %1715 = vmatpush1.xpose.msra.mxu0 0.0
        %1716 = vmatprep.subr.mxu0 0.0
        %1717 = vmatpush1.xpose.msra.mxu0 0.0
        %1718 = vmatprep.subr.mxu0 0.0
        %1719 = vmatpush1.xpose.msra.mxu0 %v1686
        %1720 = vmatprep.subr.mxu0 0.0
        %1721 = vmatpush2.xpose.msra.mxu0 0.0
        %1722 = vmatprep.subr.mxu0 0.0
        %1723 = vmatpush2.xpose.msra.mxu0 0.0
        %1724 = vmatprep.subr.mxu0 0.0
        %1725 = vmatpush2.xpose.msra.mxu0 0.0
        %1726 = vmatprep.subr.mxu0 0.0
        %1727 = vmatpush2.xpose.msra.mxu0 0.0
        %1728 = vmatprep.subr.mxu0 0.0
        %1729 = vmatpush2.xpose.msra.mxu0 0.0
        %1730 = vmatprep.subr.mxu0 0.0
        %1731 = vmatpush2.xpose.msra.mxu0 0.0
        %1732 = vmatprep.subr.mxu0 0.0
        %1733 = vmatpush2.xpose.msra.mxu0 0.0
        %1734 = vmatprep.subr.mxu0 0.0
        %1735 = vmatpush2.xpose.msra.mxu0 0.0
        %1736 = vmatprep.subr.mxu0 0.0
        %1737 = vmatpush2.xpose.msra.mxu0 0.0
        %1738 = vmatprep.subr.mxu0 0.0
        %1739 = vmatpush2.xpose.msra.mxu0 0.0
        %1740 = vmatprep.subr.mxu0 0.0
        %1741 = vmatpush2.xpose.msra.mxu0 0.0
        %1742 = vmatprep.subr.mxu0 0.0
        %1743 = vmatpush2.xpose.msra.mxu0 0.0
        %1744 = vmatprep.subr.mxu0 0.0
        %1745 = vmatpush2.xpose.msra.mxu0 0.0
        %1746 = vmatprep.subr.mxu0 0.0
        %1747 = vmatpush2.xpose.msra.mxu0 0.0
        %1748 = vmatprep.subr.mxu0 0.0
        %1749 = vmatpush2.xpose.msra.mxu0 0.0
        %1750 = vmatprep.subr.mxu0 0.0
        %1751 = vmatpush2.xpose.msra.mxu0 0.0
        %1752 = vmatprep.mubr.f32.mxu0 0.0
        %1753 = vmatmul.mubr.f32.gmra.mxu0 %v1684
        %v1754 = vpop.f32.mrf.mxu0
        %v1755 = vadd.f32 0.0, %v1754
        %v1756 = vpop.f32.mrf.mxu0
        %1757 = vdwg.mxu0
        %v1758 = vsel %vm721, %v1755, -inf
        %1759 = vmax.xlane.f32.xlu0 %v1758
        %v1760 = vpop.xlane.xlu0 %1759
        %v1761 = vsub.f32 %v1755, %v1760
        %v1762 = vmul.f32 %v1761, 1.442695
        %v1763 = vpow.pop %v1762
        %v1764 = vsel %vm721, %v1763, 0.0
        %1765 = vadd.xlane.f32.xlu0 %v1764
        %v1766 = vpop.xlane.xlu0 %1765
        %v1767 = vrcp.pop %v1766
        %v1768 = vmul.f32 %v1763, %v1767
        %1769 = vrot.lane.b32.xlu0 %v1349, 48
        %v1770 = vpop.permute.xlu0 %1769
        %v1773 = vsel %vm721, %v1768, 0
        %1775 = vmatprep.subr.mxu0 0.0
        %1776 = vmatpush1.msra.mxu0 0.0
        %1777 = vmatprep.subr.mxu0 0.0
        %1778 = vmatpush1.msra.mxu0 0.0
        %1779 = vmatprep.subr.mxu0 0.0
        %1780 = vmatpush1.msra.mxu0 0.0
        %1781 = vmatprep.subr.mxu0 0.0
        %1782 = vmatpush1.msra.mxu0 0.0
        %1783 = vmatprep.subr.mxu0 0.0
        %1784 = vmatpush1.msra.mxu0 0.0
        %1785 = vmatprep.subr.mxu0 0.0
        %1786 = vmatpush1.msra.mxu0 0.0
        %1787 = vmatprep.subr.mxu0 0.0
        %1788 = vmatpush1.msra.mxu0 0.0
        %1789 = vmatprep.subr.mxu0 0.0
        %1790 = vmatpush1.msra.mxu0 0.0
        %1791 = vmatprep.subr.mxu0 0.0
        %1792 = vmatpush1.msra.mxu0 0.0
        %1793 = vmatprep.subr.mxu0 0.0
        %1794 = vmatpush1.msra.mxu0 0.0
        %1795 = vmatprep.subr.mxu0 0.0
        %1796 = vmatpush1.msra.mxu0 0.0
        %1797 = vmatprep.subr.mxu0 0.0
        %1798 = vmatpush1.msra.mxu0 0.0
        %1799 = vmatprep.subr.mxu0 0.0
        %1800 = vmatpush1.msra.mxu0 0.0
        %1801 = vmatprep.subr.mxu0 0.0
        %1802 = vmatpush1.msra.mxu0 0.0
        %1803 = vmatprep.subr.mxu0 0.0
        %1804 = vmatpush1.msra.mxu0 0.0
        %1805 = vmatprep.subr.mxu0 0.0
        %1806 = vmatpush1.msra.mxu0 %v1770
        %1807 = vmatprep.subr.mxu0 0.0
        %1808 = vmatpush2.msra.mxu0 0.0
        %1809 = vmatprep.subr.mxu0 0.0
        %1810 = vmatpush2.msra.mxu0 0.0
        %1811 = vmatprep.subr.mxu0 0.0
        %1812 = vmatpush2.msra.mxu0 0.0
        %1813 = vmatprep.subr.mxu0 0.0
        %1814 = vmatpush2.msra.mxu0 0.0
        %1815 = vmatprep.subr.mxu0 0.0
        %1816 = vmatpush2.msra.mxu0 0.0
        %1817 = vmatprep.subr.mxu0 0.0
        %1818 = vmatpush2.msra.mxu0 0.0
        %1819 = vmatprep.subr.mxu0 0.0
        %1820 = vmatpush2.msra.mxu0 0.0
        %1821 = vmatprep.subr.mxu0 0.0
        %1822 = vmatpush2.msra.mxu0 0.0
        %1823 = vmatprep.subr.mxu0 0.0
        %1824 = vmatpush2.msra.mxu0 0.0
        %1825 = vmatprep.subr.mxu0 0.0
        %1826 = vmatpush2.msra.mxu0 0.0
        %1827 = vmatprep.subr.mxu0 0.0
        %1828 = vmatpush2.msra.mxu0 0.0
        %1829 = vmatprep.subr.mxu0 0.0
        %1830 = vmatpush2.msra.mxu0 0.0
        %1831 = vmatprep.subr.mxu0 0.0
        %1832 = vmatpush2.msra.mxu0 0.0
        %1833 = vmatprep.subr.mxu0 0.0
        %1834 = vmatpush2.msra.mxu0 0.0
        %1835 = vmatprep.subr.mxu0 0.0
        %1836 = vmatpush2.msra.mxu0 0.0
        %1837 = vmatprep.subr.mxu0 0.0
        %1838 = vmatpush2.msra.mxu0 0.0
        %1839 = vmatprep.mubr.f32.mxu0 0.0
        %1840 = vmatmul.mubr.f32.gmra.mxu0 %v1773
        %v1841 = vpop.f32.mrf.mxu0
        %v1842 = vadd.f32 0.0, %v1841
        %v1843 = vpop.f32.mrf.mxu0
        %1844 = vdwg.mxu0
        %1846 = vrot.lane.b32.xlu0 %v1677, 16
        %v1847 = vpop.permute.xlu0 %1846
        %1850 = vrot.lane.b32.xlu0 %v1842, 32
        %v1851 = vpop.permute.xlu0 %1850
        %v1853 = vsel %vm645, %v1512, %v1847
        %v1854 = vsel %vm1147, %v1853, %v1851
        %v1855 = vadd.f32 %v1854, %v1179
        %v1856 = vsel %vm567, %v1855, 0.0
        %1857 = vadd.xlane.f32.xlu0 %v1856
        %v1858 = vpop.xlane.xlu0 %1857
        %v1859 = vmul.f32 %v1858, %v1153
        %v1860 = vmul.f32 %v1855, %v1855
        %v1861 = vsel %vm567, %v1860, 0.0
        %1862 = vadd.xlane.f32.xlu0 %v1861
        %v1863 = vpop.xlane.xlu0 %1862
        %v1864 = vmul.f32 %v1863, %v1153
        %v1865 = vmul.f32 %v1859, %v1859
        %v1866 = vsub.f32 %v1864, %v1865
        %v1867 = vsub.f32 %v1855, %v1859
        %v1868 = vadd.f32 %v1866, 1e-05
        %v1869 = vrsqrt.pop %v1868
        %v1870 = vmul.f32 %v1867, %v1869
        %v1871 = vmul.f32 %v1870, %v1170
        %v1872 = vadd.f32 %v1871, %v1177
        %v1873 = vld [vmem:[%s10] sm:$0xff]
        %v1874 = vld [vmem:[%s10 + $0x8] sm:$0xff]
        %v1875 = vld [vmem:[%s10 + $0x10] sm:$0xff]
        %v1876 = vld [vmem:[%s10 + $0x18] sm:$0xff]
        %v1877 = vld [vmem:[%s10 + $0x20] sm:$0xff]
        %v1878 = vld [vmem:[%s10 + $0x28] sm:$0xff]
        %v1879 = vld [vmem:[%s10 + $0x30] sm:$0xff]
        %v1880 = vld [vmem:[%s10 + $0x38] sm:$0xff]
        %v1881 = vld [vmem:[%s10 + $0x40] sm:$0xff]
        %v1882 = vld [vmem:[%s10 + $0x48] sm:$0xff]
        %v1883 = vld [vmem:[%s10 + $0x50] sm:$0xff]
        %v1884 = vld [vmem:[%s10 + $0x58] sm:$0xff]
        %v1885 = vld [vmem:[%s10 + $0x60] sm:$0xff]
        %v1886 = vld [vmem:[%s10 + $0x68] sm:$0xff]
        %v1887 = vld [vmem:[%s10 + $0x70] sm:$0xff]
        %v1888 = vld [vmem:[%s10 + $0x78] sm:$0xff]
        %v1889 = vld [vmem:[%s10 + $0x80] sm:$0xff]
        %v1890 = vld [vmem:[%s10 + $0x88] sm:$0xff]
        %v1891 = vld [vmem:[%s10 + $0x90] sm:$0xff]
        %v1892 = vld [vmem:[%s10 + $0x98] sm:$0xff]
        %v1893 = vld [vmem:[%s10 + $0xa0] sm:$0xff]
        %v1894 = vld [vmem:[%s10 + $0xa8] sm:$0xff]
        %v1895 = vld [vmem:[%s10 + $0xb0] sm:$0xff]
        %v1896 = vld [vmem:[%s10 + $0xb8] sm:$0xff]
        %v1897 = vld [vmem:[%s10 + $0xc0] sm:$0xff]
        %v1898 = vld [vmem:[%s10 + $0xc8] sm:$0xff]
        %v1899 = vld [vmem:[%s10 + $0xd0] sm:$0xff]
        %v1900 = vld [vmem:[%s10 + $0xd8] sm:$0xff]
        %v1901 = vld [vmem:[%s10 + $0xe0] sm:$0xff]
        %v1902 = vld [vmem:[%s10 + $0xe8] sm:$0xff]
        %v1903 = vld [vmem:[%s10 + $0xf0] sm:$0xff]
        %v1904 = vld [vmem:[%s10 + $0xf8] sm:$0xff]
        %v1905 = vld [vmem:[%s10 + $0x100] sm:$0xff]
        %v1906 = vld [vmem:[%s10 + $0x108] sm:$0xff]
        %v1907 = vld [vmem:[%s10 + $0x110] sm:$0xff]
        %v1908 = vld [vmem:[%s10 + $0x118] sm:$0xff]
        %v1909 = vld [vmem:[%s10 + $0x120] sm:$0xff]
        %v1910 = vld [vmem:[%s10 + $0x128] sm:$0xff]
        %v1911 = vld [vmem:[%s10 + $0x130] sm:$0xff]
        %v1912 = vld [vmem:[%s10 + $0x138] sm:$0xff]
        %v1913 = vld [vmem:[%s10 + $0x140] sm:$0xff]
        %v1914 = vld [vmem:[%s10 + $0x148] sm:$0xff]
        %v1915 = vld [vmem:[%s10 + $0x150] sm:$0xff]
        %v1916 = vld [vmem:[%s10 + $0x158] sm:$0xff]
        %v1917 = vld [vmem:[%s10 + $0x160] sm:$0xff]
        %v1918 = vld [vmem:[%s10 + $0x168] sm:$0xff]
        %v1919 = vld [vmem:[%s10 + $0x170] sm:$0xff]
        %v1920 = vld [vmem:[%s10 + $0x178] sm:$0xff]
        %v1921 = vld [vmem:[%s11] sm:$0xff]
        %v1923 = vlaneseq
        %v1924 = vshrl.u32 %v1923, 7
        %v1925 = vsub.s32 0, %v1924
        %v1926 = vrot.slane %v1921, %v1925
        %v1927 = vlaneseq
        %v1928 = vshrl.u32 %v1927, 7
        %v1929 = vsub.s32 1, %v1928
        %v1930 = vrot.slane %v1921, %v1929
        %v1931 = vlaneseq
        %v1932 = vshrl.u32 %v1931, 7
        %v1933 = vsub.s32 2, %v1932
        %v1934 = vrot.slane %v1921, %v1933
        %v1935 = vlaneseq
        %v1936 = vshrl.u32 %v1935, 7
        %v1937 = vsub.s32 3, %v1936
        %v1938 = vrot.slane %v1921, %v1937
        %v1939 = vlaneseq
        %v1940 = vshrl.u32 %v1939, 7
        %v1941 = vsub.s32 4, %v1940
        %v1942 = vrot.slane %v1921, %v1941
        %v1943 = vlaneseq
        %v1944 = vshrl.u32 %v1943, 7
        %v1945 = vsub.s32 5, %v1944
        %v1946 = vrot.slane %v1921, %v1945
        %v1947 = vlaneseq
        %v1948 = vshrl.u32 %v1947, 7
        %v1949 = vsub.s32 6, %v1948
        %v1950 = vrot.slane %v1921, %v1949
        %v1951 = vlaneseq
        %v1952 = vshrl.u32 %v1951, 7
        %v1953 = vsub.s32 7, %v1952
        %v1954 = vrot.slane %v1921, %v1953
        %v1964 = vsel %vm567, %v1872, 0
        %1966 = vmatprep.subr.mxu0 0.0
        %1967 = vmatpush1.msra.mxu0 0.0
        %1968 = vmatprep.subr.mxu0 0.0
        %1969 = vmatpush1.msra.mxu0 0.0
        %1970 = vmatprep.subr.mxu0 0.0
        %1971 = vmatpush1.msra.mxu0 0.0
        %1972 = vmatprep.subr.mxu0 0.0
        %1973 = vmatpush1.msra.mxu0 0.0
        %1974 = vmatprep.subr.mxu0 0.0
        %1975 = vmatpush1.msra.mxu0 0.0
        %1976 = vmatprep.subr.mxu0 0.0
        %1977 = vmatpush1.msra.mxu0 0.0
        %1978 = vmatprep.subr.mxu0 0.0
        %1979 = vmatpush1.msra.mxu0 0.0
        %1980 = vmatprep.subr.mxu0 0.0
        %1981 = vmatpush1.msra.mxu0 0.0
        %1982 = vmatprep.subr.mxu0 0.0
        %1983 = vmatpush1.msra.mxu0 0.0
        %1984 = vmatprep.subr.mxu0 0.0
        %1985 = vmatpush1.msra.mxu0 0.0
        %1986 = vmatprep.subr.mxu0 %v1914
        %1987 = vmatpush1.msra.mxu0 %v1913
        %1988 = vmatprep.subr.mxu0 %v1906
        %1989 = vmatpush1.msra.mxu0 %v1905
        %1990 = vmatprep.subr.mxu0 %v1898
        %1991 = vmatpush1.msra.mxu0 %v1897
        %1992 = vmatprep.subr.mxu0 %v1890
        %1993 = vmatpush1.msra.mxu0 %v1889
        %1994 = vmatprep.subr.mxu0 %v1882
        %1995 = vmatpush1.msra.mxu0 %v1881
        %1996 = vmatprep.subr.mxu0 %v1874
        %1997 = vmatpush1.msra.mxu0 %v1873
        %1998 = vmatprep.subr.mxu0 0.0
        %1999 = vmatpush2.msra.mxu0 0.0
        %2000 = vmatprep.subr.mxu0 0.0
        %2001 = vmatpush2.msra.mxu0 0.0
        %2002 = vmatprep.subr.mxu0 0.0
        %2003 = vmatpush2.msra.mxu0 0.0
        %2004 = vmatprep.subr.mxu0 0.0
        %2005 = vmatpush2.msra.mxu0 0.0
        %2006 = vmatprep.subr.mxu0 0.0
        %2007 = vmatpush2.msra.mxu0 0.0
        %2008 = vmatprep.subr.mxu0 0.0
        %2009 = vmatpush2.msra.mxu0 0.0
        %2010 = vmatprep.subr.mxu0 0.0
        %2011 = vmatpush2.msra.mxu0 0.0
        %2012 = vmatprep.subr.mxu0 0.0
        %2013 = vmatpush2.msra.mxu0 0.0
        %2014 = vmatprep.subr.mxu0 0.0
        %2015 = vmatpush2.msra.mxu0 0.0
        %2016 = vmatprep.subr.mxu0 0.0
        %2017 = vmatpush2.msra.mxu0 0.0
        %2018 = vmatprep.subr.mxu0 0.0
        %2019 = vmatpush2.msra.mxu0 0.0
        %2020 = vmatprep.subr.mxu0 0.0
        %2021 = vmatpush2.msra.mxu0 0.0
        %2022 = vmatprep.subr.mxu0 0.0
        %2023 = vmatpush2.msra.mxu0 0.0
        %2024 = vmatprep.subr.mxu0 0.0
        %2025 = vmatpush2.msra.mxu0 0.0
        %2026 = vmatprep.subr.mxu0 0.0
        %2027 = vmatpush2.msra.mxu0 0.0
        %2028 = vmatprep.subr.mxu0 0.0
        %2029 = vmatpush2.msra.mxu0 0.0
        %2030 = vmatprep.mubr.f32.mxu0 0.0
        %2031 = vmatmul.mubr.f32.gmra.mxu0 %v1964
        %v2032 = vpop.f32.mrf.mxu0
        %v2033 = vadd.f32 %v1926, %v2032
        %v2034 = vpop.f32.mrf.mxu0
        %v2035 = vadd.f32 %v1930, %v2034
        %2036 = vdwg.mxu0
        %2037 = vmatprep.subr.mxu0 0.0
        %2038 = vmatpush1.msra.mxu0 0.0
        %2039 = vmatprep.subr.mxu0 0.0
        %2040 = vmatpush1.msra.mxu0 0.0
        %2041 = vmatprep.subr.mxu0 0.0
        %2042 = vmatpush1.msra.mxu0 0.0
        %2043 = vmatprep.subr.mxu0 0.0
        %2044 = vmatpush1.msra.mxu0 0.0
        %2045 = vmatprep.subr.mxu0 0.0
        %2046 = vmatpush1.msra.mxu0 0.0
        %2047 = vmatprep.subr.mxu0 0.0
        %2048 = vmatpush1.msra.mxu0 0.0
        %2049 = vmatprep.subr.mxu0 0.0
        %2050 = vmatpush1.msra.mxu0 0.0
        %2051 = vmatprep.subr.mxu0 0.0
        %2052 = vmatpush1.msra.mxu0 0.0
        %2053 = vmatprep.subr.mxu0 0.0
        %2054 = vmatpush1.msra.mxu0 0.0
        %2055 = vmatprep.subr.mxu0 0.0
        %2056 = vmatpush1.msra.mxu0 0.0
        %2057 = vmatprep.subr.mxu0 %v1916
        %2058 = vmatpush1.msra.mxu0 %v1915
        %2059 = vmatprep.subr.mxu0 %v1908
        %2060 = vmatpush1.msra.mxu0 %v1907
        %2061 = vmatprep.subr.mxu0 %v1900
        %2062 = vmatpush1.msra.mxu0 %v1899
        %2063 = vmatprep.subr.mxu0 %v1892
        %2064 = vmatpush1.msra.mxu0 %v1891
        %2065 = vmatprep.subr.mxu0 %v1884
        %2066 = vmatpush1.msra.mxu0 %v1883
        %2067 = vmatprep.subr.mxu0 %v1876
        %2068 = vmatpush1.msra.mxu0 %v1875
        %2069 = vmatprep.subr.mxu0 0.0
        %2070 = vmatpush2.msra.mxu0 0.0
        %2071 = vmatprep.subr.mxu0 0.0
        %2072 = vmatpush2.msra.mxu0 0.0
        %2073 = vmatprep.subr.mxu0 0.0
        %2074 = vmatpush2.msra.mxu0 0.0
        %2075 = vmatprep.subr.mxu0 0.0
        %2076 = vmatpush2.msra.mxu0 0.0
        %2077 = vmatprep.subr.mxu0 0.0
        %2078 = vmatpush2.msra.mxu0 0.0
        %2079 = vmatprep.subr.mxu0 0.0
        %2080 = vmatpush2.msra.mxu0 0.0
        %2081 = vmatprep.subr.mxu0 0.0
        %2082 = vmatpush2.msra.mxu0 0.0
        %2083 = vmatprep.subr.mxu0 0.0
        %2084 = vmatpush2.msra.mxu0 0.0
        %2085 = vmatprep.subr.mxu0 0.0
        %2086 = vmatpush2.msra.mxu0 0.0
        %2087 = vmatprep.subr.mxu0 0.0
        %2088 = vmatpush2.msra.mxu0 0.0
        %2089 = vmatprep.subr.mxu0 0.0
        %2090 = vmatpush2.msra.mxu0 0.0
        %2091 = vmatprep.subr.mxu0 0.0
        %2092 = vmatpush2.msra.mxu0 0.0
        %2093 = vmatprep.subr.mxu0 0.0
        %2094 = vmatpush2.msra.mxu0 0.0
        %2095 = vmatprep.subr.mxu0 0.0
        %2096 = vmatpush2.msra.mxu0 0.0
        %2097 = vmatprep.subr.mxu0 0.0
        %2098 = vmatpush2.msra.mxu0 0.0
        %2099 = vmatprep.subr.mxu0 0.0
        %2100 = vmatpush2.msra.mxu0 0.0
        %2101 = vmatprep.mubr.f32.mxu0 0.0
        %2102 = vmatmul.mubr.f32.gmra.mxu0 %v1964
        %v2103 = vpop.f32.mrf.mxu0
        %v2104 = vadd.f32 %v1934, %v2103
        %v2105 = vpop.f32.mrf.mxu0
        %v2106 = vadd.f32 %v1938, %v2105
        %2107 = vdwg.mxu0
        %2108 = vmatprep.subr.mxu0 0.0
        %2109 = vmatpush1.msra.mxu0 0.0
        %2110 = vmatprep.subr.mxu0 0.0
        %2111 = vmatpush1.msra.mxu0 0.0
        %2112 = vmatprep.subr.mxu0 0.0
        %2113 = vmatpush1.msra.mxu0 0.0
        %2114 = vmatprep.subr.mxu0 0.0
        %2115 = vmatpush1.msra.mxu0 0.0
        %2116 = vmatprep.subr.mxu0 0.0
        %2117 = vmatpush1.msra.mxu0 0.0
        %2118 = vmatprep.subr.mxu0 0.0
        %2119 = vmatpush1.msra.mxu0 0.0
        %2120 = vmatprep.subr.mxu0 0.0
        %2121 = vmatpush1.msra.mxu0 0.0
        %2122 = vmatprep.subr.mxu0 0.0
        %2123 = vmatpush1.msra.mxu0 0.0
        %2124 = vmatprep.subr.mxu0 0.0
        %2125 = vmatpush1.msra.mxu0 0.0
        %2126 = vmatprep.subr.mxu0 0.0
        %2127 = vmatpush1.msra.mxu0 0.0
        %2128 = vmatprep.subr.mxu0 %v1918
        %2129 = vmatpush1.msra.mxu0 %v1917
        %2130 = vmatprep.subr.mxu0 %v1910
        %2131 = vmatpush1.msra.mxu0 %v1909
        %2132 = vmatprep.subr.mxu0 %v1902
        %2133 = vmatpush1.msra.mxu0 %v1901
        %2134 = vmatprep.subr.mxu0 %v1894
        %2135 = vmatpush1.msra.mxu0 %v1893
        %2136 = vmatprep.subr.mxu0 %v1886
        %2137 = vmatpush1.msra.mxu0 %v1885
        %2138 = vmatprep.subr.mxu0 %v1878
        %2139 = vmatpush1.msra.mxu0 %v1877
        %2140 = vmatprep.subr.mxu0 0.0
        %2141 = vmatpush2.msra.mxu0 0.0
        %2142 = vmatprep.subr.mxu0 0.0
        %2143 = vmatpush2.msra.mxu0 0.0
        %2144 = vmatprep.subr.mxu0 0.0
        %2145 = vmatpush2.msra.mxu0 0.0
        %2146 = vmatprep.subr.mxu0 0.0
        %2147 = vmatpush2.msra.mxu0 0.0
        %2148 = vmatprep.subr.mxu0 0.0
        %2149 = vmatpush2.msra.mxu0 0.0
        %2150 = vmatprep.subr.mxu0 0.0
        %2151 = vmatpush2.msra.mxu0 0.0
        %2152 = vmatprep.subr.mxu0 0.0
        %2153 = vmatpush2.msra.mxu0 0.0
        %2154 = vmatprep.subr.mxu0 0.0
        %2155 = vmatpush2.msra.mxu0 0.0
        %2156 = vmatprep.subr.mxu0 0.0
        %2157 = vmatpush2.msra.mxu0 0.0
        %2158 = vmatprep.subr.mxu0 0.0
        %2159 = vmatpush2.msra.mxu0 0.0
        %2160 = vmatprep.subr.mxu0 0.0
        %2161 = vmatpush2.msra.mxu0 0.0
        %2162 = vmatprep.subr.mxu0 0.0
        %2163 = vmatpush2.msra.mxu0 0.0
        %2164 = vmatprep.subr.mxu0 0.0
        %2165 = vmatpush2.msra.mxu0 0.0
        %2166 = vmatprep.subr.mxu0 0.0
        %2167 = vmatpush2.msra.mxu0 0.0
        %2168 = vmatprep.subr.mxu0 0.0
        %2169 = vmatpush2.msra.mxu0 0.0
        %2170 = vmatprep.subr.mxu0 0.0
        %2171 = vmatpush2.msra.mxu0 0.0
        %2172 = vmatprep.mubr.f32.mxu0 0.0
        %2173 = vmatmul.mubr.f32.gmra.mxu0 %v1964
        %v2174 = vpop.f32.mrf.mxu0
        %v2175 = vadd.f32 %v1942, %v2174
        %v2176 = vpop.f32.mrf.mxu0
        %v2177 = vadd.f32 %v1946, %v2176
        %2178 = vdwg.mxu0
        %2179 = vmatprep.subr.mxu0 0.0
        %2180 = vmatpush1.msra.mxu0 0.0
        %2181 = vmatprep.subr.mxu0 0.0
        %2182 = vmatpush1.msra.mxu0 0.0
        %2183 = vmatprep.subr.mxu0 0.0
        %2184 = vmatpush1.msra.mxu0 0.0
        %2185 = vmatprep.subr.mxu0 0.0
        %2186 = vmatpush1.msra.mxu0 0.0
        %2187 = vmatprep.subr.mxu0 0.0
        %2188 = vmatpush1.msra.mxu0 0.0
        %2189 = vmatprep.subr.mxu0 0.0
        %2190 = vmatpush1.msra.mxu0 0.0
        %2191 = vmatprep.subr.mxu0 0.0
        %2192 = vmatpush1.msra.mxu0 0.0
        %2193 = vmatprep.subr.mxu0 0.0
        %2194 = vmatpush1.msra.mxu0 0.0
        %2195 = vmatprep.subr.mxu0 0.0
        %2196 = vmatpush1.msra.mxu0 0.0
        %2197 = vmatprep.subr.mxu0 0.0
        %2198 = vmatpush1.msra.mxu0 0.0
        %2199 = vmatprep.subr.mxu0 %v1920
        %2200 = vmatpush1.msra.mxu0 %v1919
        %2201 = vmatprep.subr.mxu0 %v1912
        %2202 = vmatpush1.msra.mxu0 %v1911
        %2203 = vmatprep.subr.mxu0 %v1904
        %2204 = vmatpush1.msra.mxu0 %v1903
        %2205 = vmatprep.subr.mxu0 %v1896
        %2206 = vmatpush1.msra.mxu0 %v1895
        %2207 = vmatprep.subr.mxu0 %v1888
        %2208 = vmatpush1.msra.mxu0 %v1887
        %2209 = vmatprep.subr.mxu0 %v1880
        %2210 = vmatpush1.msra.mxu0 %v1879
        %2211 = vmatprep.subr.mxu0 0.0
        %2212 = vmatpush2.msra.mxu0 0.0
        %2213 = vmatprep.subr.mxu0 0.0
        %2214 = vmatpush2.msra.mxu0 0.0
        %2215 = vmatprep.subr.mxu0 0.0
        %2216 = vmatpush2.msra.mxu0 0.0
        %2217 = vmatprep.subr.mxu0 0.0
        %2218 = vmatpush2.msra.mxu0 0.0
        %2219 = vmatprep.subr.mxu0 0.0
        %2220 = vmatpush2.msra.mxu0 0.0
        %2221 = vmatprep.subr.mxu0 0.0
        %2222 = vmatpush2.msra.mxu0 0.0
        %2223 = vmatprep.subr.mxu0 0.0
        %2224 = vmatpush2.msra.mxu0 0.0
        %2225 = vmatprep.subr.mxu0 0.0
        %2226 = vmatpush2.msra.mxu0 0.0
        %2227 = vmatprep.subr.mxu0 0.0
        %2228 = vmatpush2.msra.mxu0 0.0
        %2229 = vmatprep.subr.mxu0 0.0
        %2230 = vmatpush2.msra.mxu0 0.0
        %2231 = vmatprep.subr.mxu0 0.0
        %2232 = vmatpush2.msra.mxu0 0.0
        %2233 = vmatprep.subr.mxu0 0.0
        %2234 = vmatpush2.msra.mxu0 0.0
        %2235 = vmatprep.subr.mxu0 0.0
        %2236 = vmatpush2.msra.mxu0 0.0
        %2237 = vmatprep.subr.mxu0 0.0
        %2238 = vmatpush2.msra.mxu0 0.0
        %2239 = vmatprep.subr.mxu0 0.0
        %2240 = vmatpush2.msra.mxu0 0.0
        %2241 = vmatprep.subr.mxu0 0.0
        %2242 = vmatpush2.msra.mxu0 0.0
        %2243 = vmatprep.mubr.f32.mxu0 0.0
        %2244 = vmatmul.mubr.f32.gmra.mxu0 %v1964
        %v2245 = vpop.f32.mrf.mxu0
        %v2246 = vadd.f32 %v1950, %v2245
        %v2247 = vpop.f32.mrf.mxu0
        %v2248 = vadd.f32 %v1954, %v2247
        %2249 = vdwg.mxu0
        %v2250 = vmul.f32 %v2033, 0.5
        %v2251 = vmul.f32 %v2035, 0.5
        %v2252 = vmul.f32 %v2104, 0.5
        %v2253 = vmul.f32 %v2106, 0.5
        %v2254 = vmul.f32 %v2175, 0.5
        %v2255 = vmul.f32 %v2177, 0.5
        %v2256 = vmul.f32 %v2246, 0.5
        %v2257 = vmul.f32 %v2248, 0.5
        %v2258 = vmul.f32 %v2033, 0.70710677
        %v2259 = vmul.f32 %v2035, 0.70710677
        %v2260 = vmul.f32 %v2104, 0.70710677
        %v2261 = vmul.f32 %v2106, 0.70710677
        %v2262 = vmul.f32 %v2175, 0.70710677
        %v2263 = vmul.f32 %v2177, 0.70710677
        %v2264 = vmul.f32 %v2246, 0.70710677
        %v2265 = vmul.f32 %v2248, 0.70710677
        %v2266 = verf.f32.pop %v2258
        %v2267 = verf.f32.pop %v2259
        %v2268 = verf.f32.pop %v2260
        %v2269 = verf.f32.pop %v2261
        %v2270 = verf.f32.pop %v2262
        %v2271 = verf.f32.pop %v2263
        %v2272 = verf.f32.pop %v2264
        %v2273 = verf.f32.pop %v2265
        %v2274 = vadd.f32 %v2266, 1.0
        %v2275 = vadd.f32 %v2267, 1.0
        %v2276 = vadd.f32 %v2268, 1.0
        %v2277 = vadd.f32 %v2269, 1.0
        %v2278 = vadd.f32 %v2270, 1.0
        %v2279 = vadd.f32 %v2271, 1.0
        %v2280 = vadd.f32 %v2272, 1.0
        %v2281 = vadd.f32 %v2273, 1.0
        %v2282 = vmul.f32 %v2250, %v2274
        %v2283 = vmul.f32 %v2251, %v2275
        %v2284 = vmul.f32 %v2252, %v2276
        %v2285 = vmul.f32 %v2253, %v2277
        %v2286 = vmul.f32 %v2254, %v2278
        %v2287 = vmul.f32 %v2255, %v2279
        %v2288 = vmul.f32 %v2256, %v2280
        %v2289 = vmul.f32 %v2257, %v2281
        %v2290 = vld [vmem:[%s12] sm:$0xff]
        %v2291 = vld [vmem:[%s12 + $0x8] sm:$0xff]
        %v2292 = vld [vmem:[%s12 + $0x10] sm:$0xff]
        %v2293 = vld [vmem:[%s12 + $0x18] sm:$0xff]
        %v2294 = vld [vmem:[%s12 + $0x20] sm:$0xff]
        %v2295 = vld [vmem:[%s12 + $0x28] sm:$0xff]
        %v2296 = vld [vmem:[%s12 + $0x30] sm:$0xff]
        %v2297 = vld [vmem:[%s12 + $0x38] sm:$0xff]
        %v2298 = vld [vmem:[%s12 + $0x40] sm:$0xff]
        %v2299 = vld [vmem:[%s12 + $0x48] sm:$0xff]
        %v2300 = vld [vmem:[%s12 + $0x50] sm:$0xff]
        %v2301 = vld [vmem:[%s12 + $0x58] sm:$0xff]
        %v2302 = vld [vmem:[%s12 + $0x60] sm:$0xff]
        %v2303 = vld [vmem:[%s12 + $0x68] sm:$0xff]
        %v2304 = vld [vmem:[%s12 + $0x70] sm:$0xff]
        %v2305 = vld [vmem:[%s12 + $0x78] sm:$0xff]
        %v2306 = vld [vmem:[%s12 + $0x80] sm:$0xff]
        %v2307 = vld [vmem:[%s12 + $0x88] sm:$0xff]
        %v2308 = vld [vmem:[%s12 + $0x90] sm:$0xff]
        %v2309 = vld [vmem:[%s12 + $0x98] sm:$0xff]
        %v2310 = vld [vmem:[%s12 + $0xa0] sm:$0xff]
        %v2311 = vld [vmem:[%s12 + $0xa8] sm:$0xff]
        %v2312 = vld [vmem:[%s12 + $0xb0] sm:$0xff]
        %v2313 = vld [vmem:[%s12 + $0xb8] sm:$0xff]
        %v2314 = vld [vmem:[%s12 + $0xc0] sm:$0xff]
        %v2315 = vld [vmem:[%s12 + $0xc8] sm:$0xff]
        %v2316 = vld [vmem:[%s12 + $0xd0] sm:$0xff]
        %v2317 = vld [vmem:[%s12 + $0xd8] sm:$0xff]
        %v2318 = vld [vmem:[%s12 + $0xe0] sm:$0xff]
        %v2319 = vld [vmem:[%s12 + $0xe8] sm:$0xff]
        %v2320 = vld [vmem:[%s12 + $0xf0] sm:$0xff]
        %v2321 = vld [vmem:[%s12 + $0xf8] sm:$0xff]
        %v2322 = vld [vmem:[%s12 + $0x100] sm:$0xff]
        %v2323 = vld [vmem:[%s12 + $0x108] sm:$0xff]
        %v2324 = vld [vmem:[%s12 + $0x110] sm:$0xff]
        %v2325 = vld [vmem:[%s12 + $0x118] sm:$0xff]
        %v2326 = vld [vmem:[%s12 + $0x120] sm:$0xff]
        %v2327 = vld [vmem:[%s12 + $0x128] sm:$0xff]
        %v2328 = vld [vmem:[%s12 + $0x130] sm:$0xff]
        %v2329 = vld [vmem:[%s12 + $0x138] sm:$0xff]
        %v2330 = vld [vmem:[%s12 + $0x140] sm:$0xff]
        %v2331 = vld [vmem:[%s12 + $0x148] sm:$0xff]
        %v2332 = vld [vmem:[%s12 + $0x150] sm:$0xff]
        %v2333 = vld [vmem:[%s12 + $0x158] sm:$0xff]
        %v2334 = vld [vmem:[%s12 + $0x160] sm:$0xff]
        %v2335 = vld [vmem:[%s12 + $0x168] sm:$0xff]
        %v2336 = vld [vmem:[%s12 + $0x170] sm:$0xff]
        %v2337 = vld [vmem:[%s12 + $0x178] sm:$0xff]
        %v2338 = vld [vmem:[%s12 + $0x180] sm:$0xff]
        %v2339 = vld [vmem:[%s12 + $0x188] sm:$0xff]
        %v2340 = vld [vmem:[%s12 + $0x190] sm:$0xff]
        %v2341 = vld [vmem:[%s12 + $0x198] sm:$0xff]
        %v2342 = vld [vmem:[%s12 + $0x1a0] sm:$0xff]
        %v2343 = vld [vmem:[%s12 + $0x1a8] sm:$0xff]
        %v2344 = vld [vmem:[%s12 + $0x1b0] sm:$0xff]
        %v2345 = vld [vmem:[%s12 + $0x1b8] sm:$0xff]
        %v2346 = vld [vmem:[%s12 + $0x1c0] sm:$0xff]
        %v2347 = vld [vmem:[%s12 + $0x1c8] sm:$0xff]
        %v2348 = vld [vmem:[%s12 + $0x1d0] sm:$0xff]
        %v2349 = vld [vmem:[%s12 + $0x1d8] sm:$0xff]
        %v2350 = vld [vmem:[%s12 + $0x1e0] sm:$0xff]
        %v2351 = vld [vmem:[%s12 + $0x1e8] sm:$0xff]
        %v2352 = vld [vmem:[%s12 + $0x1f0] sm:$0xff]
        %v2353 = vld [vmem:[%s12 + $0x1f8] sm:$0xff]
        %v2354 = vld [vmem:[%s12 + $0x200] sm:$0xff]
        %v2355 = vld [vmem:[%s12 + $0x208] sm:$0xff]
        %v2356 = vld [vmem:[%s12 + $0x210] sm:$0xff]
        %v2357 = vld [vmem:[%s12 + $0x218] sm:$0xff]
        %v2358 = vld [vmem:[%s12 + $0x220] sm:$0xff]
        %v2359 = vld [vmem:[%s12 + $0x228] sm:$0xff]
        %v2360 = vld [vmem:[%s12 + $0x230] sm:$0xff]
        %v2361 = vld [vmem:[%s12 + $0x238] sm:$0xff]
        %v2362 = vld [vmem:[%s12 + $0x240] sm:$0xff]
        %v2363 = vld [vmem:[%s12 + $0x248] sm:$0xff]
        %v2364 = vld [vmem:[%s12 + $0x250] sm:$0xff]
        %v2365 = vld [vmem:[%s12 + $0x258] sm:$0xff]
        %v2366 = vld [vmem:[%s12 + $0x260] sm:$0xff]
        %v2367 = vld [vmem:[%s12 + $0x268] sm:$0xff]
        %v2368 = vld [vmem:[%s12 + $0x270] sm:$0xff]
        %v2369 = vld [vmem:[%s12 + $0x278] sm:$0xff]
        %v2370 = vld [vmem:[%s12 + $0x280] sm:$0xff]
        %v2371 = vld [vmem:[%s12 + $0x288] sm:$0xff]
        %v2372 = vld [vmem:[%s12 + $0x290] sm:$0xff]
        %v2373 = vld [vmem:[%s12 + $0x298] sm:$0xff]
        %v2374 = vld [vmem:[%s12 + $0x2a0] sm:$0xff]
        %v2375 = vld [vmem:[%s12 + $0x2a8] sm:$0xff]
        %v2376 = vld [vmem:[%s12 + $0x2b0] sm:$0xff]
        %v2377 = vld [vmem:[%s12 + $0x2b8] sm:$0xff]
        %v2378 = vld [vmem:[%s12 + $0x2c0] sm:$0xff]
        %v2379 = vld [vmem:[%s12 + $0x2c8] sm:$0xff]
        %v2380 = vld [vmem:[%s12 + $0x2d0] sm:$0xff]
        %v2381 = vld [vmem:[%s12 + $0x2d8] sm:$0xff]
        %v2382 = vld [vmem:[%s12 + $0x2e0] sm:$0xff]
        %v2383 = vld [vmem:[%s12 + $0x2e8] sm:$0xff]
        %v2384 = vld [vmem:[%s12 + $0x2f0] sm:$0xff]
        %v2385 = vld [vmem:[%s12 + $0x2f8] sm:$0xff]
        %v2386 = vld [vmem:[%s12 + $0x300] sm:$0xff]
        %v2387 = vld [vmem:[%s12 + $0x308] sm:$0xff]
        %v2388 = vld [vmem:[%s12 + $0x310] sm:$0xff]
        %v2389 = vld [vmem:[%s12 + $0x318] sm:$0xff]
        %v2390 = vld [vmem:[%s12 + $0x320] sm:$0xff]
        %v2391 = vld [vmem:[%s12 + $0x328] sm:$0xff]
        %v2392 = vld [vmem:[%s12 + $0x330] sm:$0xff]
        %v2393 = vld [vmem:[%s12 + $0x338] sm:$0xff]
        %v2394 = vld [vmem:[%s12 + $0x340] sm:$0xff]
        %v2395 = vld [vmem:[%s12 + $0x348] sm:$0xff]
        %v2396 = vld [vmem:[%s12 + $0x350] sm:$0xff]
        %v2397 = vld [vmem:[%s12 + $0x358] sm:$0xff]
        %v2398 = vld [vmem:[%s12 + $0x360] sm:$0xff]
        %v2399 = vld [vmem:[%s12 + $0x368] sm:$0xff]
        %v2400 = vld [vmem:[%s12 + $0x370] sm:$0xff]
        %v2401 = vld [vmem:[%s12 + $0x378] sm:$0xff]
        %v2402 = vld [vmem:[%s12 + $0x380] sm:$0xff]
        %v2403 = vld [vmem:[%s12 + $0x388] sm:$0xff]
        %v2404 = vld [vmem:[%s12 + $0x390] sm:$0xff]
        %v2405 = vld [vmem:[%s12 + $0x398] sm:$0xff]
        %v2406 = vld [vmem:[%s12 + $0x3a0] sm:$0xff]
        %v2407 = vld [vmem:[%s12 + $0x3a8] sm:$0xff]
        %v2408 = vld [vmem:[%s12 + $0x3b0] sm:$0xff]
        %v2409 = vld [vmem:[%s12 + $0x3b8] sm:$0xff]
        %v2410 = vld [vmem:[%s12 + $0x3c0] sm:$0xff]
        %v2411 = vld [vmem:[%s12 + $0x3c8] sm:$0xff]
        %v2412 = vld [vmem:[%s12 + $0x3d0] sm:$0xff]
        %v2413 = vld [vmem:[%s12 + $0x3d8] sm:$0xff]
        %v2414 = vld [vmem:[%s12 + $0x3e0] sm:$0xff]
        %v2415 = vld [vmem:[%s12 + $0x3e8] sm:$0xff]
        %v2416 = vld [vmem:[%s12 + $0x3f0] sm:$0xff]
        %v2417 = vld [vmem:[%s12 + $0x3f8] sm:$0xff]
        %v2418 = vld [vmem:[%s13] sm:$0x1]
        %v2420 = vlaneseq
        %v2421 = vshrl.u32 %v2420, 7
        %v2422 = vsub.s32 0, %v2421
        %v2423 = vrot.slane %v2418, %v2422
        %2425 = vmatprep.subr.mxu0 0.0
        %2426 = vmatpush1.msra.mxu0 %v2305
        %2427 = vmatprep.subr.mxu0 0.0
        %2428 = vmatpush1.msra.mxu0 %v2304
        %2429 = vmatprep.subr.mxu0 0.0
        %2430 = vmatpush1.msra.mxu0 %v2303
        %2431 = vmatprep.subr.mxu0 0.0
        %2432 = vmatpush1.msra.mxu0 %v2302
        %2433 = vmatprep.subr.mxu0 0.0
        %2434 = vmatpush1.msra.mxu0 %v2301
        %2435 = vmatprep.subr.mxu0 0.0
        %2436 = vmatpush1.msra.mxu0 %v2300
        %2437 = vmatprep.subr.mxu0 0.0
        %2438 = vmatpush1.msra.mxu0 %v2299
        %2439 = vmatprep.subr.mxu0 0.0
        %2440 = vmatpush1.msra.mxu0 %v2298
        %2441 = vmatprep.subr.mxu0 0.0
        %2442 = vmatpush1.msra.mxu0 %v2297
        %2443 = vmatprep.subr.mxu0 0.0
        %2444 = vmatpush1.msra.mxu0 %v2296
        %2445 = vmatprep.subr.mxu0 0.0
        %2446 = vmatpush1.msra.mxu0 %v2295
        %2447 = vmatprep.subr.mxu0 0.0
        %2448 = vmatpush1.msra.mxu0 %v2294
        %2449 = vmatprep.subr.mxu0 0.0
        %2450 = vmatpush1.msra.mxu0 %v2293
        %2451 = vmatprep.subr.mxu0 0.0
        %2452 = vmatpush1.msra.mxu0 %v2292
        %2453 = vmatprep.subr.mxu0 0.0
        %2454 = vmatpush1.msra.mxu0 %v2291
        %2455 = vmatprep.subr.mxu0 0.0
        %2456 = vmatpush1.msra.mxu0 %v2290
        %2457 = vmatprep.subr.mxu0 0.0
        %2458 = vmatpush2.msra.mxu0 %v2321
        %2459 = vmatprep.subr.mxu0 0.0
        %2460 = vmatpush2.msra.mxu0 %v2320
        %2461 = vmatprep.subr.mxu0 0.0
        %2462 = vmatpush2.msra.mxu0 %v2319
        %2463 = vmatprep.subr.mxu0 0.0
        %2464 = vmatpush2.msra.mxu0 %v2318
        %2465 = vmatprep.subr.mxu0 0.0
        %2466 = vmatpush2.msra.mxu0 %v2317
        %2467 = vmatprep.subr.mxu0 0.0
        %2468 = vmatpush2.msra.mxu0 %v2316
        %2469 = vmatprep.subr.mxu0 0.0
        %2470 = vmatpush2.msra.mxu0 %v2315
        %2471 = vmatprep.subr.mxu0 0.0
        %2472 = vmatpush2.msra.mxu0 %v2314
        %2473 = vmatprep.subr.mxu0 0.0
        %2474 = vmatpush2.msra.mxu0 %v2313
        %2475 = vmatprep.subr.mxu0 0.0
        %2476 = vmatpush2.msra.mxu0 %v2312
        %2477 = vmatprep.subr.mxu0 0.0
        %2478 = vmatpush2.msra.mxu0 %v2311
        %2479 = vmatprep.subr.mxu0 0.0
        %2480 = vmatpush2.msra.mxu0 %v2310
        %2481 = vmatprep.subr.mxu0 0.0
        %2482 = vmatpush2.msra.mxu0 %v2309
        %2483 = vmatprep.subr.mxu0 0.0
        %2484 = vmatpush2.msra.mxu0 %v2308
        %2485 = vmatprep.subr.mxu0 0.0
        %2486 = vmatpush2.msra.mxu0 %v2307
        %2487 = vmatprep.subr.mxu0 0.0
        %2488 = vmatpush2.msra.mxu0 %v2306
        %2489 = vmatprep.mubr.f32.mxu0 %v2283
        %2490 = vmatmul.mubr.f32.gmra.mxu0 %v2282
        %v2491 = vpop.f32.mrf.mxu0
        %v2492 = vadd.f32 %v2423, %v2491
        %v2493 = vpop.f32.mrf.mxu0
        %2494 = vdwg.mxu0
        %2495 = vmatprep.subr.mxu0 0.0
        %2496 = vmatpush1.msra.mxu0 %v2337
        %2497 = vmatprep.subr.mxu0 0.0
        %2498 = vmatpush1.msra.mxu0 %v2336
        %2499 = vmatprep.subr.mxu0 0.0
        %2500 = vmatpush1.msra.mxu0 %v2335
        %2501 = vmatprep.subr.mxu0 0.0
        %2502 = vmatpush1.msra.mxu0 %v2334
        %2503 = vmatprep.subr.mxu0 0.0
        %2504 = vmatpush1.msra.mxu0 %v2333
        %2505 = vmatprep.subr.mxu0 0.0
        %2506 = vmatpush1.msra.mxu0 %v2332
        %2507 = vmatprep.subr.mxu0 0.0
        %2508 = vmatpush1.msra.mxu0 %v2331
        %2509 = vmatprep.subr.mxu0 0.0
        %2510 = vmatpush1.msra.mxu0 %v2330
        %2511 = vmatprep.subr.mxu0 0.0
        %2512 = vmatpush1.msra.mxu0 %v2329
        %2513 = vmatprep.subr.mxu0 0.0
        %2514 = vmatpush1.msra.mxu0 %v2328
        %2515 = vmatprep.subr.mxu0 0.0
        %2516 = vmatpush1.msra.mxu0 %v2327
        %2517 = vmatprep.subr.mxu0 0.0
        %2518 = vmatpush1.msra.mxu0 %v2326
        %2519 = vmatprep.subr.mxu0 0.0
        %2520 = vmatpush1.msra.mxu0 %v2325
        %2521 = vmatprep.subr.mxu0 0.0
        %2522 = vmatpush1.msra.mxu0 %v2324
        %2523 = vmatprep.subr.mxu0 0.0
        %2524 = vmatpush1.msra.mxu0 %v2323
        %2525 = vmatprep.subr.mxu0 0.0
        %2526 = vmatpush1.msra.mxu0 %v2322
        %2527 = vmatprep.subr.mxu0 0.0
        %2528 = vmatpush2.msra.mxu0 %v2353
        %2529 = vmatprep.subr.mxu0 0.0
        %2530 = vmatpush2.msra.mxu0 %v2352
        %2531 = vmatprep.subr.mxu0 0.0
        %2532 = vmatpush2.msra.mxu0 %v2351
        %2533 = vmatprep.subr.mxu0 0.0
        %2534 = vmatpush2.msra.mxu0 %v2350
        %2535 = vmatprep.subr.mxu0 0.0
        %2536 = vmatpush2.msra.mxu0 %v2349
        %2537 = vmatprep.subr.mxu0 0.0
        %2538 = vmatpush2.msra.mxu0 %v2348
        %2539 = vmatprep.subr.mxu0 0.0
        %2540 = vmatpush2.msra.mxu0 %v2347
        %2541 = vmatprep.subr.mxu0 0.0
        %2542 = vmatpush2.msra.mxu0 %v2346
        %2543 = vmatprep.subr.mxu0 0.0
        %2544 = vmatpush2.msra.mxu0 %v2345
        %2545 = vmatprep.subr.mxu0 0.0
        %2546 = vmatpush2.msra.mxu0 %v2344
        %2547 = vmatprep.subr.mxu0 0.0
        %2548 = vmatpush2.msra.mxu0 %v2343
        %2549 = vmatprep.subr.mxu0 0.0
        %2550 = vmatpush2.msra.mxu0 %v2342
        %2551 = vmatprep.subr.mxu0 0.0
        %2552 = vmatpush2.msra.mxu0 %v2341
        %2553 = vmatprep.subr.mxu0 0.0
        %2554 = vmatpush2.msra.mxu0 %v2340
        %2555 = vmatprep.subr.mxu0 0.0
        %2556 = vmatpush2.msra.mxu0 %v2339
        %2557 = vmatprep.subr.mxu0 0.0
        %2558 = vmatpush2.msra.mxu0 %v2338
        %2559 = vmatprep.mubr.f32.mxu0 %v2285
        %2560 = vmatmul.mubr.f32.gmra.mxu0 %v2284
        %v2561 = vpop.f32.mrf.mxu0
        %v2562 = vadd.f32 %v2492, %v2561
        %v2563 = vpop.f32.mrf.mxu0
        %2564 = vdwg.mxu0
        %2565 = vmatprep.subr.mxu0 0.0
        %2566 = vmatpush1.msra.mxu0 %v2369
        %2567 = vmatprep.subr.mxu0 0.0
        %2568 = vmatpush1.msra.mxu0 %v2368
        %2569 = vmatprep.subr.mxu0 0.0
        %2570 = vmatpush1.msra.mxu0 %v2367
        %2571 = vmatprep.subr.mxu0 0.0
        %2572 = vmatpush1.msra.mxu0 %v2366
        %2573 = vmatprep.subr.mxu0 0.0
        %2574 = vmatpush1.msra.mxu0 %v2365
        %2575 = vmatprep.subr.mxu0 0.0
        %2576 = vmatpush1.msra.mxu0 %v2364
        %2577 = vmatprep.subr.mxu0 0.0
        %2578 = vmatpush1.msra.mxu0 %v2363
        %2579 = vmatprep.subr.mxu0 0.0
        %2580 = vmatpush1.msra.mxu0 %v2362
        %2581 = vmatprep.subr.mxu0 0.0
        %2582 = vmatpush1.msra.mxu0 %v2361
        %2583 = vmatprep.subr.mxu0 0.0
        %2584 = vmatpush1.msra.mxu0 %v2360
        %2585 = vmatprep.subr.mxu0 0.0
        %2586 = vmatpush1.msra.mxu0 %v2359
        %2587 = vmatprep.subr.mxu0 0.0
        %2588 = vmatpush1.msra.mxu0 %v2358
        %2589 = vmatprep.subr.mxu0 0.0
        %2590 = vmatpush1.msra.mxu0 %v2357
        %2591 = vmatprep.subr.mxu0 0.0
        %2592 = vmatpush1.msra.mxu0 %v2356
        %2593 = vmatprep.subr.mxu0 0.0
        %2594 = vmatpush1.msra.mxu0 %v2355
        %2595 = vmatprep.subr.mxu0 0.0
        %2596 = vmatpush1.msra.mxu0 %v2354
        %2597 = vmatprep.subr.mxu0 0.0
        %2598 = vmatpush2.msra.mxu0 %v2385
        %2599 = vmatprep.subr.mxu0 0.0
        %2600 = vmatpush2.msra.mxu0 %v2384
        %2601 = vmatprep.subr.mxu0 0.0
        %2602 = vmatpush2.msra.mxu0 %v2383
        %2603 = vmatprep.subr.mxu0 0.0
        %2604 = vmatpush2.msra.mxu0 %v2382
        %2605 = vmatprep.subr.mxu0 0.0
        %2606 = vmatpush2.msra.mxu0 %v2381
        %2607 = vmatprep.subr.mxu0 0.0
        %2608 = vmatpush2.msra.mxu0 %v2380
        %2609 = vmatprep.subr.mxu0 0.0
        %2610 = vmatpush2.msra.mxu0 %v2379
        %2611 = vmatprep.subr.mxu0 0.0
        %2612 = vmatpush2.msra.mxu0 %v2378
        %2613 = vmatprep.subr.mxu0 0.0
        %2614 = vmatpush2.msra.mxu0 %v2377
        %2615 = vmatprep.subr.mxu0 0.0
        %2616 = vmatpush2.msra.mxu0 %v2376
        %2617 = vmatprep.subr.mxu0 0.0
        %2618 = vmatpush2.msra.mxu0 %v2375
        %2619 = vmatprep.subr.mxu0 0.0
        %2620 = vmatpush2.msra.mxu0 %v2374
        %2621 = vmatprep.subr.mxu0 0.0
        %2622 = vmatpush2.msra.mxu0 %v2373
        %2623 = vmatprep.subr.mxu0 0.0
        %2624 = vmatpush2.msra.mxu0 %v2372
        %2625 = vmatprep.subr.mxu0 0.0
        %2626 = vmatpush2.msra.mxu0 %v2371
        %2627 = vmatprep.subr.mxu0 0.0
        %2628 = vmatpush2.msra.mxu0 %v2370
        %2629 = vmatprep.mubr.f32.mxu0 %v2287
        %2630 = vmatmul.mubr.f32.gmra.mxu0 %v2286
        %v2631 = vpop.f32.mrf.mxu0
        %v2632 = vadd.f32 %v2562, %v2631
        %v2633 = vpop.f32.mrf.mxu0
        %2634 = vdwg.mxu0
        %2635 = vmatprep.subr.mxu0 0.0
        %2636 = vmatpush1.msra.mxu0 %v2401
        %2637 = vmatprep.subr.mxu0 0.0
        %2638 = vmatpush1.msra.mxu0 %v2400
        %2639 = vmatprep.subr.mxu0 0.0
        %2640 = vmatpush1.msra.mxu0 %v2399
        %2641 = vmatprep.subr.mxu0 0.0
        %2642 = vmatpush1.msra.mxu0 %v2398
        %2643 = vmatprep.subr.mxu0 0.0
        %2644 = vmatpush1.msra.mxu0 %v2397
        %2645 = vmatprep.subr.mxu0 0.0
        %2646 = vmatpush1.msra.mxu0 %v2396
        %2647 = vmatprep.subr.mxu0 0.0
        %2648 = vmatpush1.msra.mxu0 %v2395
        %2649 = vmatprep.subr.mxu0 0.0
        %2650 = vmatpush1.msra.mxu0 %v2394
        %2651 = vmatprep.subr.mxu0 0.0
        %2652 = vmatpush1.msra.mxu0 %v2393
        %2653 = vmatprep.subr.mxu0 0.0
        %2654 = vmatpush1.msra.mxu0 %v2392
        %2655 = vmatprep.subr.mxu0 0.0
        %2656 = vmatpush1.msra.mxu0 %v2391
        %2657 = vmatprep.subr.mxu0 0.0
        %2658 = vmatpush1.msra.mxu0 %v2390
        %2659 = vmatprep.subr.mxu0 0.0
        %2660 = vmatpush1.msra.mxu0 %v2389
        %2661 = vmatprep.subr.mxu0 0.0
        %2662 = vmatpush1.msra.mxu0 %v2388
        %2663 = vmatprep.subr.mxu0 0.0
        %2664 = vmatpush1.msra.mxu0 %v2387
        %2665 = vmatprep.subr.mxu0 0.0
        %2666 = vmatpush1.msra.mxu0 %v2386
        %2667 = vmatprep.subr.mxu0 0.0
        %2668 = vmatpush2.msra.mxu0 %v2417
        %2669 = vmatprep.subr.mxu0 0.0
        %2670 = vmatpush2.msra.mxu0 %v2416
        %2671 = vmatprep.subr.mxu0 0.0
        %2672 = vmatpush2.msra.mxu0 %v2415
        %2673 = vmatprep.subr.mxu0 0.0
        %2674 = vmatpush2.msra.mxu0 %v2414
        %2675 = vmatprep.subr.mxu0 0.0
        %2676 = vmatpush2.msra.mxu0 %v2413
        %2677 = vmatprep.subr.mxu0 0.0
        %2678 = vmatpush2.msra.mxu0 %v2412
        %2679 = vmatprep.subr.mxu0 0.0
        %2680 = vmatpush2.msra.mxu0 %v2411
        %2681 = vmatprep.subr.mxu0 0.0
        %2682 = vmatpush2.msra.mxu0 %v2410
        %2683 = vmatprep.subr.mxu0 0.0
        %2684 = vmatpush2.msra.mxu0 %v2409
        %2685 = vmatprep.subr.mxu0 0.0
        %2686 = vmatpush2.msra.mxu0 %v2408
        %2687 = vmatprep.subr.mxu0 0.0
        %2688 = vmatpush2.msra.mxu0 %v2407
        %2689 = vmatprep.subr.mxu0 0.0
        %2690 = vmatpush2.msra.mxu0 %v2406
        %2691 = vmatprep.subr.mxu0 0.0
        %2692 = vmatpush2.msra.mxu0 %v2405
        %2693 = vmatprep.subr.mxu0 0.0
        %2694 = vmatpush2.msra.mxu0 %v2404
        %2695 = vmatprep.subr.mxu0 0.0
        %2696 = vmatpush2.msra.mxu0 %v2403
        %2697 = vmatprep.subr.mxu0 0.0
        %2698 = vmatpush2.msra.mxu0 %v2402
        %2699 = vmatprep.mubr.f32.mxu0 %v2289
        %2700 = vmatmul.mubr.f32.gmra.mxu0 %v2288
        %v2701 = vpop.f32.mrf.mxu0
        %v2702 = vadd.f32 %v2632, %v2701
        %v2703 = vpop.f32.mrf.mxu0
        %2704 = vdwg.mxu0
        %v2705 = vadd.f32 %v1872, %v2702
        %v2706 = vsel %vm567, %v2705, 0.0
        %2707 = vadd.xlane.f32.xlu0 %v2706
        %v2708 = vpop.xlane.xlu0 %2707
        %v2709 = vmul.f32 %v2708, %v1153
        %v2710 = vmul.f32 %v2705, %v2705
        %v2711 = vsel %vm567, %v2710, 0.0
        %2712 = vadd.xlane.f32.xlu0 %v2711
        %v2713 = vpop.xlane.xlu0 %2712
        %v2714 = vmul.f32 %v2713, %v1153
        %v2715 = vmul.f32 %v2709, %v2709
        %v2716 = vsub.f32 %v2714, %v2715
        %v2717 = vsub.f32 %v2705, %v2709
        %v2718 = vadd.f32 %v2716, 1e-05
        %v2719 = vrsqrt.pop %v2718
        %v2720 = vmul.f32 %v2717, %v2719
        %v2721 = vmul.f32 %v2720, %v1170
        %v2722 = vadd.f32 %v2721, %v1177
        %v2723 = vld [vmem:[%s14] sm:$0xff]
        %v2724 = vld [vmem:[%s14 + $0x8] sm:$0xff]
        %v2725 = vld [vmem:[%s14 + $0x10] sm:$0xff]
        %v2726 = vld [vmem:[%s14 + $0x18] sm:$0xff]
        %v2727 = vld [vmem:[%s14 + $0x20] sm:$0xff]
        %v2728 = vld [vmem:[%s14 + $0x28] sm:$0xff]
        %v2729 = vld [vmem:[%s15] sm:$0x1]
        %v2731 = vlaneseq
        %v2732 = vshrl.u32 %v2731, 7
        %v2733 = vsub.s32 0, %v2732
        %v2734 = vrot.slane %v2729, %v2733
        %v2737 = vsel %vm567, %v2722, 0
        %2739 = vmatprep.subr.mxu0 0.0
        %2740 = vmatpush1.msra.mxu0 0.0
        %2741 = vmatprep.subr.mxu0 0.0
        %2742 = vmatpush1.msra.mxu0 0.0
        %2743 = vmatprep.subr.mxu0 0.0
        %2744 = vmatpush1.msra.mxu0 0.0
        %2745 = vmatprep.subr.mxu0 0.0
        %2746 = vmatpush1.msra.mxu0 0.0
        %2747 = vmatprep.subr.mxu0 0.0
        %2748 = vmatpush1.msra.mxu0 0.0
        %2749 = vmatprep.subr.mxu0 0.0
        %2750 = vmatpush1.msra.mxu0 0.0
        %2751 = vmatprep.subr.mxu0 0.0
        %2752 = vmatpush1.msra.mxu0 0.0
        %2753 = vmatprep.subr.mxu0 0.0
        %2754 = vmatpush1.msra.mxu0 0.0
        %2755 = vmatprep.subr.mxu0 0.0
        %2756 = vmatpush1.msra.mxu0 0.0
        %2757 = vmatprep.subr.mxu0 0.0
        %2758 = vmatpush1.msra.mxu0 0.0
        %2759 = vmatprep.subr.mxu0 0.0
        %2760 = vmatpush1.msra.mxu0 %v2728
        %2761 = vmatprep.subr.mxu0 0.0
        %2762 = vmatpush1.msra.mxu0 %v2727
        %2763 = vmatprep.subr.mxu0 0.0
        %2764 = vmatpush1.msra.mxu0 %v2726
        %2765 = vmatprep.subr.mxu0 0.0
        %2766 = vmatpush1.msra.mxu0 %v2725
        %2767 = vmatprep.subr.mxu0 0.0
        %2768 = vmatpush1.msra.mxu0 %v2724
        %2769 = vmatprep.subr.mxu0 0.0
        %2770 = vmatpush1.msra.mxu0 %v2723
        %2771 = vmatprep.subr.mxu0 0.0
        %2772 = vmatpush2.msra.mxu0 0.0
        %2773 = vmatprep.subr.mxu0 0.0
        %2774 = vmatpush2.msra.mxu0 0.0
        %2775 = vmatprep.subr.mxu0 0.0
        %2776 = vmatpush2.msra.mxu0 0.0
        %2777 = vmatprep.subr.mxu0 0.0
        %2778 = vmatpush2.msra.mxu0 0.0
        %2779 = vmatprep.subr.mxu0 0.0
        %2780 = vmatpush2.msra.mxu0 0.0
        %2781 = vmatprep.subr.mxu0 0.0
        %2782 = vmatpush2.msra.mxu0 0.0
        %2783 = vmatprep.subr.mxu0 0.0
        %2784 = vmatpush2.msra.mxu0 0.0
        %2785 = vmatprep.subr.mxu0 0.0
        %2786 = vmatpush2.msra.mxu0 0.0
        %2787 = vmatprep.subr.mxu0 0.0
        %2788 = vmatpush2.msra.mxu0 0.0
        %2789 = vmatprep.subr.mxu0 0.0
        %2790 = vmatpush2.msra.mxu0 0.0
        %2791 = vmatprep.subr.mxu0 0.0
        %2792 = vmatpush2.msra.mxu0 0.0
        %2793 = vmatprep.subr.mxu0 0.0
        %2794 = vmatpush2.msra.mxu0 0.0
        %2795 = vmatprep.subr.mxu0 0.0
        %2796 = vmatpush2.msra.mxu0 0.0
        %2797 = vmatprep.subr.mxu0 0.0
        %2798 = vmatpush2.msra.mxu0 0.0
        %2799 = vmatprep.subr.mxu0 0.0
        %2800 = vmatpush2.msra.mxu0 0.0
        %2801 = vmatprep.subr.mxu0 0.0
        %2802 = vmatpush2.msra.mxu0 0.0
        %2803 = vmatprep.mubr.f32.mxu0 0.0
        %2804 = vmatmul.mubr.f32.gmra.mxu0 %v2737
        %v2805 = vpop.f32.mrf.mxu0
        %v2806 = vadd.f32 %v2734, %v2805
        %v2807 = vpop.f32.mrf.mxu0
        %2808 = vdwg.mxu0
        %v2809 = vsel %vm1147, %v2806, -inf
        %2810 = vmax.xlane.f32.xlu0 %v2809
        %v2811 = vpop.xlane.xlu0 %2810
        %v2812 = vsub.f32 %v2806, %v2811
        %v2813 = vmul.f32 %v2812, 1.442695
        %v2814 = vpow.pop %v2813
        %v2815 = vsel %vm1147, %v2814, 0.0
        %2816 = vadd.xlane.f32.xlu0 %v2815
        %v2817 = vpop.xlane.xlu0 %2816
        %v2818 = vlog2.pop %v2817
        %v2819 = vmul.f32 %v2818, 0.6931472
        %v2820 = vsub.f32 %v2812, %v2819
        %2821 = vst.msk [vmem:[%s525] sm:$0xff] %vm1147, %v2820
        %s2822 = sand.u32 %s384, 1
        %s2823 = scalar_lea.sflag [#allocation3], %s2822
        %s2824 = sand.u32 %s384, 1
        %s2825 = smul.addr %s2824, 8
        %s2826 = scalar_lea.vmem [#allocation2], %s2825
        // Predicated region
        $region85: #{tpu_custom_call.1} parent=83 // pred_check
          %p2827 = pneg %p394
        $region86: #{tpu_custom_call.1} parent=83 // pred_check_branch
          %2829 = sbr.rel (%p2827) target = $region88
        $region87: #{tpu_custom_call.1} parent=83 // pred_region
          %s2831 = ssub.s32 128, 128
          %2832 = vsyncadd %s2823, %s2831
          %s2833 = smul.addr %s30, 128
          %s2834 = scalar_lea.hbm %s16, %s2833
          %s2836 = sshll.u32 %s2826, 4
          %s2837 = int_to_ptr.vmem [resolvable:$true] %s2836
          %2839 = dma.vmem_to_hbm [thread:$0]  %s2837, 128, %s2834, %s2823
        $region88: #{tpu_custom_call.1} parent=83 // pred_fallthru
          _
      $region84: #{tpu_custom_call.1} parent=5 // pred_fallthru
        _
      %p2840 = scmp.le.s32.totalorder 2, %s25
      // Predicated region
      $region89: #{tpu_custom_call.1} parent=5 // pred_check
        %p2841 = pneg %p2840
      $region90: #{tpu_custom_call.1} parent=5 // pred_check_branch
        %2843 = sbr.rel (%p2841) target = $region92
      $region91: #{tpu_custom_call.1} parent=5 // pred_region
        %s2844 = ssub.s32 %s25, 2
        // Predicated region
        $region93: #{tpu_custom_call.1} parent=91 // pred_check
          %p2845 = pneg %p400
        $region94: #{tpu_custom_call.1} parent=91 // pred_check_branch
          %2847 = sbr.rel (%p2845) target = $region96
        $region95: #{tpu_custom_call.1} parent=91 // pred_region
          %s2848 = sand.u32 %s385, 1
          %s2849 = scalar_lea.sflag [#allocation3], %s2848
          %s2850 = sand.u32 %s385, 1
          %s2851 = smul.addr %s2850, 8
          %s2852 = scalar_lea.vmem [#allocation2], %s2851
          %2853 = dma.done %s2849, 128
        $region96: #{tpu_custom_call.1} parent=91 // pred_fallthru
          _
      $region92: #{tpu_custom_call.1} parent=5 // pred_fallthru
        _
    $region6: #{tpu_custom_call.1} parent=1 // loop_footer
      %s29 = sadd.s32 1, %s25
    $region7: #{tpu_custom_call.1} parent=1 // loop_footer_branch
      %24 = sbr.rel target = $region3
    $region8: #{tpu_custom_call.1} parent=1 // loop_exit
      _
    %2854 = vsyncpa [#allocation3], 1
    %s2855 = scalar_lea.sflag [#allocation3], 1
    %2856 = vsyncpa %s2855, 1

</llo_original>
